<compile_context>
chip_gen: v5e
topology: v5e:2x2
jax: 0.10.0
libtpu: 0.0.40
codegen_flags: <defaults>
</compile_context>

<pallas_src>
import jax
import jax.numpy as jnp
from jax import lax
from jax.experimental import pallas as pl
from jax.experimental.pallas import tpu as pltpu
import numpy as np


def bottleneck_kernel(x_ref, w1_ref, b1_ref, w2_ref, b2_ref, w3_ref, b3_ref,
                      o_ref, pad_ref):
    # x_ref : (1, H, W, Cin)        bf16, one image per grid step
    # w1_ref: (Cin, width)          bf16, BN1 scale folded in
    # w2_ref: (3, 3*width, width)   bf16, per-ky kx-concatenated 3x3 weights (BN2 folded)
    # w3_ref: (width, Cout)         bf16, BN3 scale folded in
    # b*_ref: (1, C)                f32 folded BN biases
    # pad_ref: (H+2, W+2, width)    bf16 VMEM scratch with 1-px zero halo
    _, H, W, cin = x_ref.shape
    width = w1_ref.shape[1]
    cout = w3_ref.shape[1]

    # ---- conv1 (1x1) + folded bn1 + relu (bf16 MXU, f32 accumulate) ---------
    x = x_ref[0].reshape(H * W, cin)
    h = jnp.dot(x, w1_ref[...], preferred_element_type=jnp.float32)
    h = jnp.maximum(h + b1_ref[0, :], 0.0)                     # (H*W, width) f32

    # ---- conv2 (3x3, stride 1, pad 1) + folded bn2 + relu -------------------
    # Zero only the 1-px halo border each step (interior is overwritten below).
    pad_ref[0:1, :, :] = jnp.zeros((1, W + 2, width), pad_ref.dtype)
    pad_ref[H + 1:H + 2, :, :] = jnp.zeros((1, W + 2, width), pad_ref.dtype)
    pad_ref[:, 0:1, :] = jnp.zeros((H + 2, 1, width), pad_ref.dtype)
    pad_ref[:, W + 1:W + 2, :] = jnp.zeros((H + 2, 1, width), pad_ref.dtype)
    pad_ref[1:H + 1, 1:W + 1, :] = h.reshape(H, W, width).astype(pad_ref.dtype)

    acc = None
    for ky in range(3):            # unrolled: 3 matmuls with K = 3*width each
        lhs = jnp.concatenate(
            [pad_ref[ky:ky + H, 0:W, :],
             pad_ref[ky:ky + H, 1:W + 1, :],
             pad_ref[ky:ky + H, 2:W + 2, :]],
            axis=-1).reshape(H * W, 3 * width)                  # bf16 im2col slab
        part = jnp.dot(lhs, w2_ref[ky], preferred_element_type=jnp.float32)
        acc = part if acc is None else acc + part
    h = jnp.maximum(acc + b2_ref[0, :], 0.0)

    # ---- conv3 (1x1) + folded bn3 -------------------------------------------
    h = jnp.dot(h.astype(w3_ref.dtype), w3_ref[...],
                preferred_element_type=jnp.float32)
    h = h + b3_ref[0, :]

    # ---- residual add (downsample=None -> identity) + relu ------------------
    ident = x_ref[0].reshape(H * W, cin).astype(jnp.float32)   # re-read: short live range
    out = jnp.maximum(h + ident, 0.0)
    o_ref[0] = out.reshape(H, W, cout).astype(o_ref.dtype)


def _round_up(n, m):
    return (n + m - 1) // m * m


def bottleneck_forward(x_nchw, params, *, lane=128):
    """Runs the Bottleneck block. Input/output are NCHW f32 (PyTorch convention)."""
    w1, w2, w3 = params["w1"], params["w2"], params["w3"]
    s1, b1 = params["s1"], params["b1"]
    s2, b2 = params["s2"], params["b2"]
    s3, b3 = params["s3"], params["b3"]

    cin, width = w1.shape
    cout = w3.shape[1]
    assert cin == cout, ("downsample=None requires inplanes == planes*expansion "
                         "so the identity residual matches the block output")

    N, _, H, W = x_nchw.shape
    cin_p = _round_up(cin, lane)
    wid_p = _round_up(width, lane)
    cout_p = _round_up(cout, lane)

    # --- fold BN scales into conv weights, pad channels to lane multiples ----
    w1f = w1 * s1                                  # (cin, width)
    w2f = w2 * s2.reshape(1, 1, 1, width)          # (3, 3, width, width)  HWIO
    w3f = w3 * s3                                  # (width, cout)

    w1p = jnp.zeros((cin_p, wid_p), jnp.float32).at[:cin, :width].set(w1f)
    w2p = jnp.zeros((3, 3, wid_p, wid_p), jnp.float32).at[:, :, :width, :width].set(w2f)
    w3p = jnp.zeros((wid_p, cout_p), jnp.float32).at[:width, :cout].set(w3f)
    b1p = jnp.zeros((1, wid_p), jnp.float32).at[:, :width].set(b1)
    b2p = jnp.zeros((1, wid_p), jnp.float32).at[:, :width].set(b2)
    b3p = jnp.zeros((1, cout_p), jnp.float32).at[:, :cout].set(b3)

    # Per-ky 3x3 weights with the three kx taps concatenated along input chans:
    # w2cat[ky][kx*wid_p:(kx+1)*wid_p, :] == w2p[ky, kx]
    w2cat = jnp.concatenate([w2p[:, 0], w2p[:, 1], w2p[:, 2]], axis=1)  # (3, 3*wid_p, wid_p)

    w1b = w1p.astype(jnp.bfloat16)
    w2b = w2cat.astype(jnp.bfloat16)
    w3b = w3p.astype(jnp.bfloat16)

    # --- input: NCHW f32 -> NHWC bf16, channel-padded ------------------------
    x = jnp.transpose(x_nchw, (0, 2, 3, 1))
    x = jnp.pad(x, ((0, 0), (0, 0), (0, 0), (0, cin_p - cin)))
    xb = x.astype(jnp.bfloat16)

    flops = 2 * N * H * W * (cin_p * wid_p + 9 * wid_p * wid_p + wid_p * cout_p)
    bytes_accessed = ((N * H * W * (cin_p + cout_p)) * 2
                      + (w1b.size + w2b.size + w3b.size) * 2
                      + (b1p.size + b2p.size + b3p.size) * 4)

    grid_spec = pltpu.PrefetchScalarGridSpec(
        num_scalar_prefetch=0,
        grid=(N,),
        in_specs=[
            pl.BlockSpec((1, H, W, cin_p), lambda n: (n, 0, 0, 0)),
            pl.BlockSpec((cin_p, wid_p), lambda n: (0, 0)),
            pl.BlockSpec((1, wid_p), lambda n: (0, 0)),
            pl.BlockSpec((3, 3 * wid_p, wid_p), lambda n: (0, 0, 0)),
            pl.BlockSpec((1, wid_p), lambda n: (0, 0)),
            pl.BlockSpec((wid_p, cout_p), lambda n: (0, 0)),
            pl.BlockSpec((1, cout_p), lambda n: (0, 0)),
        ],
        out_specs=pl.BlockSpec((1, H, W, cout_p), lambda n: (n, 0, 0, 0)),
        scratch_shapes=[pltpu.VMEM((H + 2, W + 2, wid_p), jnp.bfloat16)],
    )

    out = pl.pallas_call(
        bottleneck_kernel,
        out_shape=jax.ShapeDtypeStruct((N, H, W, cout_p), jnp.bfloat16),
        grid_spec=grid_spec,
        compiler_params=pltpu.CompilerParams(
            dimension_semantics=("parallel",),
            vmem_limit_bytes=32 * 1024 * 1024,
        ),
        cost_estimate=pl.CostEstimate(
            flops=int(flops), transcendentals=0,
            bytes_accessed=int(bytes_accessed)),
    )(xb, w1b, b1p, w2b, b2p, w3b, b3p)

    out = out[..., :cout].astype(jnp.float32)
    return jnp.transpose(out, (0, 3, 1, 2))                     # -> NCHW


def reference_forward(x_nchw, p):
    """Plain-JAX f32 reference (original module semantics, unfolded BN)."""
    x = jnp.transpose(x_nchw, (0, 2, 3, 1))
    h = jnp.einsum('nhwc,ck->nhwk', x, p["w1"],
                   precision=lax.Precision.HIGHEST)
    h = jax.nn.relu(h * p["s1"] + p["b1"])
    h = lax.conv_general_dilated(h, p["w2"], window_strides=(1, 1),
                                 padding='SAME',
                                 dimension_numbers=('NHWC', 'HWIO', 'NHWC'),
                                 precision=lax.Precision.HIGHEST)
    h = jax.nn.relu(h * p["s2"] + p["b2"])
    h = jnp.einsum('nhwc,ck->nhwk', h, p["w3"],
                   precision=lax.Precision.HIGHEST)
    h = h * p["s3"] + p["b3"]
    out = jax.nn.relu(h + x)
    return jnp.transpose(out, (0, 3, 1, 2))


def make_params(key, inplanes, planes, base_width=64, groups=1):
    width = int(planes * (base_width / 64.0)) * groups
    cout = planes * 4  # Bottleneck.expansion == 4
    ks = jax.random.split(key, 16)

    def bn_fold(kg, kb, km, kv, c):
        gamma = 1.0 + 0.1 * jax.random.normal(kg, (c,), jnp.float32)
        beta = 0.1 * jax.random.normal(kb, (c,), jnp.float32)
        running_mean = 0.1 * jax.random.normal(km, (c,), jnp.float32)
        running_var = jnp.abs(jax.random.normal(kv, (c,), jnp.float32)) + 0.5
        scale = gamma / jnp.sqrt(running_var + 1e-5)
        bias = beta - running_mean * scale
        return scale.reshape(1, c), bias.reshape(1, c)

    s1, b1 = bn_fold(ks[4], ks[5], ks[6], ks[7], width)
    s2, b2 = bn_fold(ks[8], ks[9], ks[10], ks[11], width)
    s3, b3 = bn_fold(ks[12], ks[13], ks[14], ks[15], cout)

    return {
        "w1": 0.2 * jax.random.normal(ks[1], (inplanes, width), jnp.float32),
        "w2": 0.2 * jax.random.normal(ks[2], (3, 3, width, width), jnp.float32),
        "w3": 0.2 * jax.random.normal(ks[3], (width, cout), jnp.float32),
        "s1": s1, "b1": b1, "s2": s2, "b2": b2, "s3": s3, "b3": b3,
    }


if __name__ == "__main__":
    # Bottleneck with downsample=None requires inplanes == planes * expansion.
    N, inplanes, planes, H, W = 2, 16, 4, 16, 16

    key = jax.random.PRNGKey(0)
    kx, kp = jax.random.split(key)
    x = jax.random.normal(kx, (N, inplanes, H, W), jnp.float32)   # NCHW input
    params = make_params(kp, inplanes, planes)

    out = jax.block_until_ready(bottleneck_forward(x, params))
    ref = jax.block_until_ready(reference_forward(x, params))

    # Tolerance sized for bf16 activation/weight storage (f32 accumulation).
    np.testing.assert_allclose(np.asarray(out), np.asarray(ref),
                               rtol=5e-2, atol=1e-1)
    print("KERNEL_OK")
</pallas_src>

<mosaic_0001>
module attributes {stable_mosaic.version = 11 : i64} {
  func.func @bottleneck_kernel(%arg0: i32, %arg1: memref<1x16x16x128xbf16, #tpu.memory_space<vmem>>, %arg2: memref<128x128xbf16, #tpu.memory_space<vmem>>, %arg3: memref<1x128xf32, #tpu.memory_space<vmem>>, %arg4: memref<3x384x128xbf16, #tpu.memory_space<vmem>>, %arg5: memref<1x128xf32, #tpu.memory_space<vmem>>, %arg6: memref<128x128xbf16, #tpu.memory_space<vmem>>, %arg7: memref<1x128xf32, #tpu.memory_space<vmem>>, %arg8: memref<1x16x16x128xbf16, #tpu.memory_space<vmem>>, %arg9: memref<18x18x128xbf16, #tpu.memory_space<vmem>>) attributes {dimension_semantics = [#tpu.dimension_semantics<parallel>], iteration_bounds = array<i64: 2>, scalar_prefetch = 0 : i64, scratch_operands = 1 : i64, tpu.core_type = #tpu.core_type<tc>, window_params = [{transform_indices = @transform_0, window_bounds = array<i64: 1, 16, 16, 128>}, {pipeline_mode = #tpu.pipeline_mode<synchronous>, transform_indices = @transform_1, window_bounds = array<i64: 128, 128>}, {pipeline_mode = #tpu.pipeline_mode<synchronous>, transform_indices = @transform_2, window_bounds = array<i64: 1, 128>}, {pipeline_mode = #tpu.pipeline_mode<synchronous>, transform_indices = @transform_3, window_bounds = array<i64: 3, 384, 128>}, {pipeline_mode = #tpu.pipeline_mode<synchronous>, transform_indices = @transform_4, window_bounds = array<i64: 1, 128>}, {pipeline_mode = #tpu.pipeline_mode<synchronous>, transform_indices = @transform_5, window_bounds = array<i64: 128, 128>}, {pipeline_mode = #tpu.pipeline_mode<synchronous>, transform_indices = @transform_6, window_bounds = array<i64: 1, 128>}, {transform_indices = @transform_7, window_bounds = array<i64: 1, 16, 16, 128>}]} {
    %c0 = arith.constant 0 : index
    %c0_0 = arith.constant 0 : index
    %c0_1 = arith.constant 0 : index
    %c0_2 = arith.constant 0 : index
    %0 = vector.load %arg1[%c0, %c0_0, %c0_1, %c0_2] : memref<1x16x16x128xbf16, #tpu.memory_space<vmem>>, vector<1x16x16x128xbf16>
    %1 = vector.shape_cast %0 : vector<1x16x16x128xbf16> to vector<16x16x128xbf16>
    %2 = vector.shape_cast %1 : vector<16x16x128xbf16> to vector<256x128xbf16>
    %c0_3 = arith.constant 0 : index
    %c0_4 = arith.constant 0 : index
    %3 = vector.load %arg2[%c0_3, %c0_4] : memref<128x128xbf16, #tpu.memory_space<vmem>>, vector<128x128xbf16>
    %cst = arith.constant dense<0.000000e+00> : vector<256x128xf32>
    %4 = tpu.matmul %2, %3, %cst {dimension_numbers = #tpu.dot_dimension_numbers<[1], [0], [0], [1], [0, 0, 1, 1], [], []>} : vector<256x128xbf16>, vector<128x128xbf16>, vector<256x128xf32> -> vector<256x128xf32>
    %c0_5 = arith.constant 0 : index
    %c0_6 = arith.constant 0 : index
    %5 = vector.load %arg3[%c0_5, %c0_6] : memref<1x128xf32, #tpu.memory_space<vmem>>, vector<1x128xf32>
    %6 = vector.shape_cast %5 : vector<1x128xf32> to vector<128xf32>
    %7 = vector.shape_cast %6 : vector<128xf32> to vector<1x128xf32>
    %8 = vector.broadcast %7 : vector<1x128xf32> to vector<256x128xf32>
    %9 = arith.addf %4, %8 : vector<256x128xf32>
    %cst_7 = arith.constant 0.000000e+00 : f32
    %10 = vector.broadcast %cst_7 : f32 to vector<256x128xf32>
    %11 = arith.maximumf %9, %10 : vector<256x128xf32>
    %cst_8 = arith.constant 0.000000e+00 : bf16
    %12 = vector.broadcast %cst_8 : bf16 to vector<1x18x128xbf16>
    %c0_9 = arith.constant 0 : index
    %c0_10 = arith.constant 0 : index
    %c0_11 = arith.constant 0 : index
    %13 = vector.load %arg9[%c0_9, %c0_10, %c0_11] : memref<18x18x128xbf16, #tpu.memory_space<vmem>>, vector<1x18x128xbf16>
    tpu.vector_store %arg9[%c0_9, %c0_10, %c0_11], %12 {strides = array<i32>} : memref<18x18x128xbf16, #tpu.memory_space<vmem>>, vector<1x18x128xbf16>,
    %cst_12 = arith.constant 0.000000e+00 : bf16
    %14 = vector.broadcast %cst_12 : bf16 to vector<1x18x128xbf16>
    %c17 = arith.constant 17 : index
    %c0_13 = arith.constant 0 : index
    %c0_14 = arith.constant 0 : index
    %15 = vector.load %arg9[%c17, %c0_13, %c0_14] : memref<18x18x128xbf16, #tpu.memory_space<vmem>>, vector<1x18x128xbf16>
    tpu.vector_store %arg9[%c17, %c0_13, %c0_14], %14 {strides = array<i32>} : memref<18x18x128xbf16, #tpu.memory_space<vmem>>, vector<1x18x128xbf16>,
    %cst_15 = arith.constant 0.000000e+00 : bf16
    %16 = vector.broadcast %cst_15 : bf16 to vector<18x1x128xbf16>
    %c0_16 = arith.constant 0 : index
    %c0_17 = arith.constant 0 : index
    %c0_18 = arith.constant 0 : index
    %17 = vector.load %arg9[%c0_16, %c0_17, %c0_18] : memref<18x18x128xbf16, #tpu.memory_space<vmem>>, vector<18x1x128xbf16>
    tpu.vector_store %arg9[%c0_16, %c0_17, %c0_18], %16 {strides = array<i32>} : memref<18x18x128xbf16, #tpu.memory_space<vmem>>, vector<18x1x128xbf16>,
    %cst_19 = arith.constant 0.000000e+00 : bf16
    %18 = vector.broadcast %cst_19 : bf16 to vector<18x1x128xbf16>
    %c0_20 = arith.constant 0 : index
    %c17_21 = arith.constant 17 : index
    %c0_22 = arith.constant 0 : index
    %19 = vector.load %arg9[%c0_20, %c17_21, %c0_22] : memref<18x18x128xbf16, #tpu.memory_space<vmem>>, vector<18x1x128xbf16>
    tpu.vector_store %arg9[%c0_20, %c17_21, %c0_22], %18 {strides = array<i32>} : memref<18x18x128xbf16, #tpu.memory_space<vmem>>, vector<18x1x128xbf16>,
    %20 = vector.shape_cast %11 : vector<256x128xf32> to vector<16x16x128xf32>
    %21 = arith.truncf %20 : vector<16x16x128xf32> to vector<16x16x128xbf16>
    %c1 = arith.constant 1 : index
    %c1_23 = arith.constant 1 : index
    %c0_24 = arith.constant 0 : index
    %22 = vector.load %arg9[%c1, %c1_23, %c0_24] : memref<18x18x128xbf16, #tpu.memory_space<vmem>>, vector<16x16x128xbf16>
    tpu.vector_store %arg9[%c1, %c1_23, %c0_24], %21 {strides = array<i32>} : memref<18x18x128xbf16, #tpu.memory_space<vmem>>, vector<16x16x128xbf16>,
    %c0_25 = arith.constant 0 : index
    %c0_26 = arith.constant 0 : index
    %c0_27 = arith.constant 0 : index
    %23 = vector.load %arg9[%c0_25, %c0_26, %c0_27] : memref<18x18x128xbf16, #tpu.memory_space<vmem>>, vector<16x16x128xbf16>
    %c0_28 = arith.constant 0 : index
    %c1_29 = arith.constant 1 : index
    %c0_30 = arith.constant 0 : index
    %24 = vector.load %arg9[%c0_28, %c1_29, %c0_30] : memref<18x18x128xbf16, #tpu.memory_space<vmem>>, vector<16x16x128xbf16>
    %c0_31 = arith.constant 0 : index
    %c2 = arith.constant 2 : index
    %c0_32 = arith.constant 0 : index
    %25 = vector.load %arg9[%c0_31, %c2, %c0_32] : memref<18x18x128xbf16, #tpu.memory_space<vmem>>, vector<16x16x128xbf16>
    %26 = tpu.concatenate %23, %24, %25 in 2 : vector<16x16x128xbf16>, vector<16x16x128xbf16>, vector<16x16x128xbf16> -> vector<16x16x384xbf16>
    %27 = vector.shape_cast %26 : vector<16x16x384xbf16> to vector<256x384xbf16>
    %c0_33 = arith.constant 0 : index
    %c0_34 = arith.constant 0 : index
    %c0_35 = arith.constant 0 : index
    %28 = vector.load %arg4[%c0_33, %c0_34, %c0_35] : memref<3x384x128xbf16, #tpu.memory_space<vmem>>, vector<1x384x128xbf16>
    %29 = vector.shape_cast %28 : vector<1x384x128xbf16> to vector<384x128xbf16>
    %cst_36 = arith.constant dense<0.000000e+00> : vector<256x128xf32>
    %30 = tpu.matmul %27, %29, %cst_36 {dimension_numbers = #tpu.dot_dimension_numbers<[1], [0], [0], [1], [0, 0, 1, 1], [], []>} : vector<256x384xbf16>, vector<384x128xbf16>, vector<256x128xf32> -> vector<256x128xf32>
    %c1_37 = arith.constant 1 : index
    %c0_38 = arith.constant 0 : index
    %c0_39 = arith.constant 0 : index
    %31 = vector.load %arg9[%c1_37, %c0_38, %c0_39] : memref<18x18x128xbf16, #tpu.memory_space<vmem>>, vector<16x16x128xbf16>
    %c1_40 = arith.constant 1 : index
    %c1_41 = arith.constant 1 : index
    %c0_42 = arith.constant 0 : index
    %32 = vector.load %arg9[%c1_40, %c1_41, %c0_42] : memref<18x18x128xbf16, #tpu.memory_space<vmem>>, vector<16x16x128xbf16>
    %c1_43 = arith.constant 1 : index
    %c2_44 = arith.constant 2 : index
    %c0_45 = arith.constant 0 : index
    %33 = vector.load %arg9[%c1_43, %c2_44, %c0_45] : memref<18x18x128xbf16, #tpu.memory_space<vmem>>, vector<16x16x128xbf16>
    %34 = tpu.concatenate %31, %32, %33 in 2 : vector<16x16x128xbf16>, vector<16x16x128xbf16>, vector<16x16x128xbf16> -> vector<16x16x384xbf16>
    %35 = vector.shape_cast %34 : vector<16x16x384xbf16> to vector<256x384xbf16>
    %c1_46 = arith.constant 1 : index
    %c0_47 = arith.constant 0 : index
    %c0_48 = arith.constant 0 : index
    %36 = vector.load %arg4[%c1_46, %c0_47, %c0_48] : memref<3x384x128xbf16, #tpu.memory_space<vmem>>, vector<1x384x128xbf16>
    %37 = vector.shape_cast %36 : vector<1x384x128xbf16> to vector<384x128xbf16>
    %cst_49 = arith.constant dense<0.000000e+00> : vector<256x128xf32>
    %38 = tpu.matmul %35, %37, %cst_49 {dimension_numbers = #tpu.dot_dimension_numbers<[1], [0], [0], [1], [0, 0, 1, 1], [], []>} : vector<256x384xbf16>, vector<384x128xbf16>, vector<256x128xf32> -> vector<256x128xf32>
    %39 = arith.addf %30, %38 : vector<256x128xf32>
    %c2_50 = arith.constant 2 : index
    %c0_51 = arith.constant 0 : index
    %c0_52 = arith.constant 0 : index
    %40 = vector.load %arg9[%c2_50, %c0_51, %c0_52] : memref<18x18x128xbf16, #tpu.memory_space<vmem>>, vector<16x16x128xbf16>
    %c2_53 = arith.constant 2 : index
    %c1_54 = arith.constant 1 : index
    %c0_55 = arith.constant 0 : index
    %41 = vector.load %arg9[%c2_53, %c1_54, %c0_55] : memref<18x18x128xbf16, #tpu.memory_space<vmem>>, vector<16x16x128xbf16>
    %c2_56 = arith.constant 2 : index
    %c2_57 = arith.constant 2 : index
    %c0_58 = arith.constant 0 : index
    %42 = vector.load %arg9[%c2_56, %c2_57, %c0_58] : memref<18x18x128xbf16, #tpu.memory_space<vmem>>, vector<16x16x128xbf16>
    %43 = tpu.concatenate %40, %41, %42 in 2 : vector<16x16x128xbf16>, vector<16x16x128xbf16>, vector<16x16x128xbf16> -> vector<16x16x384xbf16>
    %44 = vector.shape_cast %43 : vector<16x16x384xbf16> to vector<256x384xbf16>
    %c2_59 = arith.constant 2 : index
    %c0_60 = arith.constant 0 : index
    %c0_61 = arith.constant 0 : index
    %45 = vector.load %arg4[%c2_59, %c0_60, %c0_61] : memref<3x384x128xbf16, #tpu.memory_space<vmem>>, vector<1x384x128xbf16>
    %46 = vector.shape_cast %45 : vector<1x384x128xbf16> to vector<384x128xbf16>
    %cst_62 = arith.constant dense<0.000000e+00> : vector<256x128xf32>
    %47 = tpu.matmul %44, %46, %cst_62 {dimension_numbers = #tpu.dot_dimension_numbers<[1], [0], [0], [1], [0, 0, 1, 1], [], []>} : vector<256x384xbf16>, vector<384x128xbf16>, vector<256x128xf32> -> vector<256x128xf32>
    %48 = arith.addf %39, %47 : vector<256x128xf32>
    %c0_63 = arith.constant 0 : index
    %c0_64 = arith.constant 0 : index
    %49 = vector.load %arg5[%c0_63, %c0_64] : memref<1x128xf32, #tpu.memory_space<vmem>>, vector<1x128xf32>
    %50 = vector.shape_cast %49 : vector<1x128xf32> to vector<128xf32>
    %51 = vector.shape_cast %50 : vector<128xf32> to vector<1x128xf32>
    %52 = vector.broadcast %51 : vector<1x128xf32> to vector<256x128xf32>
    %53 = arith.addf %48, %52 : vector<256x128xf32>
    %cst_65 = arith.constant 0.000000e+00 : f32
    %54 = vector.broadcast %cst_65 : f32 to vector<256x128xf32>
    %55 = arith.maximumf %53, %54 : vector<256x128xf32>
    %56 = arith.truncf %55 : vector<256x128xf32> to vector<256x128xbf16>
    %c0_66 = arith.constant 0 : index
    %c0_67 = arith.constant 0 : index
    %57 = vector.load %arg6[%c0_66, %c0_67] : memref<128x128xbf16, #tpu.memory_space<vmem>>, vector<128x128xbf16>
    %cst_68 = arith.constant dense<0.000000e+00> : vector<256x128xf32>
    %58 = tpu.matmul %56, %57, %cst_68 {dimension_numbers = #tpu.dot_dimension_numbers<[1], [0], [0], [1], [0, 0, 1, 1], [], []>} : vector<256x128xbf16>, vector<128x128xbf16>, vector<256x128xf32> -> vector<256x128xf32>
    %c0_69 = arith.constant 0 : index
    %c0_70 = arith.constant 0 : index
    %59 = vector.load %arg7[%c0_69, %c0_70] : memref<1x128xf32, #tpu.memory_space<vmem>>, vector<1x128xf32>
    %60 = vector.shape_cast %59 : vector<1x128xf32> to vector<128xf32>
    %61 = vector.shape_cast %60 : vector<128xf32> to vector<1x128xf32>
    %62 = vector.broadcast %61 : vector<1x128xf32> to vector<256x128xf32>
    %63 = arith.addf %58, %62 : vector<256x128xf32>
    %c0_71 = arith.constant 0 : index
    %c0_72 = arith.constant 0 : index
    %c0_73 = arith.constant 0 : index
    %c0_74 = arith.constant 0 : index
    %64 = vector.load %arg1[%c0_71, %c0_72, %c0_73, %c0_74] : memref<1x16x16x128xbf16, #tpu.memory_space<vmem>>, vector<1x16x16x128xbf16>
    %65 = vector.shape_cast %64 : vector<1x16x16x128xbf16> to vector<16x16x128xbf16>
    %66 = vector.shape_cast %65 : vector<16x16x128xbf16> to vector<256x128xbf16>
    %67 = arith.extf %66 : vector<256x128xbf16> to vector<256x128xf32>
    %68 = arith.addf %63, %67 : vector<256x128xf32>
    %cst_75 = arith.constant 0.000000e+00 : f32
    %69 = vector.broadcast %cst_75 : f32 to vector<256x128xf32>
    %70 = arith.maximumf %68, %69 : vector<256x128xf32>
    %71 = vector.shape_cast %70 : vector<256x128xf32> to vector<16x16x128xf32>
    %72 = arith.truncf %71 : vector<16x16x128xf32> to vector<16x16x128xbf16>
    %c0_76 = arith.constant 0 : index
    %c0_77 = arith.constant 0 : index
    %c0_78 = arith.constant 0 : index
    %c0_79 = arith.constant 0 : index
    %73 = vector.load %arg8[%c0_76, %c0_77, %c0_78, %c0_79] : memref<1x16x16x128xbf16, #tpu.memory_space<vmem>>, vector<1x16x16x128xbf16>
    %74 = vector.shape_cast %73 : vector<1x16x16x128xbf16> to vector<16x16x128xbf16>
    %75 = vector.shape_cast %72 : vector<16x16x128xbf16> to vector<1x16x16x128xbf16>
    tpu.vector_store %arg8[%c0_76, %c0_77, %c0_78, %c0_79], %75 {strides = array<i32>} : memref<1x16x16x128xbf16, #tpu.memory_space<vmem>>, vector<1x16x16x128xbf16>,
    return
  }
  func.func @transform_0(%arg0: i32) -> (i32, i32, i32, i32) {
    %c0_i32 = arith.constant 0 : i32
    %c0_i32_0 = arith.constant 0 : i32
    %c0_i32_1 = arith.constant 0 : i32
    %c0_i32_2 = arith.constant 0 : i32
    return %arg0, %c0_i32, %c0_i32_0, %c0_i32_1 : i32, i32, i32, i32
  }
  func.func @transform_1(%arg0: i32) -> (i32, i32) {
    %c0_i32 = arith.constant 0 : i32
    %c0_i32_0 = arith.constant 0 : i32
    %c0_i32_1 = arith.constant 0 : i32
    return %c0_i32, %c0_i32_0 : i32, i32
  }
  func.func @transform_2(%arg0: i32) -> (i32, i32) {
    %c0_i32 = arith.constant 0 : i32
    %c0_i32_0 = arith.constant 0 : i32
    %c0_i32_1 = arith.constant 0 : i32
    return %c0_i32, %c0_i32_0 : i32, i32
  }
  func.func @transform_3(%arg0: i32) -> (i32, i32, i32) {
    %c0_i32 = arith.constant 0 : i32
    %c0_i32_0 = arith.constant 0 : i32
    %c0_i32_1 = arith.constant 0 : i32
    %c0_i32_2 = arith.constant 0 : i32
    return %c0_i32, %c0_i32_0, %c0_i32_1 : i32, i32, i32
  }
  func.func @transform_4(%arg0: i32) -> (i32, i32) {
    %c0_i32 = arith.constant 0 : i32
    %c0_i32_0 = arith.constant 0 : i32
    %c0_i32_1 = arith.constant 0 : i32
    return %c0_i32, %c0_i32_0 : i32, i32
  }
  func.func @transform_5(%arg0: i32) -> (i32, i32) {
    %c0_i32 = arith.constant 0 : i32
    %c0_i32_0 = arith.constant 0 : i32
    %c0_i32_1 = arith.constant 0 : i32
    return %c0_i32, %c0_i32_0 : i32, i32
  }
  func.func @transform_6(%arg0: i32) -> (i32, i32) {
    %c0_i32 = arith.constant 0 : i32
    %c0_i32_0 = arith.constant 0 : i32
    %c0_i32_1 = arith.constant 0 : i32
    return %c0_i32, %c0_i32_0 : i32, i32
  }
  func.func @transform_7(%arg0: i32) -> (i32, i32, i32, i32) {
    %c0_i32 = arith.constant 0 : i32
    %c0_i32_0 = arith.constant 0 : i32
    %c0_i32_1 = arith.constant 0 : i32
    %c0_i32_2 = arith.constant 0 : i32
    return %arg0, %c0_i32, %c0_i32_0, %c0_i32_1 : i32, i32, i32, i32
  }
}

</mosaic_0001>

<llo_original>
// kernel: tpu_custom_call.1
$region0: #{tpu_custom_call.1}
  #allocation0 [shape = 'u32[]', space=smem, size = 0x4, offset = 0x4, fixed_abs, tag = 'smem constant byte address 0x4 - core index']
  #allocation1 [shape = 'u32[72,128]{1,0:T(1,128)}', space=vmem, size = 0x9000, scoped, tag = 'internal scratch']
  #allocation2 [shape = 'bf16[18,18,128]{2,1,0:T(8,128)(2,1)}', space=vmem, size = 0x1b000, scoped, tag = 'scratch operand']
  %s0 = inlined_call_operand.hbm [shape: bf16[2,16,16,128], index: 0, kind: input, shape index: {}]
  %s1 = inlined_call_operand.hbm [shape: bf16[128,128], index: 1, kind: input, shape index: {}]
  %s2 = inlined_call_operand.vmem [shape: f32[1,128], index: 2, kind: input, shape index: {}]
  %s3 = inlined_call_operand.hbm [shape: bf16[3,384,128], index: 3, kind: input, shape index: {}]
  %s4 = inlined_call_operand.vmem [shape: f32[1,128], index: 4, kind: input, shape index: {}]
  %s5 = inlined_call_operand.hbm [shape: bf16[128,128], index: 5, kind: input, shape index: {}]
  %s6 = inlined_call_operand.vmem [shape: f32[1,128], index: 6, kind: input, shape index: {}]
  %s7 = inlined_call_operand.hbm [shape: bf16[2,16,16,128], index: 7, kind: output, shape index: {}]
  %s8 = sld [smem:[#allocation0]]
  $region77: #{tpu_custom_call.1} parent=0
    _
  %s10 = ssub.s32 1, %s8
  %s11 = scalar_select 0, %s10, %s8
  $region1: #{tpu_custom_call.1} parent=0
    #allocation3 [shape = 'u8[131072]{0}', space=vmem, size = 0x20000, scoped, tag = 'input window, operand 0']
    #allocation4 [shape = 's32[2]{0}', space=sflag, size = 0x8, scoped, tag = 'scoped memory for tpu_custom_call.1']
    #allocation5 [shape = 's32[2]{0}', space=sflag, size = 0x8, scoped, tag = 'scoped memory for tpu_custom_call.1']
    #allocation6 [shape = 'u8[32768]{0}', space=vmem, size = 0x8000, scoped, tag = 'input window, operand 1, single buffered']
    #allocation7 [shape = 's32[1]{0}', space=sflag, size = 0x4, scoped, tag = 'scoped memory for tpu_custom_call.1']
    #allocation8 [shape = 'u8[294912]{0}', space=vmem, size = 0x48000, scoped, tag = 'input window, operand 3, single buffered']
    #allocation9 [shape = 'u8[32768]{0}', space=vmem, size = 0x8000, scoped, tag = 'input window, operand 5, single buffered']
    #allocation10 [shape = 's32[1]{0}', space=sflag, size = 0x4, scoped, tag = 'scoped memory for tpu_custom_call.1']
    #allocation11 [shape = 'u8[131072]{0}', space=vmem, size = 0x20000, scoped, tag = 'output window, operand 0']
    %12 = vsyncpa [#allocation4], 0
    %s13 = scalar_lea.sflag [#allocation4], 1
    %14 = vsyncpa %s13, 0
    %15 = vsyncpa [#allocation7], 0
    %16 = vsyncpa [#allocation10], 0
    %17 = vsyncpa [#allocation5], 0
    %s18 = scalar_lea.sflag [#allocation5], 1
    %19 = vsyncpa %s18, 0
    loop: start=0, step=1, limit=4
    $region2: #{tpu_custom_call.1} parent=1 // loop_pre_header
      _
    $region3: #{tpu_custom_call.1} parent=1 // loop_header
      %s21 = sphi 0, %s25
      %p22 = scmp.ge.s32.totalorder %s21, 4
      %s31 = sphi 0, %s33
      %s34 = sphi 0, %s31
      %s35 = sphi 0, %s34
      %s51 = sphi 0, %s35
      %s55 = sphi 0, %s55
      %s57 = sphi 0, %s55
      %s58 = sphi 0, %s57
      %s72 = sphi 0, %s58
      %s76 = sphi 0, %s76
      %s78 = sphi 0, %s76
      %s79 = sphi 0, %s78
      %s93 = sphi 0, %s79
      %s97 = sphi 0, %s97
      %s99 = sphi 0, %s97
      %s100 = sphi 0, %s99
      %s114 = sphi 0, %s100
      %s118 = sphi 0, %s118
      %s120 = sphi 0, %s118
      %s121 = sphi 0, %s120
      %s135 = sphi 0, %s121
      %s139 = sphi 0, %s139
      %s141 = sphi 0, %s139
      %s142 = sphi 0, %s141
      %s156 = sphi 0, %s142
      %s160 = sphi 0, %s160
      %s162 = sphi 0, %s160
      %s163 = sphi 0, %s162
      %s177 = sphi 0, %s163
      %s183 = sphi 0, %s185
      %s186 = sphi 0, %s183
      %s187 = sphi 0, %s186
      %s203 = sphi 0, %s187
    $region4: #{tpu_custom_call.1} parent=1 // loop_header_branch
      %24 = sbr.rel (%p22) target = $region8
    $region5: #{tpu_custom_call.1} parent=1 // loop_body
      %s26 = ssub.s32 %s21, 1
      %s27 = ssub.s32 %s21, 2
      %s28 = sadd.s32 %s21, 1
      %s29 = ssub.s32 %s21, %s28
      %p30 = scmp.eq.s32.totalorder %s29, 0
      %s32 = sadd.s32 %s31, 1
      %s33 = scalar_select %p30, %s31, %s32
      %p36 = pneg %p30
      %p37 = scmp.eq.s32.totalorder %s21, 1
      %p38 = por %p36, %p37
      %p39 = scmp.ne.s32.totalorder %s31, %s34
      %p40 = scmp.eq.s32.totalorder %s21, 0
      %p41 = por %p39, %p40
      %p42 = scmp.ne.s32.totalorder %s31, %s34
      %p43 = scmp.eq.s32.totalorder %s26, 1
      %p44 = por %p42, %p43
      %p45 = scmp.ne.s32.totalorder %s34, %s35
      %p46 = scmp.eq.s32.totalorder %s26, 0
      %p47 = por %p45, %p46
      %p48 = scmp.ne.s32.totalorder %s34, %s35
      %p49 = scmp.eq.s32.totalorder %s27, 1
      %p50 = por %p48, %p49
      %p52 = scmp.ne.s32.totalorder %s35, %s51
      %p53 = scmp.eq.s32.totalorder %s27, 0
      %p54 = por %p52, %p53
      %s56 = sadd.s32 %s55, 1
      %p59 = scmp.eq.s32.totalorder %s21, 1
      %p60 = scmp.ne.s32.totalorder %s55, %s57
      %p61 = scmp.eq.s32.totalorder %s21, 0
      %p62 = por %p60, %p61
      %p63 = scmp.ne.s32.totalorder %s55, %s57
      %p64 = scmp.eq.s32.totalorder %s26, 1
      %p65 = por %p63, %p64
      %p66 = scmp.ne.s32.totalorder %s57, %s58
      %p67 = scmp.eq.s32.totalorder %s26, 0
      %p68 = por %p66, %p67
      %p69 = scmp.ne.s32.totalorder %s57, %s58
      %p70 = scmp.eq.s32.totalorder %s27, 1
      %p71 = por %p69, %p70
      %p73 = scmp.ne.s32.totalorder %s58, %s72
      %p74 = scmp.eq.s32.totalorder %s27, 0
      %p75 = por %p73, %p74
      %s77 = sadd.s32 %s76, 1
      %p80 = scmp.eq.s32.totalorder %s21, 1
      %p81 = scmp.ne.s32.totalorder %s76, %s78
      %p82 = scmp.eq.s32.totalorder %s21, 0
      %p83 = por %p81, %p82
      %p84 = scmp.ne.s32.totalorder %s76, %s78
      %p85 = scmp.eq.s32.totalorder %s26, 1
      %p86 = por %p84, %p85
      %p87 = scmp.ne.s32.totalorder %s78, %s79
      %p88 = scmp.eq.s32.totalorder %s26, 0
      %p89 = por %p87, %p88
      %p90 = scmp.ne.s32.totalorder %s78, %s79
      %p91 = scmp.eq.s32.totalorder %s27, 1
      %p92 = por %p90, %p91
      %p94 = scmp.ne.s32.totalorder %s79, %s93
      %p95 = scmp.eq.s32.totalorder %s27, 0
      %p96 = por %p94, %p95
      %s98 = sadd.s32 %s97, 1
      %p101 = scmp.eq.s32.totalorder %s21, 1
      %p102 = scmp.ne.s32.totalorder %s97, %s99
      %p103 = scmp.eq.s32.totalorder %s21, 0
      %p104 = por %p102, %p103
      %p105 = scmp.ne.s32.totalorder %s97, %s99
      %p106 = scmp.eq.s32.totalorder %s26, 1
      %p107 = por %p105, %p106
      %p108 = scmp.ne.s32.totalorder %s99, %s100
      %p109 = scmp.eq.s32.totalorder %s26, 0
      %p110 = por %p108, %p109
      %p111 = scmp.ne.s32.totalorder %s99, %s100
      %p112 = scmp.eq.s32.totalorder %s27, 1
      %p113 = por %p111, %p112
      %p115 = scmp.ne.s32.totalorder %s100, %s114
      %p116 = scmp.eq.s32.totalorder %s27, 0
      %p117 = por %p115, %p116
      %s119 = sadd.s32 %s118, 1
      %p122 = scmp.eq.s32.totalorder %s21, 1
      %p123 = scmp.ne.s32.totalorder %s118, %s120
      %p124 = scmp.eq.s32.totalorder %s21, 0
      %p125 = por %p123, %p124
      %p126 = scmp.ne.s32.totalorder %s118, %s120
      %p127 = scmp.eq.s32.totalorder %s26, 1
      %p128 = por %p126, %p127
      %p129 = scmp.ne.s32.totalorder %s120, %s121
      %p130 = scmp.eq.s32.totalorder %s26, 0
      %p131 = por %p129, %p130
      %p132 = scmp.ne.s32.totalorder %s120, %s121
      %p133 = scmp.eq.s32.totalorder %s27, 1
      %p134 = por %p132, %p133
      %p136 = scmp.ne.s32.totalorder %s121, %s135
      %p137 = scmp.eq.s32.totalorder %s27, 0
      %p138 = por %p136, %p137
      %s140 = sadd.s32 %s139, 1
      %p143 = scmp.eq.s32.totalorder %s21, 1
      %p144 = scmp.ne.s32.totalorder %s139, %s141
      %p145 = scmp.eq.s32.totalorder %s21, 0
      %p146 = por %p144, %p145
      %p147 = scmp.ne.s32.totalorder %s139, %s141
      %p148 = scmp.eq.s32.totalorder %s26, 1
      %p149 = por %p147, %p148
      %p150 = scmp.ne.s32.totalorder %s141, %s142
      %p151 = scmp.eq.s32.totalorder %s26, 0
      %p152 = por %p150, %p151
      %p153 = scmp.ne.s32.totalorder %s141, %s142
      %p154 = scmp.eq.s32.totalorder %s27, 1
      %p155 = por %p153, %p154
      %p157 = scmp.ne.s32.totalorder %s142, %s156
      %p158 = scmp.eq.s32.totalorder %s27, 0
      %p159 = por %p157, %p158
      %s161 = sadd.s32 %s160, 1
      %p164 = scmp.eq.s32.totalorder %s21, 1
      %p165 = scmp.ne.s32.totalorder %s160, %s162
      %p166 = scmp.eq.s32.totalorder %s21, 0
      %p167 = por %p165, %p166
      %p168 = scmp.ne.s32.totalorder %s160, %s162
      %p169 = scmp.eq.s32.totalorder %s26, 1
      %p170 = por %p168, %p169
      %p171 = scmp.ne.s32.totalorder %s162, %s163
      %p172 = scmp.eq.s32.totalorder %s26, 0
      %p173 = por %p171, %p172
      %p174 = scmp.ne.s32.totalorder %s162, %s163
      %p175 = scmp.eq.s32.totalorder %s27, 1
      %p176 = por %p174, %p175
      %p178 = scmp.ne.s32.totalorder %s163, %s177
      %p179 = scmp.eq.s32.totalorder %s27, 0
      %p180 = por %p178, %p179
      %s181 = ssub.s32 %s21, %s28
      %p182 = scmp.eq.s32.totalorder %s181, 0
      %s184 = sadd.s32 %s183, 1
      %s185 = scalar_select %p182, %s183, %s184
      %p188 = pneg %p182
      %p189 = scmp.eq.s32.totalorder %s21, 1
      %p190 = por %p188, %p189
      %p191 = scmp.ne.s32.totalorder %s183, %s186
      %p192 = scmp.eq.s32.totalorder %s21, 0
      %p193 = por %p191, %p192
      %p194 = scmp.ne.s32.totalorder %s183, %s186
      %p195 = scmp.eq.s32.totalorder %s26, 1
      %p196 = por %p194, %p195
      %p197 = scmp.ne.s32.totalorder %s186, %s187
      %p198 = scmp.eq.s32.totalorder %s26, 0
      %p199 = por %p197, %p198
      %p200 = scmp.ne.s32.totalorder %s186, %s187
      %p201 = scmp.eq.s32.totalorder %s27, 1
      %p202 = por %p200, %p201
      %p204 = scmp.ne.s32.totalorder %s187, %s203
      %p205 = scmp.eq.s32.totalorder %s27, 0
      %p206 = por %p204, %p205
      %p207 = scmp.le.s32.totalorder 1, %s21
      %p208 = scmp.lt.s32.totalorder %s21, 3
      %p209 = pnand %p207, %p208
      %p210 = pneg %p209
      // Predicated region
      $region9: #{tpu_custom_call.1} parent=5 // pred_check
        _
      $region10: #{tpu_custom_call.1} parent=5 // pred_check_branch
        %212 = sbr.rel (%p209) target = $region12
      $region11: #{tpu_custom_call.1} parent=5 // pred_region
        %s213 = ssub.s32 %s21, 1
        // Predicated region
        $region13: #{tpu_custom_call.1} parent=11 // pred_check
          %p214 = pneg %p68
        $region14: #{tpu_custom_call.1} parent=11 // pred_check_branch
          %216 = sbr.rel (%p214) target = $region16
        $region15: #{tpu_custom_call.1} parent=11 // pred_region
          %218 = vsyncadd [#allocation7], 0
          %s219 = sshll.u32 %s1, 4
          %s220 = int_to_ptr.hbm [resolvable:$true] %s219
          %s221 = sshll.u32 [#allocation6], 4
          %s222 = int_to_ptr.vmem [resolvable:$true] %s221
          %227 = dma.hbm_to_vmem [thread:$0]  %s220, 1024, %s222, [#allocation7], 64, 64, 4
        $region16: #{tpu_custom_call.1} parent=11 // pred_fallthru
          _
        // Predicated region
        $region17: #{tpu_custom_call.1} parent=11 // pred_check
          %p228 = pneg %p89
        $region18: #{tpu_custom_call.1} parent=11 // pred_check_branch
          %230 = sbr.rel (%p228) target = $region20
        $region19: #{tpu_custom_call.1} parent=11 // pred_region
          _
        $region20: #{tpu_custom_call.1} parent=11 // pred_fallthru
          _
        // Predicated region
        $region21: #{tpu_custom_call.1} parent=11 // pred_check
          %p231 = pneg %p110
        $region22: #{tpu_custom_call.1} parent=11 // pred_check_branch
          %233 = sbr.rel (%p231) target = $region24
        $region23: #{tpu_custom_call.1} parent=11 // pred_region
          %235 = vsyncadd [#allocation7], 0
          %s236 = sshll.u32 %s3, 4
          %s237 = int_to_ptr.hbm [resolvable:$true] %s236
          %s238 = sshll.u32 [#allocation8], 4
          %s239 = int_to_ptr.vmem [resolvable:$true] %s238
          %244 = dma.hbm_to_vmem [thread:$0]  %s237, 9216, %s239, [#allocation7], 64, 64, 4
        $region24: #{tpu_custom_call.1} parent=11 // pred_fallthru
          _
        // Predicated region
        $region25: #{tpu_custom_call.1} parent=11 // pred_check
          %p245 = pneg %p131
        $region26: #{tpu_custom_call.1} parent=11 // pred_check_branch
          %247 = sbr.rel (%p245) target = $region28
        $region27: #{tpu_custom_call.1} parent=11 // pred_region
          _
        $region28: #{tpu_custom_call.1} parent=11 // pred_fallthru
          _
        // Predicated region
        $region29: #{tpu_custom_call.1} parent=11 // pred_check
          %p248 = pneg %p152
        $region30: #{tpu_custom_call.1} parent=11 // pred_check_branch
          %250 = sbr.rel (%p248) target = $region32
        $region31: #{tpu_custom_call.1} parent=11 // pred_region
          %252 = vsyncadd [#allocation10], 0
          %s253 = sshll.u32 %s5, 4
          %s254 = int_to_ptr.hbm [resolvable:$true] %s253
          %s255 = sshll.u32 [#allocation9], 4
          %s256 = int_to_ptr.vmem [resolvable:$true] %s255
          %261 = dma.hbm_to_vmem [thread:$0]  %s254, 1024, %s256, [#allocation10], 64, 64, 4
        $region32: #{tpu_custom_call.1} parent=11 // pred_fallthru
          _
        // Predicated region
        $region33: #{tpu_custom_call.1} parent=11 // pred_check
          %p262 = pneg %p173
        $region34: #{tpu_custom_call.1} parent=11 // pred_check_branch
          %264 = sbr.rel (%p262) target = $region36
        $region35: #{tpu_custom_call.1} parent=11 // pred_region
          _
        $region36: #{tpu_custom_call.1} parent=11 // pred_fallthru
          _
      $region12: #{tpu_custom_call.1} parent=5 // pred_fallthru
        _
      %p265 = scmp.lt.s32.totalorder %s21, 2
      // Predicated region
      $region37: #{tpu_custom_call.1} parent=5 // pred_check
        %p266 = pneg %p265
      $region38: #{tpu_custom_call.1} parent=5 // pred_check_branch
        %268 = sbr.rel (%p266) target = $region40
      $region39: #{tpu_custom_call.1} parent=5 // pred_region
        // Predicated region
        $region41: #{tpu_custom_call.1} parent=39 // pred_check
          %p269 = pneg %p41
        $region42: #{tpu_custom_call.1} parent=39 // pred_check_branch
          %271 = sbr.rel (%p269) target = $region44
        $region43: #{tpu_custom_call.1} parent=39 // pred_region
          %s272 = sand.u32 %s31, 1
          %s273 = scalar_lea.sflag [#allocation4], %s272
          %s274 = sand.u32 %s31, 1
          %s275 = smul.addr %s274, 128
          %s276 = scalar_lea.vmem [#allocation3], %s275
          %278 = vsyncadd %s273, 0
          %s279 = smul.addr %s21, 32
          %s280 = smul.addr %s279, 4
          %s281 = scalar_lea.hbm %s0, %s280
          %s282 = sshll.u32 %s281, 4
          %s283 = int_to_ptr.hbm [resolvable:$true] %s282
          %s284 = sshll.u32 %s276, 4
          %s285 = int_to_ptr.vmem [resolvable:$true] %s284
          %290 = dma.hbm_to_vmem [thread:$0]  %s283, 2048, %s285, %s273, 64, 64, 4
        $region44: #{tpu_custom_call.1} parent=39 // pred_fallthru
          _
      $region40: #{tpu_custom_call.1} parent=5 // pred_fallthru
        _
      %p291 = scmp.le.s32.totalorder 1, %s21
      %p292 = scmp.lt.s32.totalorder %s21, 3
      %p293 = pnand %p291, %p292
      %p294 = pneg %p293
      // Predicated region
      $region45: #{tpu_custom_call.1} parent=5 // pred_check
        _
      $region46: #{tpu_custom_call.1} parent=5 // pred_check_branch
        %296 = sbr.rel (%p293) target = $region48
      $region47: #{tpu_custom_call.1} parent=5 // pred_region
        %s297 = ssub.s32 %s21, 1
        %s298 = sand.u32 %s34, 1
        %s299 = scalar_lea.sflag [#allocation4], %s298
        %s300 = sand.u32 %s34, 1
        %s301 = smul.addr %s300, 128
        %s302 = scalar_lea.vmem [#allocation3], %s301
        // Predicated region
        $region49: #{tpu_custom_call.1} parent=47 // pred_check
          %p303 = pneg %p47
        $region50: #{tpu_custom_call.1} parent=47 // pred_check_branch
          %305 = sbr.rel (%p303) target = $region52
        $region51: #{tpu_custom_call.1} parent=47 // pred_region
          %307 = dma.done %s299, 2048
        $region52: #{tpu_custom_call.1} parent=47 // pred_fallthru
          _
        // Predicated region
        $region53: #{tpu_custom_call.1} parent=47 // pred_check
          %p308 = pneg %p68
        $region54: #{tpu_custom_call.1} parent=47 // pred_check_branch
          %310 = sbr.rel (%p308) target = $region56
        $region55: #{tpu_custom_call.1} parent=47 // pred_region
          %312 = dma.done [#allocation7], 1024
        $region56: #{tpu_custom_call.1} parent=47 // pred_fallthru
          _
        // Predicated region
        $region57: #{tpu_custom_call.1} parent=47 // pred_check
          %p313 = pneg %p110
        $region58: #{tpu_custom_call.1} parent=47 // pred_check_branch
          %315 = sbr.rel (%p313) target = $region60
        $region59: #{tpu_custom_call.1} parent=47 // pred_region
          %317 = dma.done [#allocation7], 9216
        $region60: #{tpu_custom_call.1} parent=47 // pred_fallthru
          _
        // Predicated region
        $region61: #{tpu_custom_call.1} parent=47 // pred_check
          %p318 = pneg %p152
        $region62: #{tpu_custom_call.1} parent=47 // pred_check_branch
          %320 = sbr.rel (%p318) target = $region64
        $region63: #{tpu_custom_call.1} parent=47 // pred_region
          %322 = dma.done [#allocation10], 1024
        $region64: #{tpu_custom_call.1} parent=47 // pred_fallthru
          _
        %s323 = sand.u32 %s34, 1
        %s324 = scalar_lea.sflag [#allocation4], %s323
        %s325 = sand.u32 %s34, 1
        %s326 = smul.addr %s325, 128
        %s327 = scalar_lea.vmem [#allocation3], %s326
        %p328 = pneg %p47
        %p329 = pneg %p44
        %p330 = pneg %p68
        %p331 = pneg %p65
        %p332 = pneg %p89
        %p333 = pneg %p86
        %p334 = pneg %p110
        %p335 = pneg %p107
        %p336 = pneg %p131
        %p337 = pneg %p128
        %p338 = pneg %p152
        %p339 = pneg %p149
        %p340 = pneg %p173
        %p341 = pneg %p170
        %p342 = pneg %p199
        %p343 = pneg %p196
        %s344 = sand.u32 %s186, 1
        %s345 = scalar_lea.sflag [#allocation5], %s344
        %s346 = sand.u32 %s186, 1
        %s347 = smul.addr %s346, 128
        %s348 = scalar_lea.vmem [#allocation11], %s347
        %v350 = vld [vmem:[%s302] sm:$0xf]
        %v351 = vld [vmem:[%s302 + $0x4] sm:$0xf]
        %v352 = vld [vmem:[%s302 + $0x8] sm:$0xf]
        %v353 = vld [vmem:[%s302 + $0xc] sm:$0xf]
        %v354 = vld [vmem:[%s302 + $0x10] sm:$0xf]
        %v355 = vld [vmem:[%s302 + $0x14] sm:$0xf]
        %v356 = vld [vmem:[%s302 + $0x18] sm:$0xf]
        %v357 = vld [vmem:[%s302 + $0x1c] sm:$0xf]
        %v358 = vld [vmem:[%s302 + $0x20] sm:$0xf]
        %v359 = vld [vmem:[%s302 + $0x24] sm:$0xf]
        %v360 = vld [vmem:[%s302 + $0x28] sm:$0xf]
        %v361 = vld [vmem:[%s302 + $0x2c] sm:$0xf]
        %v362 = vld [vmem:[%s302 + $0x30] sm:$0xf]
        %v363 = vld [vmem:[%s302 + $0x34] sm:$0xf]
        %v364 = vld [vmem:[%s302 + $0x38] sm:$0xf]
        %v365 = vld [vmem:[%s302 + $0x3c] sm:$0xf]
        %v366 = vld [vmem:[%s302 + $0x40] sm:$0xf]
        %v367 = vld [vmem:[%s302 + $0x44] sm:$0xf]
        %v368 = vld [vmem:[%s302 + $0x48] sm:$0xf]
        %v369 = vld [vmem:[%s302 + $0x4c] sm:$0xf]
        %v370 = vld [vmem:[%s302 + $0x50] sm:$0xf]
        %v371 = vld [vmem:[%s302 + $0x54] sm:$0xf]
        %v372 = vld [vmem:[%s302 + $0x58] sm:$0xf]
        %v373 = vld [vmem:[%s302 + $0x5c] sm:$0xf]
        %v374 = vld [vmem:[%s302 + $0x60] sm:$0xf]
        %v375 = vld [vmem:[%s302 + $0x64] sm:$0xf]
        %v376 = vld [vmem:[%s302 + $0x68] sm:$0xf]
        %v377 = vld [vmem:[%s302 + $0x6c] sm:$0xf]
        %v378 = vld [vmem:[%s302 + $0x70] sm:$0xf]
        %v379 = vld [vmem:[%s302 + $0x74] sm:$0xf]
        %v380 = vld [vmem:[%s302 + $0x78] sm:$0xf]
        %v381 = vld [vmem:[%s302 + $0x7c] sm:$0xf]
        %v382 = vld [vmem:[#allocation6] sm:$0xf]
        %v383 = vld [vmem:[#allocation6 + $0x4] sm:$0xf]
        %v384 = vld [vmem:[#allocation6 + $0x8] sm:$0xf]
        %v385 = vld [vmem:[#allocation6 + $0xc] sm:$0xf]
        %v386 = vld [vmem:[#allocation6 + $0x10] sm:$0xf]
        %v387 = vld [vmem:[#allocation6 + $0x14] sm:$0xf]
        %v388 = vld [vmem:[#allocation6 + $0x18] sm:$0xf]
        %v389 = vld [vmem:[#allocation6 + $0x1c] sm:$0xf]
        %v390 = vld [vmem:[#allocation6 + $0x20] sm:$0xf]
        %v391 = vld [vmem:[#allocation6 + $0x24] sm:$0xf]
        %v392 = vld [vmem:[#allocation6 + $0x28] sm:$0xf]
        %v393 = vld [vmem:[#allocation6 + $0x2c] sm:$0xf]
        %v394 = vld [vmem:[#allocation6 + $0x30] sm:$0xf]
        %v395 = vld [vmem:[#allocation6 + $0x34] sm:$0xf]
        %v396 = vld [vmem:[#allocation6 + $0x38] sm:$0xf]
        %v397 = vld [vmem:[#allocation6 + $0x3c] sm:$0xf]
        %v398 = vld [vmem:[%s2] sm:$0x1]
        %v400 = vperm.slane %v398, 0
        %v434 = vunpack.c.l.b16 %v350
        %v435 = vunpack.c.l.b16 %v351
        %v436 = vunpack.c.l.b16 %v352
        %v437 = vunpack.c.l.b16 %v353
        %v438 = vunpack.c.l.b16 %v354
        %v439 = vunpack.c.l.b16 %v355
        %v440 = vunpack.c.l.b16 %v356
        %v441 = vunpack.c.l.b16 %v357
        %v442 = vunpack.c.l.b16 %v358
        %v443 = vunpack.c.l.b16 %v359
        %v444 = vunpack.c.l.b16 %v360
        %v445 = vunpack.c.l.b16 %v361
        %v446 = vunpack.c.l.b16 %v362
        %v447 = vunpack.c.l.b16 %v363
        %v448 = vunpack.c.l.b16 %v364
        %v449 = vunpack.c.l.b16 %v365
        %v450 = vunpack.c.l.b16 %v366
        %v451 = vunpack.c.l.b16 %v367
        %v452 = vunpack.c.l.b16 %v368
        %v453 = vunpack.c.l.b16 %v369
        %v454 = vunpack.c.l.b16 %v370
        %v455 = vunpack.c.l.b16 %v371
        %v456 = vunpack.c.l.b16 %v372
        %v457 = vunpack.c.l.b16 %v373
        %v458 = vunpack.c.l.b16 %v374
        %v459 = vunpack.c.l.b16 %v375
        %v460 = vunpack.c.l.b16 %v376
        %v461 = vunpack.c.l.b16 %v377
        %v462 = vunpack.c.l.b16 %v378
        %v463 = vunpack.c.l.b16 %v379
        %v464 = vunpack.c.l.b16 %v380
        %v465 = vunpack.c.l.b16 %v381
        %v466 = vpack.c.b16 %v435, %v434
        %v467 = vpack.c.b16 %v437, %v436
        %v468 = vpack.c.b16 %v439, %v438
        %v469 = vpack.c.b16 %v441, %v440
        %v470 = vpack.c.b16 %v443, %v442
        %v471 = vpack.c.b16 %v445, %v444
        %v472 = vpack.c.b16 %v447, %v446
        %v473 = vpack.c.b16 %v449, %v448
        %v474 = vpack.c.b16 %v451, %v450
        %v475 = vpack.c.b16 %v453, %v452
        %v476 = vpack.c.b16 %v455, %v454
        %v477 = vpack.c.b16 %v457, %v456
        %v478 = vpack.c.b16 %v459, %v458
        %v479 = vpack.c.b16 %v461, %v460
        %v480 = vpack.c.b16 %v463, %v462
        %v481 = vpack.c.b16 %v465, %v464
        %v514 = vunpack.c.l.b16 %v382
        %v515 = vunpack.c.l.b16 %v383
        %v516 = vunpack.c.l.b16 %v384
        %v517 = vunpack.c.l.b16 %v385
        %v518 = vunpack.c.l.b16 %v386
        %v519 = vunpack.c.l.b16 %v387
        %v520 = vunpack.c.l.b16 %v388
        %v521 = vunpack.c.l.b16 %v389
        %v522 = vunpack.c.l.b16 %v390
        %v523 = vunpack.c.l.b16 %v391
        %v524 = vunpack.c.l.b16 %v392
        %v525 = vunpack.c.l.b16 %v393
        %v526 = vunpack.c.l.b16 %v394
        %v527 = vunpack.c.l.b16 %v395
        %v528 = vunpack.c.l.b16 %v396
        %v529 = vunpack.c.l.b16 %v397
        %v530 = vpack.c.b16 %v515, %v514
        %v531 = vpack.c.b16 %v517, %v516
        %v532 = vpack.c.b16 %v519, %v518
        %v533 = vpack.c.b16 %v521, %v520
        %v534 = vpack.c.b16 %v523, %v522
        %v535 = vpack.c.b16 %v525, %v524
        %v536 = vpack.c.b16 %v527, %v526
        %v537 = vpack.c.b16 %v529, %v528
        %546 = vmatpush.bf16.msra.mxu0 %v537
        %547 = vmatpush.bf16.msra.mxu0 %v536
        %548 = vmatpush.bf16.msra.mxu0 %v535
        %549 = vmatpush.bf16.msra.mxu0 %v534
        %550 = vmatpush.bf16.msra.mxu0 %v533
        %551 = vmatpush.bf16.msra.mxu0 %v532
        %552 = vmatpush.bf16.msra.mxu0 %v531
        %553 = vmatpush.bf16.msra.mxu0 %v530
        %554 = vmatmul.bf16.gmra.mxu0 %v466
        %v555 = vpop.f32.mrf.mxu0
        %v556 = vadd.f32 %v400, %v555
        %v557 = vpop.f32.mrf.mxu0
        %v558 = vadd.f32 %v400, %v557
        %559 = vmatmul.bf16.gmra.mxu0 %v467
        %v560 = vpop.f32.mrf.mxu0
        %v561 = vadd.f32 %v400, %v560
        %v562 = vpop.f32.mrf.mxu0
        %v563 = vadd.f32 %v400, %v562
        %564 = vmatmul.bf16.gmra.mxu0 %v468
        %v565 = vpop.f32.mrf.mxu0
        %v566 = vadd.f32 %v400, %v565
        %v567 = vpop.f32.mrf.mxu0
        %v568 = vadd.f32 %v400, %v567
        %569 = vmatmul.bf16.gmra.mxu0 %v469
        %v570 = vpop.f32.mrf.mxu0
        %v571 = vadd.f32 %v400, %v570
        %v572 = vpop.f32.mrf.mxu0
        %v573 = vadd.f32 %v400, %v572
        %574 = vmatmul.bf16.gmra.mxu0 %v470
        %v575 = vpop.f32.mrf.mxu0
        %v576 = vadd.f32 %v400, %v575
        %v577 = vpop.f32.mrf.mxu0
        %v578 = vadd.f32 %v400, %v577
        %579 = vmatmul.bf16.gmra.mxu0 %v471
        %v580 = vpop.f32.mrf.mxu0
        %v581 = vadd.f32 %v400, %v580
        %v582 = vpop.f32.mrf.mxu0
        %v583 = vadd.f32 %v400, %v582
        %584 = vmatmul.bf16.gmra.mxu0 %v472
        %v585 = vpop.f32.mrf.mxu0
        %v586 = vadd.f32 %v400, %v585
        %v587 = vpop.f32.mrf.mxu0
        %v588 = vadd.f32 %v400, %v587
        %589 = vmatmul.bf16.gmra.mxu0 %v473
        %v590 = vpop.f32.mrf.mxu0
        %v591 = vadd.f32 %v400, %v590
        %v592 = vpop.f32.mrf.mxu0
        %v593 = vadd.f32 %v400, %v592
        %594 = vmatmul.bf16.gmra.mxu0 %v474
        %v595 = vpop.f32.mrf.mxu0
        %v596 = vadd.f32 %v400, %v595
        %v597 = vpop.f32.mrf.mxu0
        %v598 = vadd.f32 %v400, %v597
        %599 = vmatmul.bf16.gmra.mxu0 %v475
        %v600 = vpop.f32.mrf.mxu0
        %v601 = vadd.f32 %v400, %v600
        %v602 = vpop.f32.mrf.mxu0
        %v603 = vadd.f32 %v400, %v602
        %604 = vmatmul.bf16.gmra.mxu0 %v476
        %v605 = vpop.f32.mrf.mxu0
        %v606 = vadd.f32 %v400, %v605
        %v607 = vpop.f32.mrf.mxu0
        %v608 = vadd.f32 %v400, %v607
        %609 = vmatmul.bf16.gmra.mxu0 %v477
        %v610 = vpop.f32.mrf.mxu0
        %v611 = vadd.f32 %v400, %v610
        %v612 = vpop.f32.mrf.mxu0
        %v613 = vadd.f32 %v400, %v612
        %614 = vmatmul.bf16.gmra.mxu0 %v478
        %v615 = vpop.f32.mrf.mxu0
        %v616 = vadd.f32 %v400, %v615
        %v617 = vpop.f32.mrf.mxu0
        %v618 = vadd.f32 %v400, %v617
        %619 = vmatmul.bf16.gmra.mxu0 %v479
        %v620 = vpop.f32.mrf.mxu0
        %v621 = vadd.f32 %v400, %v620
        %v622 = vpop.f32.mrf.mxu0
        %v623 = vadd.f32 %v400, %v622
        %624 = vmatmul.bf16.gmra.mxu0 %v480
        %v625 = vpop.f32.mrf.mxu0
        %v626 = vadd.f32 %v400, %v625
        %v627 = vpop.f32.mrf.mxu0
        %v628 = vadd.f32 %v400, %v627
        %629 = vmatmul.bf16.gmra.mxu0 %v481
        %v630 = vpop.f32.mrf.mxu0
        %v631 = vadd.f32 %v400, %v630
        %v632 = vpop.f32.mrf.mxu0
        %v633 = vadd.f32 %v400, %v632
        %634 = vdwg.mxu0
        %v635 = vmax.f32 %v556, 0.0
        %v636 = vmax.f32 %v558, 0.0
        %v637 = vmax.f32 %v561, 0.0
        %v638 = vmax.f32 %v563, 0.0
        %v639 = vmax.f32 %v566, 0.0
        %v640 = vmax.f32 %v568, 0.0
        %v641 = vmax.f32 %v571, 0.0
        %v642 = vmax.f32 %v573, 0.0
        %v643 = vmax.f32 %v576, 0.0
        %v644 = vmax.f32 %v578, 0.0
        %v645 = vmax.f32 %v581, 0.0
        %v646 = vmax.f32 %v583, 0.0
        %v647 = vmax.f32 %v586, 0.0
        %v648 = vmax.f32 %v588, 0.0
        %v649 = vmax.f32 %v591, 0.0
        %v650 = vmax.f32 %v593, 0.0
        %v651 = vmax.f32 %v596, 0.0
        %v652 = vmax.f32 %v598, 0.0
        %v653 = vmax.f32 %v601, 0.0
        %v654 = vmax.f32 %v603, 0.0
        %v655 = vmax.f32 %v606, 0.0
        %v656 = vmax.f32 %v608, 0.0
        %v657 = vmax.f32 %v611, 0.0
        %v658 = vmax.f32 %v613, 0.0
        %v659 = vmax.f32 %v616, 0.0
        %v660 = vmax.f32 %v618, 0.0
        %v661 = vmax.f32 %v621, 0.0
        %v662 = vmax.f32 %v623, 0.0
        %v663 = vmax.f32 %v626, 0.0
        %v664 = vmax.f32 %v628, 0.0
        %v665 = vmax.f32 %v631, 0.0
        %v666 = vmax.f32 %v633, 0.0
        %667 = vst [vmem:[#allocation2] sm:$0xf] 0
        %668 = vst [vmem:[#allocation2 + $0x4] sm:$0xf] 0
        %669 = vst [vmem:[#allocation2 + $0x8] sm:$0x1] 0
        %s670 = scalar_lea.vmem [#allocation2], 204
        %671 = vst [vmem:[%s670] sm:$0xf] 0
        %672 = vst [vmem:[%s670 + $0x4] sm:$0xf] 0
        %673 = vst [vmem:[%s670 + $0x8] sm:$0x1] 0
        %vm674 = vcmask 1040384
        %vm675 = vsmask.f32 256
        %vm676 = vmand %vm674, %vm675
        %v677 = vld [vmem:[#allocation2] sm:$0x1]
        %v678 = vsel %vm676, 0, %v677
        %679 = vst [vmem:[#allocation2] sm:$0x1] %v678
        %v680 = vld [vmem:[#allocation2 + $0xc] sm:$0x1]
        %v681 = vsel %vm676, 0, %v680
        %682 = vst [vmem:[#allocation2 + $0xc] sm:$0x1] %v681
        %v683 = vld [vmem:[#allocation2 + $0x18] sm:$0x1]
        %v684 = vsel %vm676, 0, %v683
        %685 = vst [vmem:[#allocation2 + $0x18] sm:$0x1] %v684
        %v686 = vld [vmem:[#allocation2 + $0x24] sm:$0x1]
        %v687 = vsel %vm676, 0, %v686
        %688 = vst [vmem:[#allocation2 + $0x24] sm:$0x1] %v687
        %v689 = vld [vmem:[#allocation2 + $0x30] sm:$0x1]
        %v690 = vsel %vm676, 0, %v689
        %691 = vst [vmem:[#allocation2 + $0x30] sm:$0x1] %v690
        %v692 = vld [vmem:[#allocation2 + $0x3c] sm:$0x1]
        %v693 = vsel %vm676, 0, %v692
        %694 = vst [vmem:[#allocation2 + $0x3c] sm:$0x1] %v693
        %v695 = vld [vmem:[#allocation2 + $0x48] sm:$0x1]
        %v696 = vsel %vm676, 0, %v695
        %697 = vst [vmem:[#allocation2 + $0x48] sm:$0x1] %v696
        %v698 = vld [vmem:[#allocation2 + $0x54] sm:$0x1]
        %v699 = vsel %vm676, 0, %v698
        %700 = vst [vmem:[#allocation2 + $0x54] sm:$0x1] %v699
        %v701 = vld [vmem:[#allocation2 + $0x60] sm:$0x1]
        %v702 = vsel %vm676, 0, %v701
        %703 = vst [vmem:[#allocation2 + $0x60] sm:$0x1] %v702
        %v704 = vld [vmem:[#allocation2 + $0x6c] sm:$0x1]
        %v705 = vsel %vm676, 0, %v704
        %706 = vst [vmem:[#allocation2 + $0x6c] sm:$0x1] %v705
        %v707 = vld [vmem:[#allocation2 + $0x78] sm:$0x1]
        %v708 = vsel %vm676, 0, %v707
        %709 = vst [vmem:[#allocation2 + $0x78] sm:$0x1] %v708
        %v710 = vld [vmem:[#allocation2 + $0x84] sm:$0x1]
        %v711 = vsel %vm676, 0, %v710
        %712 = vst [vmem:[#allocation2 + $0x84] sm:$0x1] %v711
        %v713 = vld [vmem:[#allocation2 + $0x90] sm:$0x1]
        %v714 = vsel %vm676, 0, %v713
        %715 = vst [vmem:[#allocation2 + $0x90] sm:$0x1] %v714
        %v716 = vld [vmem:[#allocation2 + $0x9c] sm:$0x1]
        %v717 = vsel %vm676, 0, %v716
        %718 = vst [vmem:[#allocation2 + $0x9c] sm:$0x1] %v717
        %v719 = vld [vmem:[#allocation2 + $0xa8] sm:$0x1]
        %v720 = vsel %vm676, 0, %v719
        %721 = vst [vmem:[#allocation2 + $0xa8] sm:$0x1] %v720
        %v722 = vld [vmem:[#allocation2 + $0xb4] sm:$0x1]
        %v723 = vsel %vm676, 0, %v722
        %724 = vst [vmem:[#allocation2 + $0xb4] sm:$0x1] %v723
        %v725 = vld [vmem:[#allocation2 + $0xc0] sm:$0x1]
        %v726 = vsel %vm676, 0, %v725
        %727 = vst [vmem:[#allocation2 + $0xc0] sm:$0x1] %v726
        %v728 = vld [vmem:[#allocation2 + $0xcc] sm:$0x1]
        %v729 = vsel %vm676, 0, %v728
        %730 = vst [vmem:[#allocation2 + $0xcc] sm:$0x1] %v729
        %vm731 = vsmask.f32 7938
        %vm732 = vmand %vm674, %vm731
        %v733 = vld [vmem:[#allocation2 + $0x8] sm:$0x1]
        %v734 = vsel %vm732, 0, %v733
        %735 = vst [vmem:[#allocation2 + $0x8] sm:$0x1] %v734
        %v736 = vld [vmem:[#allocation2 + $0x14] sm:$0x1]
        %v737 = vsel %vm732, 0, %v736
        %738 = vst [vmem:[#allocation2 + $0x14] sm:$0x1] %v737
        %v739 = vld [vmem:[#allocation2 + $0x20] sm:$0x1]
        %v740 = vsel %vm732, 0, %v739
        %741 = vst [vmem:[#allocation2 + $0x20] sm:$0x1] %v740
        %v742 = vld [vmem:[#allocation2 + $0x2c] sm:$0x1]
        %v743 = vsel %vm732, 0, %v742
        %744 = vst [vmem:[#allocation2 + $0x2c] sm:$0x1] %v743
        %v745 = vld [vmem:[#allocation2 + $0x38] sm:$0x1]
        %v746 = vsel %vm732, 0, %v745
        %747 = vst [vmem:[#allocation2 + $0x38] sm:$0x1] %v746
        %v748 = vld [vmem:[#allocation2 + $0x44] sm:$0x1]
        %v749 = vsel %vm732, 0, %v748
        %750 = vst [vmem:[#allocation2 + $0x44] sm:$0x1] %v749
        %v751 = vld [vmem:[#allocation2 + $0x50] sm:$0x1]
        %v752 = vsel %vm732, 0, %v751
        %753 = vst [vmem:[#allocation2 + $0x50] sm:$0x1] %v752
        %v754 = vld [vmem:[#allocation2 + $0x5c] sm:$0x1]
        %v755 = vsel %vm732, 0, %v754
        %756 = vst [vmem:[#allocation2 + $0x5c] sm:$0x1] %v755
        %v757 = vld [vmem:[#allocation2 + $0x68] sm:$0x1]
        %v758 = vsel %vm732, 0, %v757
        %759 = vst [vmem:[#allocation2 + $0x68] sm:$0x1] %v758
        %v760 = vld [vmem:[#allocation2 + $0x74] sm:$0x1]
        %v761 = vsel %vm732, 0, %v760
        %762 = vst [vmem:[#allocation2 + $0x74] sm:$0x1] %v761
        %v763 = vld [vmem:[#allocation2 + $0x80] sm:$0x1]
        %v764 = vsel %vm732, 0, %v763
        %765 = vst [vmem:[#allocation2 + $0x80] sm:$0x1] %v764
        %v766 = vld [vmem:[#allocation2 + $0x8c] sm:$0x1]
        %v767 = vsel %vm732, 0, %v766
        %768 = vst [vmem:[#allocation2 + $0x8c] sm:$0x1] %v767
        %v769 = vld [vmem:[#allocation2 + $0x98] sm:$0x1]
        %v770 = vsel %vm732, 0, %v769
        %771 = vst [vmem:[#allocation2 + $0x98] sm:$0x1] %v770
        %v772 = vld [vmem:[#allocation2 + $0xa4] sm:$0x1]
        %v773 = vsel %vm732, 0, %v772
        %774 = vst [vmem:[#allocation2 + $0xa4] sm:$0x1] %v773
        %v775 = vld [vmem:[#allocation2 + $0xb0] sm:$0x1]
        %v776 = vsel %vm732, 0, %v775
        %777 = vst [vmem:[#allocation2 + $0xb0] sm:$0x1] %v776
        %v778 = vld [vmem:[#allocation2 + $0xbc] sm:$0x1]
        %v779 = vsel %vm732, 0, %v778
        %780 = vst [vmem:[#allocation2 + $0xbc] sm:$0x1] %v779
        %v781 = vld [vmem:[#allocation2 + $0xc8] sm:$0x1]
        %v782 = vsel %vm732, 0, %v781
        %783 = vst [vmem:[#allocation2 + $0xc8] sm:$0x1] %v782
        %v784 = vld [vmem:[#allocation2 + $0xd4] sm:$0x1]
        %v785 = vsel %vm732, 0, %v784
        %786 = vst [vmem:[#allocation2 + $0xd4] sm:$0x1] %v785
        %v787 = vpack.c.bf16 %v635, %v635
        %v788 = vpack.c.bf16 %v636, %v636
        %v789 = vpack.c.bf16 %v637, %v637
        %v790 = vpack.c.bf16 %v638, %v638
        %v791 = vpack.c.bf16 %v639, %v639
        %v792 = vpack.c.bf16 %v640, %v640
        %v793 = vpack.c.bf16 %v641, %v641
        %v794 = vpack.c.bf16 %v642, %v642
        %v795 = vpack.c.bf16 %v643, %v643
        %v796 = vpack.c.bf16 %v644, %v644
        %v797 = vpack.c.bf16 %v645, %v645
        %v798 = vpack.c.bf16 %v646, %v646
        %v799 = vpack.c.bf16 %v647, %v647
        %v800 = vpack.c.bf16 %v648, %v648
        %v801 = vpack.c.bf16 %v649, %v649
        %v802 = vpack.c.bf16 %v650, %v650
        %v803 = vpack.c.bf16 %v651, %v651
        %v804 = vpack.c.bf16 %v652, %v652
        %v805 = vpack.c.bf16 %v653, %v653
        %v806 = vpack.c.bf16 %v654, %v654
        %v807 = vpack.c.bf16 %v655, %v655
        %v808 = vpack.c.bf16 %v656, %v656
        %v809 = vpack.c.bf16 %v657, %v657
        %v810 = vpack.c.bf16 %v658, %v658
        %v811 = vpack.c.bf16 %v659, %v659
        %v812 = vpack.c.bf16 %v660, %v660
        %v813 = vpack.c.bf16 %v661, %v661
        %v814 = vpack.c.bf16 %v662, %v662
        %v815 = vpack.c.bf16 %v663, %v663
        %v816 = vpack.c.bf16 %v664, %v664
        %v817 = vpack.c.bf16 %v665, %v665
        %v818 = vpack.c.bf16 %v666, %v666
        %vm819 = vsmask.f32 4368
        %vm820 = vmor %vm675, %vm819
        %v822 = vshrl.u32 %v787, 16
        %v824 = vrot.slane %v822, 7
        %v825 = vshll.u32 %v787, 16
        %v827 = vor.u32 %v824, %v825
        %v828 = vrot.slane %v824, 4
        %v830 = vshrl.u32 %v788, 16
        %v832 = vrot.slane %v830, 7
        %v833 = vshll.u32 %v788, 16
        %v835 = vor.u32 %v832, %v833
        %v836 = vsel %vm820, %v828, %v835
        %v837 = vrot.slane %v832, 4
        %v839 = vshrl.u32 %v789, 16
        %v841 = vrot.slane %v839, 7
        %v842 = vshll.u32 %v789, 16
        %v844 = vor.u32 %v841, %v842
        %v845 = vrot.slane %v841, 4
        %v847 = vshrl.u32 %v790, 16
        %v849 = vrot.slane %v847, 7
        %v850 = vshll.u32 %v790, 16
        %v852 = vor.u32 %v849, %v850
        %v853 = vsel %vm820, %v845, %v852
        %v854 = vrot.slane %v849, 4
        %v856 = vshrl.u32 %v791, 16
        %v858 = vrot.slane %v856, 7
        %v859 = vshll.u32 %v791, 16
        %v861 = vor.u32 %v858, %v859
        %v862 = vrot.slane %v858, 4
        %v864 = vshrl.u32 %v792, 16
        %v866 = vrot.slane %v864, 7
        %v867 = vshll.u32 %v792, 16
        %v869 = vor.u32 %v866, %v867
        %v870 = vsel %vm820, %v862, %v869
        %v871 = vrot.slane %v866, 4
        %v873 = vshrl.u32 %v793, 16
        %v875 = vrot.slane %v873, 7
        %v876 = vshll.u32 %v793, 16
        %v878 = vor.u32 %v875, %v876
        %v879 = vrot.slane %v875, 4
        %v881 = vshrl.u32 %v794, 16
        %v883 = vrot.slane %v881, 7
        %v884 = vshll.u32 %v794, 16
        %v886 = vor.u32 %v883, %v884
        %v887 = vsel %vm820, %v879, %v886
        %v888 = vrot.slane %v883, 4
        %v890 = vshrl.u32 %v795, 16
        %v892 = vrot.slane %v890, 7
        %v893 = vshll.u32 %v795, 16
        %v895 = vor.u32 %v892, %v893
        %v896 = vrot.slane %v892, 4
        %v898 = vshrl.u32 %v796, 16
        %v900 = vrot.slane %v898, 7
        %v901 = vshll.u32 %v796, 16
        %v903 = vor.u32 %v900, %v901
        %v904 = vsel %vm820, %v896, %v903
        %v905 = vrot.slane %v900, 4
        %v907 = vshrl.u32 %v797, 16
        %v909 = vrot.slane %v907, 7
        %v910 = vshll.u32 %v797, 16
        %v912 = vor.u32 %v909, %v910
        %v913 = vrot.slane %v909, 4
        %v915 = vshrl.u32 %v798, 16
        %v917 = vrot.slane %v915, 7
        %v918 = vshll.u32 %v798, 16
        %v920 = vor.u32 %v917, %v918
        %v921 = vsel %vm820, %v913, %v920
        %v922 = vrot.slane %v917, 4
        %v924 = vshrl.u32 %v799, 16
        %v926 = vrot.slane %v924, 7
        %v927 = vshll.u32 %v799, 16
        %v929 = vor.u32 %v926, %v927
        %v930 = vrot.slane %v926, 4
        %v932 = vshrl.u32 %v800, 16
        %v934 = vrot.slane %v932, 7
        %v935 = vshll.u32 %v800, 16
        %v937 = vor.u32 %v934, %v935
        %v938 = vsel %vm820, %v930, %v937
        %v939 = vrot.slane %v934, 4
        %v941 = vshrl.u32 %v801, 16
        %v943 = vrot.slane %v941, 7
        %v944 = vshll.u32 %v801, 16
        %v946 = vor.u32 %v943, %v944
        %v947 = vrot.slane %v943, 4
        %v949 = vshrl.u32 %v802, 16
        %v951 = vrot.slane %v949, 7
        %v952 = vshll.u32 %v802, 16
        %v954 = vor.u32 %v951, %v952
        %v955 = vsel %vm820, %v947, %v954
        %v956 = vrot.slane %v951, 4
        %v958 = vshrl.u32 %v803, 16
        %v960 = vrot.slane %v958, 7
        %v961 = vshll.u32 %v803, 16
        %v963 = vor.u32 %v960, %v961
        %v964 = vrot.slane %v960, 4
        %v966 = vshrl.u32 %v804, 16
        %v968 = vrot.slane %v966, 7
        %v969 = vshll.u32 %v804, 16
        %v971 = vor.u32 %v968, %v969
        %v972 = vsel %vm820, %v964, %v971
        %v973 = vrot.slane %v968, 4
        %v975 = vshrl.u32 %v805, 16
        %v977 = vrot.slane %v975, 7
        %v978 = vshll.u32 %v805, 16
        %v980 = vor.u32 %v977, %v978
        %v981 = vrot.slane %v977, 4
        %v983 = vshrl.u32 %v806, 16
        %v985 = vrot.slane %v983, 7
        %v986 = vshll.u32 %v806, 16
        %v988 = vor.u32 %v985, %v986
        %v989 = vsel %vm820, %v981, %v988
        %v990 = vrot.slane %v985, 4
        %v992 = vshrl.u32 %v807, 16
        %v994 = vrot.slane %v992, 7
        %v995 = vshll.u32 %v807, 16
        %v997 = vor.u32 %v994, %v995
        %v998 = vrot.slane %v994, 4
        %v1000 = vshrl.u32 %v808, 16
        %v1002 = vrot.slane %v1000, 7
        %v1003 = vshll.u32 %v808, 16
        %v1005 = vor.u32 %v1002, %v1003
        %v1006 = vsel %vm820, %v998, %v1005
        %v1007 = vrot.slane %v1002, 4
        %v1009 = vshrl.u32 %v809, 16
        %v1011 = vrot.slane %v1009, 7
        %v1012 = vshll.u32 %v809, 16
        %v1014 = vor.u32 %v1011, %v1012
        %v1015 = vrot.slane %v1011, 4
        %v1017 = vshrl.u32 %v810, 16
        %v1019 = vrot.slane %v1017, 7
        %v1020 = vshll.u32 %v810, 16
        %v1022 = vor.u32 %v1019, %v1020
        %v1023 = vsel %vm820, %v1015, %v1022
        %v1024 = vrot.slane %v1019, 4
        %v1026 = vshrl.u32 %v811, 16
        %v1028 = vrot.slane %v1026, 7
        %v1029 = vshll.u32 %v811, 16
        %v1031 = vor.u32 %v1028, %v1029
        %v1032 = vrot.slane %v1028, 4
        %v1034 = vshrl.u32 %v812, 16
        %v1036 = vrot.slane %v1034, 7
        %v1037 = vshll.u32 %v812, 16
        %v1039 = vor.u32 %v1036, %v1037
        %v1040 = vsel %vm820, %v1032, %v1039
        %v1041 = vrot.slane %v1036, 4
        %v1043 = vshrl.u32 %v813, 16
        %v1045 = vrot.slane %v1043, 7
        %v1046 = vshll.u32 %v813, 16
        %v1048 = vor.u32 %v1045, %v1046
        %v1049 = vrot.slane %v1045, 4
        %v1051 = vshrl.u32 %v814, 16
        %v1053 = vrot.slane %v1051, 7
        %v1054 = vshll.u32 %v814, 16
        %v1056 = vor.u32 %v1053, %v1054
        %v1057 = vsel %vm820, %v1049, %v1056
        %v1058 = vrot.slane %v1053, 4
        %v1060 = vshrl.u32 %v815, 16
        %v1062 = vrot.slane %v1060, 7
        %v1063 = vshll.u32 %v815, 16
        %v1065 = vor.u32 %v1062, %v1063
        %v1066 = vrot.slane %v1062, 4
        %v1068 = vshrl.u32 %v816, 16
        %v1070 = vrot.slane %v1068, 7
        %v1071 = vshll.u32 %v816, 16
        %v1073 = vor.u32 %v1070, %v1071
        %v1074 = vsel %vm820, %v1066, %v1073
        %v1075 = vrot.slane %v1070, 4
        %v1077 = vshrl.u32 %v817, 16
        %v1079 = vrot.slane %v1077, 7
        %v1080 = vshll.u32 %v817, 16
        %v1082 = vor.u32 %v1079, %v1080
        %v1083 = vrot.slane %v1079, 4
        %v1085 = vshrl.u32 %v818, 16
        %v1087 = vrot.slane %v1085, 7
        %v1088 = vshll.u32 %v818, 16
        %v1090 = vor.u32 %v1087, %v1088
        %v1091 = vsel %vm820, %v1083, %v1090
        %v1092 = vrot.slane %v1087, 4
        %s1141 = scalar_lea.vmem [#allocation2], 12
        %vm1142 = vcmask 1043456
        %vm1143 = vmand %vm1142, %vm731
        %v1144 = vld [vmem:[%s1141] sm:$0xf]
        %v1145 = vsel %vm1143, %v827, %v1144
        %1146 = vst [vmem:[%s1141] sm:$0xf] %v1145
        %1147 = vst [vmem:[%s1141 + $0x4] sm:$0xf] %v836
        %v1148 = vld [vmem:[%s1141 + $0x8] sm:$0x1]
        %v1149 = vsel %vm676, %v837, %v1148
        %1150 = vst [vmem:[%s1141 + $0x8] sm:$0x1] %v1149
        %v1151 = vld [vmem:[%s1141 + $0xc] sm:$0xf]
        %v1152 = vsel %vm1143, %v844, %v1151
        %1153 = vst [vmem:[%s1141 + $0xc] sm:$0xf] %v1152
        %1154 = vst [vmem:[%s1141 + $0x10] sm:$0xf] %v853
        %v1155 = vld [vmem:[%s1141 + $0x14] sm:$0x1]
        %v1156 = vsel %vm676, %v854, %v1155
        %1157 = vst [vmem:[%s1141 + $0x14] sm:$0x1] %v1156
        %v1158 = vld [vmem:[%s1141 + $0x18] sm:$0xf]
        %v1159 = vsel %vm1143, %v861, %v1158
        %1160 = vst [vmem:[%s1141 + $0x18] sm:$0xf] %v1159
        %1161 = vst [vmem:[%s1141 + $0x1c] sm:$0xf] %v870
        %v1162 = vld [vmem:[%s1141 + $0x20] sm:$0x1]
        %v1163 = vsel %vm676, %v871, %v1162
        %1164 = vst [vmem:[%s1141 + $0x20] sm:$0x1] %v1163
        %v1165 = vld [vmem:[%s1141 + $0x24] sm:$0xf]
        %v1166 = vsel %vm1143, %v878, %v1165
        %1167 = vst [vmem:[%s1141 + $0x24] sm:$0xf] %v1166
        %1168 = vst [vmem:[%s1141 + $0x28] sm:$0xf] %v887
        %v1169 = vld [vmem:[%s1141 + $0x2c] sm:$0x1]
        %v1170 = vsel %vm676, %v888, %v1169
        %1171 = vst [vmem:[%s1141 + $0x2c] sm:$0x1] %v1170
        %v1172 = vld [vmem:[%s1141 + $0x30] sm:$0xf]
        %v1173 = vsel %vm1143, %v895, %v1172
        %1174 = vst [vmem:[%s1141 + $0x30] sm:$0xf] %v1173
        %1175 = vst [vmem:[%s1141 + $0x34] sm:$0xf] %v904
        %v1176 = vld [vmem:[%s1141 + $0x38] sm:$0x1]
        %v1177 = vsel %vm676, %v905, %v1176
        %1178 = vst [vmem:[%s1141 + $0x38] sm:$0x1] %v1177
        %v1179 = vld [vmem:[%s1141 + $0x3c] sm:$0xf]
        %v1180 = vsel %vm1143, %v912, %v1179
        %1181 = vst [vmem:[%s1141 + $0x3c] sm:$0xf] %v1180
        %1182 = vst [vmem:[%s1141 + $0x40] sm:$0xf] %v921
        %v1183 = vld [vmem:[%s1141 + $0x44] sm:$0x1]
        %v1184 = vsel %vm676, %v922, %v1183
        %1185 = vst [vmem:[%s1141 + $0x44] sm:$0x1] %v1184
        %v1186 = vld [vmem:[%s1141 + $0x48] sm:$0xf]
        %v1187 = vsel %vm1143, %v929, %v1186
        %1188 = vst [vmem:[%s1141 + $0x48] sm:$0xf] %v1187
        %1189 = vst [vmem:[%s1141 + $0x4c] sm:$0xf] %v938
        %v1190 = vld [vmem:[%s1141 + $0x50] sm:$0x1]
        %v1191 = vsel %vm676, %v939, %v1190
        %1192 = vst [vmem:[%s1141 + $0x50] sm:$0x1] %v1191
        %v1193 = vld [vmem:[%s1141 + $0x54] sm:$0xf]
        %v1194 = vsel %vm1143, %v946, %v1193
        %1195 = vst [vmem:[%s1141 + $0x54] sm:$0xf] %v1194
        %1196 = vst [vmem:[%s1141 + $0x58] sm:$0xf] %v955
        %v1197 = vld [vmem:[%s1141 + $0x5c] sm:$0x1]
        %v1198 = vsel %vm676, %v956, %v1197
        %1199 = vst [vmem:[%s1141 + $0x5c] sm:$0x1] %v1198
        %v1200 = vld [vmem:[%s1141 + $0x60] sm:$0xf]
        %v1201 = vsel %vm1143, %v963, %v1200
        %1202 = vst [vmem:[%s1141 + $0x60] sm:$0xf] %v1201
        %1203 = vst [vmem:[%s1141 + $0x64] sm:$0xf] %v972
        %v1204 = vld [vmem:[%s1141 + $0x68] sm:$0x1]
        %v1205 = vsel %vm676, %v973, %v1204
        %1206 = vst [vmem:[%s1141 + $0x68] sm:$0x1] %v1205
        %v1207 = vld [vmem:[%s1141 + $0x6c] sm:$0xf]
        %v1208 = vsel %vm1143, %v980, %v1207
        %1209 = vst [vmem:[%s1141 + $0x6c] sm:$0xf] %v1208
        %1210 = vst [vmem:[%s1141 + $0x70] sm:$0xf] %v989
        %v1211 = vld [vmem:[%s1141 + $0x74] sm:$0x1]
        %v1212 = vsel %vm676, %v990, %v1211
        %1213 = vst [vmem:[%s1141 + $0x74] sm:$0x1] %v1212
        %v1214 = vld [vmem:[%s1141 + $0x78] sm:$0xf]
        %v1215 = vsel %vm1143, %v997, %v1214
        %1216 = vst [vmem:[%s1141 + $0x78] sm:$0xf] %v1215
        %1217 = vst [vmem:[%s1141 + $0x7c] sm:$0xf] %v1006
        %v1218 = vld [vmem:[%s1141 + $0x80] sm:$0x1]
        %v1219 = vsel %vm676, %v1007, %v1218
        %1220 = vst [vmem:[%s1141 + $0x80] sm:$0x1] %v1219
        %v1221 = vld [vmem:[%s1141 + $0x84] sm:$0xf]
        %v1222 = vsel %vm1143, %v1014, %v1221
        %1223 = vst [vmem:[%s1141 + $0x84] sm:$0xf] %v1222
        %1224 = vst [vmem:[%s1141 + $0x88] sm:$0xf] %v1023
        %v1225 = vld [vmem:[%s1141 + $0x8c] sm:$0x1]
        %v1226 = vsel %vm676, %v1024, %v1225
        %1227 = vst [vmem:[%s1141 + $0x8c] sm:$0x1] %v1226
        %v1228 = vld [vmem:[%s1141 + $0x90] sm:$0xf]
        %v1229 = vsel %vm1143, %v1031, %v1228
        %1230 = vst [vmem:[%s1141 + $0x90] sm:$0xf] %v1229
        %1231 = vst [vmem:[%s1141 + $0x94] sm:$0xf] %v1040
        %v1232 = vld [vmem:[%s1141 + $0x98] sm:$0x1]
        %v1233 = vsel %vm676, %v1041, %v1232
        %1234 = vst [vmem:[%s1141 + $0x98] sm:$0x1] %v1233
        %v1235 = vld [vmem:[%s1141 + $0x9c] sm:$0xf]
        %v1236 = vsel %vm1143, %v1048, %v1235
        %1237 = vst [vmem:[%s1141 + $0x9c] sm:$0xf] %v1236
        %1238 = vst [vmem:[%s1141 + $0xa0] sm:$0xf] %v1057
        %v1239 = vld [vmem:[%s1141 + $0xa4] sm:$0x1]
        %v1240 = vsel %vm676, %v1058, %v1239
        %1241 = vst [vmem:[%s1141 + $0xa4] sm:$0x1] %v1240
        %v1242 = vld [vmem:[%s1141 + $0xa8] sm:$0xf]
        %v1243 = vsel %vm1143, %v1065, %v1242
        %1244 = vst [vmem:[%s1141 + $0xa8] sm:$0xf] %v1243
        %1245 = vst [vmem:[%s1141 + $0xac] sm:$0xf] %v1074
        %v1246 = vld [vmem:[%s1141 + $0xb0] sm:$0x1]
        %v1247 = vsel %vm676, %v1075, %v1246
        %1248 = vst [vmem:[%s1141 + $0xb0] sm:$0x1] %v1247
        %v1249 = vld [vmem:[%s1141 + $0xb4] sm:$0xf]
        %v1250 = vsel %vm1143, %v1082, %v1249
        %1251 = vst [vmem:[%s1141 + $0xb4] sm:$0xf] %v1250
        %1252 = vst [vmem:[%s1141 + $0xb8] sm:$0xf] %v1091
        %v1253 = vld [vmem:[%s1141 + $0xbc] sm:$0x1]
        %v1254 = vsel %vm676, %v1092, %v1253
        %1255 = vst [vmem:[%s1141 + $0xbc] sm:$0x1] %v1254
        %v1256 = vld [vmem:[#allocation2] sm:$0xf]
        %v1257 = vld [vmem:[#allocation2 + $0x4] sm:$0xf]
        %v1258 = vld [vmem:[#allocation2 + $0xc] sm:$0xf]
        %v1259 = vld [vmem:[#allocation2 + $0x10] sm:$0xf]
        %v1260 = vld [vmem:[#allocation2 + $0x18] sm:$0xf]
        %v1261 = vld [vmem:[#allocation2 + $0x1c] sm:$0xf]
        %v1262 = vld [vmem:[#allocation2 + $0x24] sm:$0xf]
        %v1263 = vld [vmem:[#allocation2 + $0x28] sm:$0xf]
        %v1264 = vld [vmem:[#allocation2 + $0x30] sm:$0xf]
        %v1265 = vld [vmem:[#allocation2 + $0x34] sm:$0xf]
        %v1266 = vld [vmem:[#allocation2 + $0x3c] sm:$0xf]
        %v1267 = vld [vmem:[#allocation2 + $0x40] sm:$0xf]
        %v1268 = vld [vmem:[#allocation2 + $0x48] sm:$0xf]
        %v1269 = vld [vmem:[#allocation2 + $0x4c] sm:$0xf]
        %v1270 = vld [vmem:[#allocation2 + $0x54] sm:$0xf]
        %v1271 = vld [vmem:[#allocation2 + $0x58] sm:$0xf]
        %v1272 = vld [vmem:[#allocation2 + $0x60] sm:$0xf]
        %v1273 = vld [vmem:[#allocation2 + $0x64] sm:$0xf]
        %v1274 = vld [vmem:[#allocation2 + $0x6c] sm:$0xf]
        %v1275 = vld [vmem:[#allocation2 + $0x70] sm:$0xf]
        %v1276 = vld [vmem:[#allocation2 + $0x78] sm:$0xf]
        %v1277 = vld [vmem:[#allocation2 + $0x7c] sm:$0xf]
        %v1278 = vld [vmem:[#allocation2 + $0x84] sm:$0xf]
        %v1279 = vld [vmem:[#allocation2 + $0x88] sm:$0xf]
        %v1280 = vld [vmem:[#allocation2 + $0x90] sm:$0xf]
        %v1281 = vld [vmem:[#allocation2 + $0x94] sm:$0xf]
        %v1282 = vld [vmem:[#allocation2 + $0x9c] sm:$0xf]
        %v1283 = vld [vmem:[#allocation2 + $0xa0] sm:$0xf]
        %v1284 = vld [vmem:[#allocation2 + $0xa8] sm:$0xf]
        %v1285 = vld [vmem:[#allocation2 + $0xac] sm:$0xf]
        %v1286 = vld [vmem:[#allocation2 + $0xb4] sm:$0xf]
        %v1287 = vld [vmem:[#allocation2 + $0xb8] sm:$0xf]
        %v1288 = vld [vmem:[#allocation2 + $0x8] sm:$0x1]
        %v1289 = vld [vmem:[#allocation2 + $0x14] sm:$0x1]
        %v1290 = vld [vmem:[#allocation2 + $0x20] sm:$0x1]
        %v1291 = vld [vmem:[#allocation2 + $0x2c] sm:$0x1]
        %v1292 = vld [vmem:[#allocation2 + $0x38] sm:$0x1]
        %v1293 = vld [vmem:[#allocation2 + $0x44] sm:$0x1]
        %v1294 = vld [vmem:[#allocation2 + $0x50] sm:$0x1]
        %v1295 = vld [vmem:[#allocation2 + $0x5c] sm:$0x1]
        %v1296 = vld [vmem:[#allocation2 + $0x68] sm:$0x1]
        %v1297 = vld [vmem:[#allocation2 + $0x74] sm:$0x1]
        %v1298 = vld [vmem:[#allocation2 + $0x80] sm:$0x1]
        %v1299 = vld [vmem:[#allocation2 + $0x8c] sm:$0x1]
        %v1300 = vld [vmem:[#allocation2 + $0x98] sm:$0x1]
        %v1301 = vld [vmem:[#allocation2 + $0xa4] sm:$0x1]
        %v1302 = vld [vmem:[#allocation2 + $0xb0] sm:$0x1]
        %v1303 = vld [vmem:[#allocation2 + $0xbc] sm:$0x1]
        %v1304 = vld [vmem:[#allocation2] sm:$0xe]
        %v1305 = vld [vmem:[#allocation2 + $0xc] sm:$0xe]
        %v1306 = vld [vmem:[#allocation2 + $0x18] sm:$0xe]
        %v1307 = vld [vmem:[#allocation2 + $0x24] sm:$0xe]
        %v1308 = vld [vmem:[#allocation2 + $0x30] sm:$0xe]
        %v1309 = vld [vmem:[#allocation2 + $0x3c] sm:$0xe]
        %v1310 = vld [vmem:[#allocation2 + $0x48] sm:$0xe]
        %v1311 = vld [vmem:[#allocation2 + $0x54] sm:$0xe]
        %v1312 = vld [vmem:[#allocation2 + $0x60] sm:$0xe]
        %v1313 = vld [vmem:[#allocation2 + $0x6c] sm:$0xe]
        %v1314 = vld [vmem:[#allocation2 + $0x78] sm:$0xe]
        %v1315 = vld [vmem:[#allocation2 + $0x84] sm:$0xe]
        %v1316 = vld [vmem:[#allocation2 + $0x90] sm:$0xe]
        %v1317 = vld [vmem:[#allocation2 + $0x9c] sm:$0xe]
        %v1318 = vld [vmem:[#allocation2 + $0xa8] sm:$0xe]
        %v1319 = vld [vmem:[#allocation2 + $0xb4] sm:$0xe]
        %v1352 = vunpack.c.l.b16 %v1256
        %v1353 = vunpack.c.l.b16 %v1257
        %v1354 = vunpack.c.l.b16 %v1258
        %v1355 = vunpack.c.l.b16 %v1259
        %v1356 = vunpack.c.l.b16 %v1260
        %v1357 = vunpack.c.l.b16 %v1261
        %v1358 = vunpack.c.l.b16 %v1262
        %v1359 = vunpack.c.l.b16 %v1263
        %v1360 = vunpack.c.l.b16 %v1264
        %v1361 = vunpack.c.l.b16 %v1265
        %v1362 = vunpack.c.l.b16 %v1266
        %v1363 = vunpack.c.l.b16 %v1267
        %v1364 = vunpack.c.l.b16 %v1268
        %v1365 = vunpack.c.l.b16 %v1269
        %v1366 = vunpack.c.l.b16 %v1270
        %v1367 = vunpack.c.l.b16 %v1271
        %v1368 = vunpack.c.l.b16 %v1272
        %v1369 = vunpack.c.l.b16 %v1273
        %v1370 = vunpack.c.l.b16 %v1274
        %v1371 = vunpack.c.l.b16 %v1275
        %v1372 = vunpack.c.l.b16 %v1276
        %v1373 = vunpack.c.l.b16 %v1277
        %v1374 = vunpack.c.l.b16 %v1278
        %v1375 = vunpack.c.l.b16 %v1279
        %v1376 = vunpack.c.l.b16 %v1280
        %v1377 = vunpack.c.l.b16 %v1281
        %v1378 = vunpack.c.l.b16 %v1282
        %v1379 = vunpack.c.l.b16 %v1283
        %v1380 = vunpack.c.l.b16 %v1284
        %v1381 = vunpack.c.l.b16 %v1285
        %v1382 = vunpack.c.l.b16 %v1286
        %v1383 = vunpack.c.l.b16 %v1287
        %v1384 = vpack.c.b16 %v1353, %v1352
        %v1385 = vpack.c.b16 %v1355, %v1354
        %v1386 = vpack.c.b16 %v1357, %v1356
        %v1387 = vpack.c.b16 %v1359, %v1358
        %v1388 = vpack.c.b16 %v1361, %v1360
        %v1389 = vpack.c.b16 %v1363, %v1362
        %v1390 = vpack.c.b16 %v1365, %v1364
        %v1391 = vpack.c.b16 %v1367, %v1366
        %v1392 = vpack.c.b16 %v1369, %v1368
        %v1393 = vpack.c.b16 %v1371, %v1370
        %v1394 = vpack.c.b16 %v1373, %v1372
        %v1395 = vpack.c.b16 %v1375, %v1374
        %v1396 = vpack.c.b16 %v1377, %v1376
        %v1397 = vpack.c.b16 %v1379, %v1378
        %v1398 = vpack.c.b16 %v1381, %v1380
        %v1399 = vpack.c.b16 %v1383, %v1382
        %v1432 = vunpack.c.l.b16 %v1288
        %v1433 = vunpack.c.l.b16 %v1289
        %v1434 = vunpack.c.l.b16 %v1290
        %v1435 = vunpack.c.l.b16 %v1291
        %v1436 = vunpack.c.l.b16 %v1292
        %v1437 = vunpack.c.l.b16 %v1293
        %v1438 = vunpack.c.l.b16 %v1294
        %v1439 = vunpack.c.l.b16 %v1295
        %v1440 = vunpack.c.l.b16 %v1296
        %v1441 = vunpack.c.l.b16 %v1297
        %v1442 = vunpack.c.l.b16 %v1298
        %v1443 = vunpack.c.l.b16 %v1299
        %v1444 = vunpack.c.l.b16 %v1300
        %v1445 = vunpack.c.l.b16 %v1301
        %v1446 = vunpack.c.l.b16 %v1302
        %v1447 = vunpack.c.l.b16 %v1303
        %v1448 = vpack.c.b16 %v1432, %v1432
        %v1449 = vpack.c.b16 %v1433, %v1433
        %v1450 = vpack.c.b16 %v1434, %v1434
        %v1451 = vpack.c.b16 %v1435, %v1435
        %v1452 = vpack.c.b16 %v1436, %v1436
        %v1453 = vpack.c.b16 %v1437, %v1437
        %v1454 = vpack.c.b16 %v1438, %v1438
        %v1455 = vpack.c.b16 %v1439, %v1439
        %v1456 = vpack.c.b16 %v1440, %v1440
        %v1457 = vpack.c.b16 %v1441, %v1441
        %v1458 = vpack.c.b16 %v1442, %v1442
        %v1459 = vpack.c.b16 %v1443, %v1443
        %v1460 = vpack.c.b16 %v1444, %v1444
        %v1461 = vpack.c.b16 %v1445, %v1445
        %v1462 = vpack.c.b16 %v1446, %v1446
        %v1463 = vpack.c.b16 %v1447, %v1447
        %vm1464 = vsmask.f32 7424
        %v1466 = vshrl.u32 %v1384, 16
        %v1468 = vshll.u32 %v1384, 16
        %v1470 = vrot.slane %v1468, 1
        %v1471 = vor.u32 %v1466, %v1470
        %v1473 = vshll.u32 %v1448, 16
        %v1475 = vrot.slane %v1473, 1
        %v1476 = vsel %vm1464, %v1471, %v1475
        %v1478 = vshrl.u32 %v1385, 16
        %v1480 = vshll.u32 %v1385, 16
        %v1482 = vrot.slane %v1480, 1
        %v1483 = vor.u32 %v1478, %v1482
        %v1485 = vshll.u32 %v1449, 16
        %v1487 = vrot.slane %v1485, 1
        %v1488 = vsel %vm1464, %v1483, %v1487
        %v1490 = vshrl.u32 %v1386, 16
        %v1492 = vshll.u32 %v1386, 16
        %v1494 = vrot.slane %v1492, 1
        %v1495 = vor.u32 %v1490, %v1494
        %v1497 = vshll.u32 %v1450, 16
        %v1499 = vrot.slane %v1497, 1
        %v1500 = vsel %vm1464, %v1495, %v1499
        %v1502 = vshrl.u32 %v1387, 16
        %v1504 = vshll.u32 %v1387, 16
        %v1506 = vrot.slane %v1504, 1
        %v1507 = vor.u32 %v1502, %v1506
        %v1509 = vshll.u32 %v1451, 16
        %v1511 = vrot.slane %v1509, 1
        %v1512 = vsel %vm1464, %v1507, %v1511
        %v1514 = vshrl.u32 %v1388, 16
        %v1516 = vshll.u32 %v1388, 16
        %v1518 = vrot.slane %v1516, 1
        %v1519 = vor.u32 %v1514, %v1518
        %v1521 = vshll.u32 %v1452, 16
        %v1523 = vrot.slane %v1521, 1
        %v1524 = vsel %vm1464, %v1519, %v1523
        %v1526 = vshrl.u32 %v1389, 16
        %v1528 = vshll.u32 %v1389, 16
        %v1530 = vrot.slane %v1528, 1
        %v1531 = vor.u32 %v1526, %v1530
        %v1533 = vshll.u32 %v1453, 16
        %v1535 = vrot.slane %v1533, 1
        %v1536 = vsel %vm1464, %v1531, %v1535
        %v1538 = vshrl.u32 %v1390, 16
        %v1540 = vshll.u32 %v1390, 16
        %v1542 = vrot.slane %v1540, 1
        %v1543 = vor.u32 %v1538, %v1542
        %v1545 = vshll.u32 %v1454, 16
        %v1547 = vrot.slane %v1545, 1
        %v1548 = vsel %vm1464, %v1543, %v1547
        %v1550 = vshrl.u32 %v1391, 16
        %v1552 = vshll.u32 %v1391, 16
        %v1554 = vrot.slane %v1552, 1
        %v1555 = vor.u32 %v1550, %v1554
        %v1557 = vshll.u32 %v1455, 16
        %v1559 = vrot.slane %v1557, 1
        %v1560 = vsel %vm1464, %v1555, %v1559
        %v1562 = vshrl.u32 %v1392, 16
        %v1564 = vshll.u32 %v1392, 16
        %v1566 = vrot.slane %v1564, 1
        %v1567 = vor.u32 %v1562, %v1566
        %v1569 = vshll.u32 %v1456, 16
        %v1571 = vrot.slane %v1569, 1
        %v1572 = vsel %vm1464, %v1567, %v1571
        %v1574 = vshrl.u32 %v1393, 16
        %v1576 = vshll.u32 %v1393, 16
        %v1578 = vrot.slane %v1576, 1
        %v1579 = vor.u32 %v1574, %v1578
        %v1581 = vshll.u32 %v1457, 16
        %v1583 = vrot.slane %v1581, 1
        %v1584 = vsel %vm1464, %v1579, %v1583
        %v1586 = vshrl.u32 %v1394, 16
        %v1588 = vshll.u32 %v1394, 16
        %v1590 = vrot.slane %v1588, 1
        %v1591 = vor.u32 %v1586, %v1590
        %v1593 = vshll.u32 %v1458, 16
        %v1595 = vrot.slane %v1593, 1
        %v1596 = vsel %vm1464, %v1591, %v1595
        %v1598 = vshrl.u32 %v1395, 16
        %v1600 = vshll.u32 %v1395, 16
        %v1602 = vrot.slane %v1600, 1
        %v1603 = vor.u32 %v1598, %v1602
        %v1605 = vshll.u32 %v1459, 16
        %v1607 = vrot.slane %v1605, 1
        %v1608 = vsel %vm1464, %v1603, %v1607
        %v1610 = vshrl.u32 %v1396, 16
        %v1612 = vshll.u32 %v1396, 16
        %v1614 = vrot.slane %v1612, 1
        %v1615 = vor.u32 %v1610, %v1614
        %v1617 = vshll.u32 %v1460, 16
        %v1619 = vrot.slane %v1617, 1
        %v1620 = vsel %vm1464, %v1615, %v1619
        %v1622 = vshrl.u32 %v1397, 16
        %v1624 = vshll.u32 %v1397, 16
        %v1626 = vrot.slane %v1624, 1
        %v1627 = vor.u32 %v1622, %v1626
        %v1629 = vshll.u32 %v1461, 16
        %v1631 = vrot.slane %v1629, 1
        %v1632 = vsel %vm1464, %v1627, %v1631
        %v1634 = vshrl.u32 %v1398, 16
        %v1636 = vshll.u32 %v1398, 16
        %v1638 = vrot.slane %v1636, 1
        %v1639 = vor.u32 %v1634, %v1638
        %v1641 = vshll.u32 %v1462, 16
        %v1643 = vrot.slane %v1641, 1
        %v1644 = vsel %vm1464, %v1639, %v1643
        %v1646 = vshrl.u32 %v1399, 16
        %v1648 = vshll.u32 %v1399, 16
        %v1650 = vrot.slane %v1648, 1
        %v1651 = vor.u32 %v1646, %v1650
        %v1653 = vshll.u32 %v1463, 16
        %v1655 = vrot.slane %v1653, 1
        %v1656 = vsel %vm1464, %v1651, %v1655
        %v1689 = vunpack.c.l.b16 %v1304
        %v1690 = vunpack.c.l.b16 %v1305
        %v1691 = vunpack.c.l.b16 %v1306
        %v1692 = vunpack.c.l.b16 %v1307
        %v1693 = vunpack.c.l.b16 %v1308
        %v1694 = vunpack.c.l.b16 %v1309
        %v1695 = vunpack.c.l.b16 %v1310
        %v1696 = vunpack.c.l.b16 %v1311
        %v1697 = vunpack.c.l.b16 %v1312
        %v1698 = vunpack.c.l.b16 %v1313
        %v1699 = vunpack.c.l.b16 %v1314
        %v1700 = vunpack.c.l.b16 %v1315
        %v1701 = vunpack.c.l.b16 %v1316
        %v1702 = vunpack.c.l.b16 %v1317
        %v1703 = vunpack.c.l.b16 %v1318
        %v1704 = vunpack.c.l.b16 %v1319
        %v1705 = vpack.c.b16 %v1353, %v1689
        %v1706 = vpack.c.b16 %v1355, %v1690
        %v1707 = vpack.c.b16 %v1357, %v1691
        %v1708 = vpack.c.b16 %v1359, %v1692
        %v1709 = vpack.c.b16 %v1361, %v1693
        %v1710 = vpack.c.b16 %v1363, %v1694
        %v1711 = vpack.c.b16 %v1365, %v1695
        %v1712 = vpack.c.b16 %v1367, %v1696
        %v1713 = vpack.c.b16 %v1369, %v1697
        %v1714 = vpack.c.b16 %v1371, %v1698
        %v1715 = vpack.c.b16 %v1373, %v1699
        %v1716 = vpack.c.b16 %v1375, %v1700
        %v1717 = vpack.c.b16 %v1377, %v1701
        %v1718 = vpack.c.b16 %v1379, %v1702
        %v1719 = vpack.c.b16 %v1381, %v1703
        %v1720 = vpack.c.b16 %v1383, %v1704
        %vm1721 = vcmask 1046528
        %v1722 = vrot.slane %v1705, 1
        %v1723 = vrot.slane %v1448, 1
        %v1724 = vsel %vm1721, %v1722, %v1723
        %v1725 = vrot.slane %v1706, 1
        %v1726 = vrot.slane %v1449, 1
        %v1727 = vsel %vm1721, %v1725, %v1726
        %v1728 = vrot.slane %v1707, 1
        %v1729 = vrot.slane %v1450, 1
        %v1730 = vsel %vm1721, %v1728, %v1729
        %v1731 = vrot.slane %v1708, 1
        %v1732 = vrot.slane %v1451, 1
        %v1733 = vsel %vm1721, %v1731, %v1732
        %v1734 = vrot.slane %v1709, 1
        %v1735 = vrot.slane %v1452, 1
        %v1736 = vsel %vm1721, %v1734, %v1735
        %v1737 = vrot.slane %v1710, 1
        %v1738 = vrot.slane %v1453, 1
        %v1739 = vsel %vm1721, %v1737, %v1738
        %v1740 = vrot.slane %v1711, 1
        %v1741 = vrot.slane %v1454, 1
        %v1742 = vsel %vm1721, %v1740, %v1741
        %v1743 = vrot.slane %v1712, 1
        %v1744 = vrot.slane %v1455, 1
        %v1745 = vsel %vm1721, %v1743, %v1744
        %v1746 = vrot.slane %v1713, 1
        %v1747 = vrot.slane %v1456, 1
        %v1748 = vsel %vm1721, %v1746, %v1747
        %v1749 = vrot.slane %v1714, 1
        %v1750 = vrot.slane %v1457, 1
        %v1751 = vsel %vm1721, %v1749, %v1750
        %v1752 = vrot.slane %v1715, 1
        %v1753 = vrot.slane %v1458, 1
        %v1754 = vsel %vm1721, %v1752, %v1753
        %v1755 = vrot.slane %v1716, 1
        %v1756 = vrot.slane %v1459, 1
        %v1757 = vsel %vm1721, %v1755, %v1756
        %v1758 = vrot.slane %v1717, 1
        %v1759 = vrot.slane %v1460, 1
        %v1760 = vsel %vm1721, %v1758, %v1759
        %v1761 = vrot.slane %v1718, 1
        %v1762 = vrot.slane %v1461, 1
        %v1763 = vsel %vm1721, %v1761, %v1762
        %v1764 = vrot.slane %v1719, 1
        %v1765 = vrot.slane %v1462, 1
        %v1766 = vsel %vm1721, %v1764, %v1765
        %v1767 = vrot.slane %v1720, 1
        %v1768 = vrot.slane %v1463, 1
        %v1769 = vsel %vm1721, %v1767, %v1768
        %v1786 = vld [vmem:[#allocation8] sm:$0xf]
        %v1787 = vld [vmem:[#allocation8 + $0x4] sm:$0xf]
        %v1788 = vld [vmem:[#allocation8 + $0x8] sm:$0xf]
        %v1789 = vld [vmem:[#allocation8 + $0xc] sm:$0xf]
        %v1790 = vld [vmem:[#allocation8 + $0x10] sm:$0xf]
        %v1791 = vld [vmem:[#allocation8 + $0x14] sm:$0xf]
        %v1792 = vld [vmem:[#allocation8 + $0x18] sm:$0xf]
        %v1793 = vld [vmem:[#allocation8 + $0x1c] sm:$0xf]
        %v1794 = vld [vmem:[#allocation8 + $0x20] sm:$0xf]
        %v1795 = vld [vmem:[#allocation8 + $0x24] sm:$0xf]
        %v1796 = vld [vmem:[#allocation8 + $0x28] sm:$0xf]
        %v1797 = vld [vmem:[#allocation8 + $0x2c] sm:$0xf]
        %v1798 = vld [vmem:[#allocation8 + $0x30] sm:$0xf]
        %v1799 = vld [vmem:[#allocation8 + $0x34] sm:$0xf]
        %v1800 = vld [vmem:[#allocation8 + $0x38] sm:$0xf]
        %v1801 = vld [vmem:[#allocation8 + $0x3c] sm:$0xf]
        %v1802 = vld [vmem:[#allocation8 + $0x40] sm:$0xf]
        %v1803 = vld [vmem:[#allocation8 + $0x44] sm:$0xf]
        %v1804 = vld [vmem:[#allocation8 + $0x48] sm:$0xf]
        %v1805 = vld [vmem:[#allocation8 + $0x4c] sm:$0xf]
        %v1806 = vld [vmem:[#allocation8 + $0x50] sm:$0xf]
        %v1807 = vld [vmem:[#allocation8 + $0x54] sm:$0xf]
        %v1808 = vld [vmem:[#allocation8 + $0x58] sm:$0xf]
        %v1809 = vld [vmem:[#allocation8 + $0x5c] sm:$0xf]
        %v1810 = vld [vmem:[#allocation8 + $0x60] sm:$0xf]
        %v1811 = vld [vmem:[#allocation8 + $0x64] sm:$0xf]
        %v1812 = vld [vmem:[#allocation8 + $0x68] sm:$0xf]
        %v1813 = vld [vmem:[#allocation8 + $0x6c] sm:$0xf]
        %v1814 = vld [vmem:[#allocation8 + $0x70] sm:$0xf]
        %v1815 = vld [vmem:[#allocation8 + $0x74] sm:$0xf]
        %v1816 = vld [vmem:[#allocation8 + $0x78] sm:$0xf]
        %v1817 = vld [vmem:[#allocation8 + $0x7c] sm:$0xf]
        %v1818 = vld [vmem:[#allocation8 + $0x80] sm:$0xf]
        %v1819 = vld [vmem:[#allocation8 + $0x84] sm:$0xf]
        %v1820 = vld [vmem:[#allocation8 + $0x88] sm:$0xf]
        %v1821 = vld [vmem:[#allocation8 + $0x8c] sm:$0xf]
        %v1822 = vld [vmem:[#allocation8 + $0x90] sm:$0xf]
        %v1823 = vld [vmem:[#allocation8 + $0x94] sm:$0xf]
        %v1824 = vld [vmem:[#allocation8 + $0x98] sm:$0xf]
        %v1825 = vld [vmem:[#allocation8 + $0x9c] sm:$0xf]
        %v1826 = vld [vmem:[#allocation8 + $0xa0] sm:$0xf]
        %v1827 = vld [vmem:[#allocation8 + $0xa4] sm:$0xf]
        %v1828 = vld [vmem:[#allocation8 + $0xa8] sm:$0xf]
        %v1829 = vld [vmem:[#allocation8 + $0xac] sm:$0xf]
        %v1830 = vld [vmem:[#allocation8 + $0xb0] sm:$0xf]
        %v1831 = vld [vmem:[#allocation8 + $0xb4] sm:$0xf]
        %v1832 = vld [vmem:[#allocation8 + $0xb8] sm:$0xf]
        %v1833 = vld [vmem:[#allocation8 + $0xbc] sm:$0xf]
        %v1834 = vld [vmem:[%s1141] sm:$0xf]
        %v1835 = vld [vmem:[%s1141 + $0x4] sm:$0xf]
        %v1836 = vld [vmem:[%s1141 + $0xc] sm:$0xf]
        %v1837 = vld [vmem:[%s1141 + $0x10] sm:$0xf]
        %v1838 = vld [vmem:[%s1141 + $0x18] sm:$0xf]
        %v1839 = vld [vmem:[%s1141 + $0x1c] sm:$0xf]
        %v1840 = vld [vmem:[%s1141 + $0x24] sm:$0xf]
        %v1841 = vld [vmem:[%s1141 + $0x28] sm:$0xf]
        %v1842 = vld [vmem:[%s1141 + $0x30] sm:$0xf]
        %v1843 = vld [vmem:[%s1141 + $0x34] sm:$0xf]
        %v1844 = vld [vmem:[%s1141 + $0x3c] sm:$0xf]
        %v1845 = vld [vmem:[%s1141 + $0x40] sm:$0xf]
        %v1846 = vld [vmem:[%s1141 + $0x48] sm:$0xf]
        %v1847 = vld [vmem:[%s1141 + $0x4c] sm:$0xf]
        %v1848 = vld [vmem:[%s1141 + $0x54] sm:$0xf]
        %v1849 = vld [vmem:[%s1141 + $0x58] sm:$0xf]
        %v1850 = vld [vmem:[%s1141 + $0x60] sm:$0xf]
        %v1851 = vld [vmem:[%s1141 + $0x64] sm:$0xf]
        %v1852 = vld [vmem:[%s1141 + $0x6c] sm:$0xf]
        %v1853 = vld [vmem:[%s1141 + $0x70] sm:$0xf]
        %v1854 = vld [vmem:[%s1141 + $0x78] sm:$0xf]
        %v1855 = vld [vmem:[%s1141 + $0x7c] sm:$0xf]
        %v1856 = vld [vmem:[%s1141 + $0x84] sm:$0xf]
        %v1857 = vld [vmem:[%s1141 + $0x88] sm:$0xf]
        %v1858 = vld [vmem:[%s1141 + $0x90] sm:$0xf]
        %v1859 = vld [vmem:[%s1141 + $0x94] sm:$0xf]
        %v1860 = vld [vmem:[%s1141 + $0x9c] sm:$0xf]
        %v1861 = vld [vmem:[%s1141 + $0xa0] sm:$0xf]
        %v1862 = vld [vmem:[%s1141 + $0xa8] sm:$0xf]
        %v1863 = vld [vmem:[%s1141 + $0xac] sm:$0xf]
        %v1864 = vld [vmem:[%s1141 + $0xb4] sm:$0xf]
        %v1865 = vld [vmem:[%s1141 + $0xb8] sm:$0xf]
        %v1866 = vld [vmem:[%s1141 + $0x8] sm:$0x1]
        %v1867 = vld [vmem:[%s1141 + $0x14] sm:$0x1]
        %v1868 = vld [vmem:[%s1141 + $0x20] sm:$0x1]
        %v1869 = vld [vmem:[%s1141 + $0x2c] sm:$0x1]
        %v1870 = vld [vmem:[%s1141 + $0x38] sm:$0x1]
        %v1871 = vld [vmem:[%s1141 + $0x44] sm:$0x1]
        %v1872 = vld [vmem:[%s1141 + $0x50] sm:$0x1]
        %v1873 = vld [vmem:[%s1141 + $0x5c] sm:$0x1]
        %v1874 = vld [vmem:[%s1141 + $0x68] sm:$0x1]
        %v1875 = vld [vmem:[%s1141 + $0x74] sm:$0x1]
        %v1876 = vld [vmem:[%s1141 + $0x80] sm:$0x1]
        %v1877 = vld [vmem:[%s1141 + $0x8c] sm:$0x1]
        %v1878 = vld [vmem:[%s1141 + $0x98] sm:$0x1]
        %v1879 = vld [vmem:[%s1141 + $0xa4] sm:$0x1]
        %v1880 = vld [vmem:[%s1141 + $0xb0] sm:$0x1]
        %v1881 = vld [vmem:[%s1141 + $0xbc] sm:$0x1]
        %v1882 = vld [vmem:[%s1141] sm:$0xe]
        %v1883 = vld [vmem:[%s1141 + $0xc] sm:$0xe]
        %v1884 = vld [vmem:[%s1141 + $0x18] sm:$0xe]
        %v1885 = vld [vmem:[%s1141 + $0x24] sm:$0xe]
        %v1886 = vld [vmem:[%s1141 + $0x30] sm:$0xe]
        %v1887 = vld [vmem:[%s1141 + $0x3c] sm:$0xe]
        %v1888 = vld [vmem:[%s1141 + $0x48] sm:$0xe]
        %v1889 = vld [vmem:[%s1141 + $0x54] sm:$0xe]
        %v1890 = vld [vmem:[%s1141 + $0x60] sm:$0xe]
        %v1891 = vld [vmem:[%s1141 + $0x6c] sm:$0xe]
        %v1892 = vld [vmem:[%s1141 + $0x78] sm:$0xe]
        %v1893 = vld [vmem:[%s1141 + $0x84] sm:$0xe]
        %v1894 = vld [vmem:[%s1141 + $0x90] sm:$0xe]
        %v1895 = vld [vmem:[%s1141 + $0x9c] sm:$0xe]
        %v1896 = vld [vmem:[%s1141 + $0xa8] sm:$0xe]
        %v1897 = vld [vmem:[%s1141 + $0xb4] sm:$0xe]
        %v1930 = vunpack.c.l.b16 %v1834
        %v1931 = vunpack.c.l.b16 %v1835
        %v1932 = vunpack.c.l.b16 %v1836
        %v1933 = vunpack.c.l.b16 %v1837
        %v1934 = vunpack.c.l.b16 %v1838
        %v1935 = vunpack.c.l.b16 %v1839
        %v1936 = vunpack.c.l.b16 %v1840
        %v1937 = vunpack.c.l.b16 %v1841
        %v1938 = vunpack.c.l.b16 %v1842
        %v1939 = vunpack.c.l.b16 %v1843
        %v1940 = vunpack.c.l.b16 %v1844
        %v1941 = vunpack.c.l.b16 %v1845
        %v1942 = vunpack.c.l.b16 %v1846
        %v1943 = vunpack.c.l.b16 %v1847
        %v1944 = vunpack.c.l.b16 %v1848
        %v1945 = vunpack.c.l.b16 %v1849
        %v1946 = vunpack.c.l.b16 %v1850
        %v1947 = vunpack.c.l.b16 %v1851
        %v1948 = vunpack.c.l.b16 %v1852
        %v1949 = vunpack.c.l.b16 %v1853
        %v1950 = vunpack.c.l.b16 %v1854
        %v1951 = vunpack.c.l.b16 %v1855
        %v1952 = vunpack.c.l.b16 %v1856
        %v1953 = vunpack.c.l.b16 %v1857
        %v1954 = vunpack.c.l.b16 %v1858
        %v1955 = vunpack.c.l.b16 %v1859
        %v1956 = vunpack.c.l.b16 %v1860
        %v1957 = vunpack.c.l.b16 %v1861
        %v1958 = vunpack.c.l.b16 %v1862
        %v1959 = vunpack.c.l.b16 %v1863
        %v1960 = vunpack.c.l.b16 %v1864
        %v1961 = vunpack.c.l.b16 %v1865
        %v1962 = vpack.c.b16 %v1931, %v1930
        %v1963 = vpack.c.b16 %v1933, %v1932
        %v1964 = vpack.c.b16 %v1935, %v1934
        %v1965 = vpack.c.b16 %v1937, %v1936
        %v1966 = vpack.c.b16 %v1939, %v1938
        %v1967 = vpack.c.b16 %v1941, %v1940
        %v1968 = vpack.c.b16 %v1943, %v1942
        %v1969 = vpack.c.b16 %v1945, %v1944
        %v1970 = vpack.c.b16 %v1947, %v1946
        %v1971 = vpack.c.b16 %v1949, %v1948
        %v1972 = vpack.c.b16 %v1951, %v1950
        %v1973 = vpack.c.b16 %v1953, %v1952
        %v1974 = vpack.c.b16 %v1955, %v1954
        %v1975 = vpack.c.b16 %v1957, %v1956
        %v1976 = vpack.c.b16 %v1959, %v1958
        %v1977 = vpack.c.b16 %v1961, %v1960
        %v2010 = vunpack.c.l.b16 %v1866
        %v2011 = vunpack.c.l.b16 %v1867
        %v2012 = vunpack.c.l.b16 %v1868
        %v2013 = vunpack.c.l.b16 %v1869
        %v2014 = vunpack.c.l.b16 %v1870
        %v2015 = vunpack.c.l.b16 %v1871
        %v2016 = vunpack.c.l.b16 %v1872
        %v2017 = vunpack.c.l.b16 %v1873
        %v2018 = vunpack.c.l.b16 %v1874
        %v2019 = vunpack.c.l.b16 %v1875
        %v2020 = vunpack.c.l.b16 %v1876
        %v2021 = vunpack.c.l.b16 %v1877
        %v2022 = vunpack.c.l.b16 %v1878
        %v2023 = vunpack.c.l.b16 %v1879
        %v2024 = vunpack.c.l.b16 %v1880
        %v2025 = vunpack.c.l.b16 %v1881
        %v2026 = vpack.c.b16 %v2010, %v2010
        %v2027 = vpack.c.b16 %v2011, %v2011
        %v2028 = vpack.c.b16 %v2012, %v2012
        %v2029 = vpack.c.b16 %v2013, %v2013
        %v2030 = vpack.c.b16 %v2014, %v2014
        %v2031 = vpack.c.b16 %v2015, %v2015
        %v2032 = vpack.c.b16 %v2016, %v2016
        %v2033 = vpack.c.b16 %v2017, %v2017
        %v2034 = vpack.c.b16 %v2018, %v2018
        %v2035 = vpack.c.b16 %v2019, %v2019
        %v2036 = vpack.c.b16 %v2020, %v2020
        %v2037 = vpack.c.b16 %v2021, %v2021
        %v2038 = vpack.c.b16 %v2022, %v2022
        %v2039 = vpack.c.b16 %v2023, %v2023
        %v2040 = vpack.c.b16 %v2024, %v2024
        %v2041 = vpack.c.b16 %v2025, %v2025
        %v2043 = vshrl.u32 %v1962, 16
        %v2045 = vshll.u32 %v1962, 16
        %v2047 = vrot.slane %v2045, 1
        %v2048 = vor.u32 %v2043, %v2047
        %v2050 = vshll.u32 %v2026, 16
        %v2052 = vrot.slane %v2050, 1
        %v2053 = vsel %vm1464, %v2048, %v2052
        %v2055 = vshrl.u32 %v1963, 16
        %v2057 = vshll.u32 %v1963, 16
        %v2059 = vrot.slane %v2057, 1
        %v2060 = vor.u32 %v2055, %v2059
        %v2062 = vshll.u32 %v2027, 16
        %v2064 = vrot.slane %v2062, 1
        %v2065 = vsel %vm1464, %v2060, %v2064
        %v2067 = vshrl.u32 %v1964, 16
        %v2069 = vshll.u32 %v1964, 16
        %v2071 = vrot.slane %v2069, 1
        %v2072 = vor.u32 %v2067, %v2071
        %v2074 = vshll.u32 %v2028, 16
        %v2076 = vrot.slane %v2074, 1
        %v2077 = vsel %vm1464, %v2072, %v2076
        %v2079 = vshrl.u32 %v1965, 16
        %v2081 = vshll.u32 %v1965, 16
        %v2083 = vrot.slane %v2081, 1
        %v2084 = vor.u32 %v2079, %v2083
        %v2086 = vshll.u32 %v2029, 16
        %v2088 = vrot.slane %v2086, 1
        %v2089 = vsel %vm1464, %v2084, %v2088
        %v2091 = vshrl.u32 %v1966, 16
        %v2093 = vshll.u32 %v1966, 16
        %v2095 = vrot.slane %v2093, 1
        %v2096 = vor.u32 %v2091, %v2095
        %v2098 = vshll.u32 %v2030, 16
        %v2100 = vrot.slane %v2098, 1
        %v2101 = vsel %vm1464, %v2096, %v2100
        %v2103 = vshrl.u32 %v1967, 16
        %v2105 = vshll.u32 %v1967, 16
        %v2107 = vrot.slane %v2105, 1
        %v2108 = vor.u32 %v2103, %v2107
        %v2110 = vshll.u32 %v2031, 16
        %v2112 = vrot.slane %v2110, 1
        %v2113 = vsel %vm1464, %v2108, %v2112
        %v2115 = vshrl.u32 %v1968, 16
        %v2117 = vshll.u32 %v1968, 16
        %v2119 = vrot.slane %v2117, 1
        %v2120 = vor.u32 %v2115, %v2119
        %v2122 = vshll.u32 %v2032, 16
        %v2124 = vrot.slane %v2122, 1
        %v2125 = vsel %vm1464, %v2120, %v2124
        %v2127 = vshrl.u32 %v1969, 16
        %v2129 = vshll.u32 %v1969, 16
        %v2131 = vrot.slane %v2129, 1
        %v2132 = vor.u32 %v2127, %v2131
        %v2134 = vshll.u32 %v2033, 16
        %v2136 = vrot.slane %v2134, 1
        %v2137 = vsel %vm1464, %v2132, %v2136
        %v2139 = vshrl.u32 %v1970, 16
        %v2141 = vshll.u32 %v1970, 16
        %v2143 = vrot.slane %v2141, 1
        %v2144 = vor.u32 %v2139, %v2143
        %v2146 = vshll.u32 %v2034, 16
        %v2148 = vrot.slane %v2146, 1
        %v2149 = vsel %vm1464, %v2144, %v2148
        %v2151 = vshrl.u32 %v1971, 16
        %v2153 = vshll.u32 %v1971, 16
        %v2155 = vrot.slane %v2153, 1
        %v2156 = vor.u32 %v2151, %v2155
        %v2158 = vshll.u32 %v2035, 16
        %v2160 = vrot.slane %v2158, 1
        %v2161 = vsel %vm1464, %v2156, %v2160
        %v2163 = vshrl.u32 %v1972, 16
        %v2165 = vshll.u32 %v1972, 16
        %v2167 = vrot.slane %v2165, 1
        %v2168 = vor.u32 %v2163, %v2167
        %v2170 = vshll.u32 %v2036, 16
        %v2172 = vrot.slane %v2170, 1
        %v2173 = vsel %vm1464, %v2168, %v2172
        %v2175 = vshrl.u32 %v1973, 16
        %v2177 = vshll.u32 %v1973, 16
        %v2179 = vrot.slane %v2177, 1
        %v2180 = vor.u32 %v2175, %v2179
        %v2182 = vshll.u32 %v2037, 16
        %v2184 = vrot.slane %v2182, 1
        %v2185 = vsel %vm1464, %v2180, %v2184
        %v2187 = vshrl.u32 %v1974, 16
        %v2189 = vshll.u32 %v1974, 16
        %v2191 = vrot.slane %v2189, 1
        %v2192 = vor.u32 %v2187, %v2191
        %v2194 = vshll.u32 %v2038, 16
        %v2196 = vrot.slane %v2194, 1
        %v2197 = vsel %vm1464, %v2192, %v2196
        %v2199 = vshrl.u32 %v1975, 16
        %v2201 = vshll.u32 %v1975, 16
        %v2203 = vrot.slane %v2201, 1
        %v2204 = vor.u32 %v2199, %v2203
        %v2206 = vshll.u32 %v2039, 16
        %v2208 = vrot.slane %v2206, 1
        %v2209 = vsel %vm1464, %v2204, %v2208
        %v2211 = vshrl.u32 %v1976, 16
        %v2213 = vshll.u32 %v1976, 16
        %v2215 = vrot.slane %v2213, 1
        %v2216 = vor.u32 %v2211, %v2215
        %v2218 = vshll.u32 %v2040, 16
        %v2220 = vrot.slane %v2218, 1
        %v2221 = vsel %vm1464, %v2216, %v2220
        %v2223 = vshrl.u32 %v1977, 16
        %v2225 = vshll.u32 %v1977, 16
        %v2227 = vrot.slane %v2225, 1
        %v2228 = vor.u32 %v2223, %v2227
        %v2230 = vshll.u32 %v2041, 16
        %v2232 = vrot.slane %v2230, 1
        %v2233 = vsel %vm1464, %v2228, %v2232
        %v2266 = vunpack.c.l.b16 %v1882
        %v2267 = vunpack.c.l.b16 %v1883
        %v2268 = vunpack.c.l.b16 %v1884
        %v2269 = vunpack.c.l.b16 %v1885
        %v2270 = vunpack.c.l.b16 %v1886
        %v2271 = vunpack.c.l.b16 %v1887
        %v2272 = vunpack.c.l.b16 %v1888
        %v2273 = vunpack.c.l.b16 %v1889
        %v2274 = vunpack.c.l.b16 %v1890
        %v2275 = vunpack.c.l.b16 %v1891
        %v2276 = vunpack.c.l.b16 %v1892
        %v2277 = vunpack.c.l.b16 %v1893
        %v2278 = vunpack.c.l.b16 %v1894
        %v2279 = vunpack.c.l.b16 %v1895
        %v2280 = vunpack.c.l.b16 %v1896
        %v2281 = vunpack.c.l.b16 %v1897
        %v2282 = vpack.c.b16 %v1931, %v2266
        %v2283 = vpack.c.b16 %v1933, %v2267
        %v2284 = vpack.c.b16 %v1935, %v2268
        %v2285 = vpack.c.b16 %v1937, %v2269
        %v2286 = vpack.c.b16 %v1939, %v2270
        %v2287 = vpack.c.b16 %v1941, %v2271
        %v2288 = vpack.c.b16 %v1943, %v2272
        %v2289 = vpack.c.b16 %v1945, %v2273
        %v2290 = vpack.c.b16 %v1947, %v2274
        %v2291 = vpack.c.b16 %v1949, %v2275
        %v2292 = vpack.c.b16 %v1951, %v2276
        %v2293 = vpack.c.b16 %v1953, %v2277
        %v2294 = vpack.c.b16 %v1955, %v2278
        %v2295 = vpack.c.b16 %v1957, %v2279
        %v2296 = vpack.c.b16 %v1959, %v2280
        %v2297 = vpack.c.b16 %v1961, %v2281
        %v2298 = vrot.slane %v2282, 1
        %v2299 = vrot.slane %v2026, 1
        %v2300 = vsel %vm1721, %v2298, %v2299
        %v2301 = vrot.slane %v2283, 1
        %v2302 = vrot.slane %v2027, 1
        %v2303 = vsel %vm1721, %v2301, %v2302
        %v2304 = vrot.slane %v2284, 1
        %v2305 = vrot.slane %v2028, 1
        %v2306 = vsel %vm1721, %v2304, %v2305
        %v2307 = vrot.slane %v2285, 1
        %v2308 = vrot.slane %v2029, 1
        %v2309 = vsel %vm1721, %v2307, %v2308
        %v2310 = vrot.slane %v2286, 1
        %v2311 = vrot.slane %v2030, 1
        %v2312 = vsel %vm1721, %v2310, %v2311
        %v2313 = vrot.slane %v2287, 1
        %v2314 = vrot.slane %v2031, 1
        %v2315 = vsel %vm1721, %v2313, %v2314
        %v2316 = vrot.slane %v2288, 1
        %v2317 = vrot.slane %v2032, 1
        %v2318 = vsel %vm1721, %v2316, %v2317
        %v2319 = vrot.slane %v2289, 1
        %v2320 = vrot.slane %v2033, 1
        %v2321 = vsel %vm1721, %v2319, %v2320
        %v2322 = vrot.slane %v2290, 1
        %v2323 = vrot.slane %v2034, 1
        %v2324 = vsel %vm1721, %v2322, %v2323
        %v2325 = vrot.slane %v2291, 1
        %v2326 = vrot.slane %v2035, 1
        %v2327 = vsel %vm1721, %v2325, %v2326
        %v2328 = vrot.slane %v2292, 1
        %v2329 = vrot.slane %v2036, 1
        %v2330 = vsel %vm1721, %v2328, %v2329
        %v2331 = vrot.slane %v2293, 1
        %v2332 = vrot.slane %v2037, 1
        %v2333 = vsel %vm1721, %v2331, %v2332
        %v2334 = vrot.slane %v2294, 1
        %v2335 = vrot.slane %v2038, 1
        %v2336 = vsel %vm1721, %v2334, %v2335
        %v2337 = vrot.slane %v2295, 1
        %v2338 = vrot.slane %v2039, 1
        %v2339 = vsel %vm1721, %v2337, %v2338
        %v2340 = vrot.slane %v2296, 1
        %v2341 = vrot.slane %v2040, 1
        %v2342 = vsel %vm1721, %v2340, %v2341
        %v2343 = vrot.slane %v2297, 1
        %v2344 = vrot.slane %v2041, 1
        %v2345 = vsel %vm1721, %v2343, %v2344
        %s2362 = scalar_lea.vmem [#allocation8], 192
        %v2363 = vld [vmem:[%s2362] sm:$0xf]
        %v2364 = vld [vmem:[%s2362 + $0x4] sm:$0xf]
        %v2365 = vld [vmem:[%s2362 + $0x8] sm:$0xf]
        %v2366 = vld [vmem:[%s2362 + $0xc] sm:$0xf]
        %v2367 = vld [vmem:[%s2362 + $0x10] sm:$0xf]
        %v2368 = vld [vmem:[%s2362 + $0x14] sm:$0xf]
        %v2369 = vld [vmem:[%s2362 + $0x18] sm:$0xf]
        %v2370 = vld [vmem:[%s2362 + $0x1c] sm:$0xf]
        %v2371 = vld [vmem:[%s2362 + $0x20] sm:$0xf]
        %v2372 = vld [vmem:[%s2362 + $0x24] sm:$0xf]
        %v2373 = vld [vmem:[%s2362 + $0x28] sm:$0xf]
        %v2374 = vld [vmem:[%s2362 + $0x2c] sm:$0xf]
        %v2375 = vld [vmem:[%s2362 + $0x30] sm:$0xf]
        %v2376 = vld [vmem:[%s2362 + $0x34] sm:$0xf]
        %v2377 = vld [vmem:[%s2362 + $0x38] sm:$0xf]
        %v2378 = vld [vmem:[%s2362 + $0x3c] sm:$0xf]
        %v2379 = vld [vmem:[%s2362 + $0x40] sm:$0xf]
        %v2380 = vld [vmem:[%s2362 + $0x44] sm:$0xf]
        %v2381 = vld [vmem:[%s2362 + $0x48] sm:$0xf]
        %v2382 = vld [vmem:[%s2362 + $0x4c] sm:$0xf]
        %v2383 = vld [vmem:[%s2362 + $0x50] sm:$0xf]
        %v2384 = vld [vmem:[%s2362 + $0x54] sm:$0xf]
        %v2385 = vld [vmem:[%s2362 + $0x58] sm:$0xf]
        %v2386 = vld [vmem:[%s2362 + $0x5c] sm:$0xf]
        %v2387 = vld [vmem:[%s2362 + $0x60] sm:$0xf]
        %v2388 = vld [vmem:[%s2362 + $0x64] sm:$0xf]
        %v2389 = vld [vmem:[%s2362 + $0x68] sm:$0xf]
        %v2390 = vld [vmem:[%s2362 + $0x6c] sm:$0xf]
        %v2391 = vld [vmem:[%s2362 + $0x70] sm:$0xf]
        %v2392 = vld [vmem:[%s2362 + $0x74] sm:$0xf]
        %v2393 = vld [vmem:[%s2362 + $0x78] sm:$0xf]
        %v2394 = vld [vmem:[%s2362 + $0x7c] sm:$0xf]
        %v2395 = vld [vmem:[%s2362 + $0x80] sm:$0xf]
        %v2396 = vld [vmem:[%s2362 + $0x84] sm:$0xf]
        %v2397 = vld [vmem:[%s2362 + $0x88] sm:$0xf]
        %v2398 = vld [vmem:[%s2362 + $0x8c] sm:$0xf]
        %v2399 = vld [vmem:[%s2362 + $0x90] sm:$0xf]
        %v2400 = vld [vmem:[%s2362 + $0x94] sm:$0xf]
        %v2401 = vld [vmem:[%s2362 + $0x98] sm:$0xf]
        %v2402 = vld [vmem:[%s2362 + $0x9c] sm:$0xf]
        %v2403 = vld [vmem:[%s2362 + $0xa0] sm:$0xf]
        %v2404 = vld [vmem:[%s2362 + $0xa4] sm:$0xf]
        %v2405 = vld [vmem:[%s2362 + $0xa8] sm:$0xf]
        %v2406 = vld [vmem:[%s2362 + $0xac] sm:$0xf]
        %v2407 = vld [vmem:[%s2362 + $0xb0] sm:$0xf]
        %v2408 = vld [vmem:[%s2362 + $0xb4] sm:$0xf]
        %v2409 = vld [vmem:[%s2362 + $0xb8] sm:$0xf]
        %v2410 = vld [vmem:[%s2362 + $0xbc] sm:$0xf]
        %v2459 = vunpack.c.l.b16 %v2363
        %v2460 = vunpack.c.l.b16 %v2364
        %v2461 = vunpack.c.l.b16 %v2365
        %v2462 = vunpack.c.l.b16 %v2366
        %v2463 = vunpack.c.l.b16 %v2367
        %v2464 = vunpack.c.l.b16 %v2368
        %v2465 = vunpack.c.l.b16 %v2369
        %v2466 = vunpack.c.l.b16 %v2370
        %v2467 = vunpack.c.l.b16 %v2371
        %v2468 = vunpack.c.l.b16 %v2372
        %v2469 = vunpack.c.l.b16 %v2373
        %v2470 = vunpack.c.l.b16 %v2374
        %v2471 = vunpack.c.l.b16 %v2375
        %v2472 = vunpack.c.l.b16 %v2376
        %v2473 = vunpack.c.l.b16 %v2377
        %v2474 = vunpack.c.l.b16 %v2378
        %v2475 = vunpack.c.l.b16 %v2379
        %v2476 = vunpack.c.l.b16 %v2380
        %v2477 = vunpack.c.l.b16 %v2381
        %v2478 = vunpack.c.l.b16 %v2382
        %v2479 = vunpack.c.l.b16 %v2383
        %v2480 = vunpack.c.l.b16 %v2384
        %v2481 = vunpack.c.l.b16 %v2385
        %v2482 = vunpack.c.l.b16 %v2386
        %v2483 = vunpack.c.l.b16 %v2387
        %v2484 = vunpack.c.l.b16 %v2388
        %v2485 = vunpack.c.l.b16 %v2389
        %v2486 = vunpack.c.l.b16 %v2390
        %v2487 = vunpack.c.l.b16 %v2391
        %v2488 = vunpack.c.l.b16 %v2392
        %v2489 = vunpack.c.l.b16 %v2393
        %v2490 = vunpack.c.l.b16 %v2394
        %v2491 = vunpack.c.l.b16 %v2395
        %v2492 = vunpack.c.l.b16 %v2396
        %v2493 = vunpack.c.l.b16 %v2397
        %v2494 = vunpack.c.l.b16 %v2398
        %v2495 = vunpack.c.l.b16 %v2399
        %v2496 = vunpack.c.l.b16 %v2400
        %v2497 = vunpack.c.l.b16 %v2401
        %v2498 = vunpack.c.l.b16 %v2402
        %v2499 = vunpack.c.l.b16 %v2403
        %v2500 = vunpack.c.l.b16 %v2404
        %v2501 = vunpack.c.l.b16 %v2405
        %v2502 = vunpack.c.l.b16 %v2406
        %v2503 = vunpack.c.l.b16 %v2407
        %v2504 = vunpack.c.l.b16 %v2408
        %v2505 = vunpack.c.l.b16 %v2409
        %v2506 = vunpack.c.l.b16 %v2410
        %v2507 = vpack.c.b16 %v2460, %v2459
        %v2508 = vpack.c.b16 %v2462, %v2461
        %v2509 = vpack.c.b16 %v2464, %v2463
        %v2510 = vpack.c.b16 %v2466, %v2465
        %v2511 = vpack.c.b16 %v2468, %v2467
        %v2512 = vpack.c.b16 %v2470, %v2469
        %v2513 = vpack.c.b16 %v2472, %v2471
        %v2514 = vpack.c.b16 %v2474, %v2473
        %v2515 = vpack.c.b16 %v2476, %v2475
        %v2516 = vpack.c.b16 %v2478, %v2477
        %v2517 = vpack.c.b16 %v2480, %v2479
        %v2518 = vpack.c.b16 %v2482, %v2481
        %v2519 = vpack.c.b16 %v2484, %v2483
        %v2520 = vpack.c.b16 %v2486, %v2485
        %v2521 = vpack.c.b16 %v2488, %v2487
        %v2522 = vpack.c.b16 %v2490, %v2489
        %v2523 = vpack.c.b16 %v2492, %v2491
        %v2524 = vpack.c.b16 %v2494, %v2493
        %v2525 = vpack.c.b16 %v2496, %v2495
        %v2526 = vpack.c.b16 %v2498, %v2497
        %v2527 = vpack.c.b16 %v2500, %v2499
        %v2528 = vpack.c.b16 %v2502, %v2501
        %v2529 = vpack.c.b16 %v2504, %v2503
        %v2530 = vpack.c.b16 %v2506, %v2505
        %2555 = vmatpush.bf16.msra.mxu0 %v2514
        %2556 = vmatpush.bf16.msra.mxu0 %v2513
        %2557 = vmatpush.bf16.msra.mxu0 %v2512
        %2558 = vmatpush.bf16.msra.mxu0 %v2511
        %2559 = vmatpush.bf16.msra.mxu0 %v2510
        %2560 = vmatpush.bf16.msra.mxu0 %v2509
        %2561 = vmatpush.bf16.msra.mxu0 %v2508
        %2562 = vmatpush.bf16.msra.mxu0 %v2507
        %2563 = vmatmul.bf16.gmra.mxu0 %v1962
        %v2564 = vpop.f32.mrf.mxu0
        %v2565 = vadd.f32 0.0, %v2564
        %v2566 = vpop.f32.mrf.mxu0
        %v2567 = vadd.f32 0.0, %v2566
        %2568 = vmatmul.bf16.gmra.mxu0 %v1963
        %v2569 = vpop.f32.mrf.mxu0
        %v2570 = vadd.f32 0.0, %v2569
        %v2571 = vpop.f32.mrf.mxu0
        %v2572 = vadd.f32 0.0, %v2571
        %2573 = vmatmul.bf16.gmra.mxu0 %v1964
        %v2574 = vpop.f32.mrf.mxu0
        %v2575 = vadd.f32 0.0, %v2574
        %v2576 = vpop.f32.mrf.mxu0
        %v2577 = vadd.f32 0.0, %v2576
        %2578 = vmatmul.bf16.gmra.mxu0 %v1965
        %v2579 = vpop.f32.mrf.mxu0
        %v2580 = vadd.f32 0.0, %v2579
        %v2581 = vpop.f32.mrf.mxu0
        %v2582 = vadd.f32 0.0, %v2581
        %2583 = vmatmul.bf16.gmra.mxu0 %v1966
        %v2584 = vpop.f32.mrf.mxu0
        %v2585 = vadd.f32 0.0, %v2584
        %v2586 = vpop.f32.mrf.mxu0
        %v2587 = vadd.f32 0.0, %v2586
        %2588 = vmatmul.bf16.gmra.mxu0 %v1967
        %v2589 = vpop.f32.mrf.mxu0
        %v2590 = vadd.f32 0.0, %v2589
        %v2591 = vpop.f32.mrf.mxu0
        %v2592 = vadd.f32 0.0, %v2591
        %2593 = vmatmul.bf16.gmra.mxu0 %v1968
        %v2594 = vpop.f32.mrf.mxu0
        %v2595 = vadd.f32 0.0, %v2594
        %v2596 = vpop.f32.mrf.mxu0
        %v2597 = vadd.f32 0.0, %v2596
        %2598 = vmatmul.bf16.gmra.mxu0 %v1969
        %v2599 = vpop.f32.mrf.mxu0
        %v2600 = vadd.f32 0.0, %v2599
        %v2601 = vpop.f32.mrf.mxu0
        %v2602 = vadd.f32 0.0, %v2601
        %2603 = vmatmul.bf16.gmra.mxu0 %v1970
        %v2604 = vpop.f32.mrf.mxu0
        %v2605 = vadd.f32 0.0, %v2604
        %v2606 = vpop.f32.mrf.mxu0
        %v2607 = vadd.f32 0.0, %v2606
        %2608 = vmatmul.bf16.gmra.mxu0 %v1971
        %v2609 = vpop.f32.mrf.mxu0
        %v2610 = vadd.f32 0.0, %v2609
        %v2611 = vpop.f32.mrf.mxu0
        %v2612 = vadd.f32 0.0, %v2611
        %2613 = vmatmul.bf16.gmra.mxu0 %v1972
        %v2614 = vpop.f32.mrf.mxu0
        %v2615 = vadd.f32 0.0, %v2614
        %v2616 = vpop.f32.mrf.mxu0
        %v2617 = vadd.f32 0.0, %v2616
        %2618 = vmatmul.bf16.gmra.mxu0 %v1973
        %v2619 = vpop.f32.mrf.mxu0
        %v2620 = vadd.f32 0.0, %v2619
        %v2621 = vpop.f32.mrf.mxu0
        %v2622 = vadd.f32 0.0, %v2621
        %2623 = vmatmul.bf16.gmra.mxu0 %v1974
        %v2624 = vpop.f32.mrf.mxu0
        %v2625 = vadd.f32 0.0, %v2624
        %v2626 = vpop.f32.mrf.mxu0
        %v2627 = vadd.f32 0.0, %v2626
        %2628 = vmatmul.bf16.gmra.mxu0 %v1975
        %v2629 = vpop.f32.mrf.mxu0
        %v2630 = vadd.f32 0.0, %v2629
        %v2631 = vpop.f32.mrf.mxu0
        %v2632 = vadd.f32 0.0, %v2631
        %2633 = vmatmul.bf16.gmra.mxu0 %v1976
        %v2634 = vpop.f32.mrf.mxu0
        %v2635 = vadd.f32 0.0, %v2634
        %v2636 = vpop.f32.mrf.mxu0
        %v2637 = vadd.f32 0.0, %v2636
        %2638 = vmatmul.bf16.gmra.mxu0 %v1977
        %v2639 = vpop.f32.mrf.mxu0
        %v2640 = vadd.f32 0.0, %v2639
        %v2641 = vpop.f32.mrf.mxu0
        %v2642 = vadd.f32 0.0, %v2641
        %2643 = vdwg.mxu0
        %2644 = vmatpush.bf16.msra.mxu0 %v2522
        %2645 = vmatpush.bf16.msra.mxu0 %v2521
        %2646 = vmatpush.bf16.msra.mxu0 %v2520
        %2647 = vmatpush.bf16.msra.mxu0 %v2519
        %2648 = vmatpush.bf16.msra.mxu0 %v2518
        %2649 = vmatpush.bf16.msra.mxu0 %v2517
        %2650 = vmatpush.bf16.msra.mxu0 %v2516
        %2651 = vmatpush.bf16.msra.mxu0 %v2515
        %2652 = vmatmul.bf16.gmra.mxu0 %v2053
        %v2653 = vpop.f32.mrf.mxu0
        %v2654 = vadd.f32 %v2565, %v2653
        %v2655 = vpop.f32.mrf.mxu0
        %v2656 = vadd.f32 %v2567, %v2655
        %2657 = vmatmul.bf16.gmra.mxu0 %v2065
        %v2658 = vpop.f32.mrf.mxu0
        %v2659 = vadd.f32 %v2570, %v2658
        %v2660 = vpop.f32.mrf.mxu0
        %v2661 = vadd.f32 %v2572, %v2660
        %2662 = vmatmul.bf16.gmra.mxu0 %v2077
        %v2663 = vpop.f32.mrf.mxu0
        %v2664 = vadd.f32 %v2575, %v2663
        %v2665 = vpop.f32.mrf.mxu0
        %v2666 = vadd.f32 %v2577, %v2665
        %2667 = vmatmul.bf16.gmra.mxu0 %v2089
        %v2668 = vpop.f32.mrf.mxu0
        %v2669 = vadd.f32 %v2580, %v2668
        %v2670 = vpop.f32.mrf.mxu0
        %v2671 = vadd.f32 %v2582, %v2670
        %2672 = vmatmul.bf16.gmra.mxu0 %v2101
        %v2673 = vpop.f32.mrf.mxu0
        %v2674 = vadd.f32 %v2585, %v2673
        %v2675 = vpop.f32.mrf.mxu0
        %v2676 = vadd.f32 %v2587, %v2675
        %2677 = vmatmul.bf16.gmra.mxu0 %v2113
        %v2678 = vpop.f32.mrf.mxu0
        %v2679 = vadd.f32 %v2590, %v2678
        %v2680 = vpop.f32.mrf.mxu0
        %v2681 = vadd.f32 %v2592, %v2680
        %2682 = vmatmul.bf16.gmra.mxu0 %v2125
        %v2683 = vpop.f32.mrf.mxu0
        %v2684 = vadd.f32 %v2595, %v2683
        %v2685 = vpop.f32.mrf.mxu0
        %v2686 = vadd.f32 %v2597, %v2685
        %2687 = vmatmul.bf16.gmra.mxu0 %v2137
        %v2688 = vpop.f32.mrf.mxu0
        %v2689 = vadd.f32 %v2600, %v2688
        %v2690 = vpop.f32.mrf.mxu0
        %v2691 = vadd.f32 %v2602, %v2690
        %2692 = vmatmul.bf16.gmra.mxu0 %v2149
        %v2693 = vpop.f32.mrf.mxu0
        %v2694 = vadd.f32 %v2605, %v2693
        %v2695 = vpop.f32.mrf.mxu0
        %v2696 = vadd.f32 %v2607, %v2695
        %2697 = vmatmul.bf16.gmra.mxu0 %v2161
        %v2698 = vpop.f32.mrf.mxu0
        %v2699 = vadd.f32 %v2610, %v2698
        %v2700 = vpop.f32.mrf.mxu0
        %v2701 = vadd.f32 %v2612, %v2700
        %2702 = vmatmul.bf16.gmra.mxu0 %v2173
        %v2703 = vpop.f32.mrf.mxu0
        %v2704 = vadd.f32 %v2615, %v2703
        %v2705 = vpop.f32.mrf.mxu0
        %v2706 = vadd.f32 %v2617, %v2705
        %2707 = vmatmul.bf16.gmra.mxu0 %v2185
        %v2708 = vpop.f32.mrf.mxu0
        %v2709 = vadd.f32 %v2620, %v2708
        %v2710 = vpop.f32.mrf.mxu0
        %v2711 = vadd.f32 %v2622, %v2710
        %2712 = vmatmul.bf16.gmra.mxu0 %v2197
        %v2713 = vpop.f32.mrf.mxu0
        %v2714 = vadd.f32 %v2625, %v2713
        %v2715 = vpop.f32.mrf.mxu0
        %v2716 = vadd.f32 %v2627, %v2715
        %2717 = vmatmul.bf16.gmra.mxu0 %v2209
        %v2718 = vpop.f32.mrf.mxu0
        %v2719 = vadd.f32 %v2630, %v2718
        %v2720 = vpop.f32.mrf.mxu0
        %v2721 = vadd.f32 %v2632, %v2720
        %2722 = vmatmul.bf16.gmra.mxu0 %v2221
        %v2723 = vpop.f32.mrf.mxu0
        %v2724 = vadd.f32 %v2635, %v2723
        %v2725 = vpop.f32.mrf.mxu0
        %v2726 = vadd.f32 %v2637, %v2725
        %2727 = vmatmul.bf16.gmra.mxu0 %v2233
        %v2728 = vpop.f32.mrf.mxu0
        %v2729 = vadd.f32 %v2640, %v2728
        %v2730 = vpop.f32.mrf.mxu0
        %v2731 = vadd.f32 %v2642, %v2730
        %2732 = vdwg.mxu0
        %2733 = vmatpush.bf16.msra.mxu0 %v2530
        %2734 = vmatpush.bf16.msra.mxu0 %v2529
        %2735 = vmatpush.bf16.msra.mxu0 %v2528
        %2736 = vmatpush.bf16.msra.mxu0 %v2527
        %2737 = vmatpush.bf16.msra.mxu0 %v2526
        %2738 = vmatpush.bf16.msra.mxu0 %v2525
        %2739 = vmatpush.bf16.msra.mxu0 %v2524
        %2740 = vmatpush.bf16.msra.mxu0 %v2523
        %2741 = vmatmul.bf16.gmra.mxu0 %v2300
        %v2742 = vpop.f32.mrf.mxu0
        %v2743 = vadd.f32 %v2654, %v2742
        %v2744 = vpop.f32.mrf.mxu0
        %v2745 = vadd.f32 %v2656, %v2744
        %2746 = vmatmul.bf16.gmra.mxu0 %v2303
        %v2747 = vpop.f32.mrf.mxu0
        %v2748 = vadd.f32 %v2659, %v2747
        %v2749 = vpop.f32.mrf.mxu0
        %v2750 = vadd.f32 %v2661, %v2749
        %2751 = vmatmul.bf16.gmra.mxu0 %v2306
        %v2752 = vpop.f32.mrf.mxu0
        %v2753 = vadd.f32 %v2664, %v2752
        %v2754 = vpop.f32.mrf.mxu0
        %v2755 = vadd.f32 %v2666, %v2754
        %2756 = vmatmul.bf16.gmra.mxu0 %v2309
        %v2757 = vpop.f32.mrf.mxu0
        %v2758 = vadd.f32 %v2669, %v2757
        %v2759 = vpop.f32.mrf.mxu0
        %v2760 = vadd.f32 %v2671, %v2759
        %2761 = vmatmul.bf16.gmra.mxu0 %v2312
        %v2762 = vpop.f32.mrf.mxu0
        %v2763 = vadd.f32 %v2674, %v2762
        %v2764 = vpop.f32.mrf.mxu0
        %v2765 = vadd.f32 %v2676, %v2764
        %2766 = vmatmul.bf16.gmra.mxu0 %v2315
        %v2767 = vpop.f32.mrf.mxu0
        %v2768 = vadd.f32 %v2679, %v2767
        %v2769 = vpop.f32.mrf.mxu0
        %v2770 = vadd.f32 %v2681, %v2769
        %2771 = vmatmul.bf16.gmra.mxu0 %v2318
        %v2772 = vpop.f32.mrf.mxu0
        %v2773 = vadd.f32 %v2684, %v2772
        %v2774 = vpop.f32.mrf.mxu0
        %v2775 = vadd.f32 %v2686, %v2774
        %2776 = vmatmul.bf16.gmra.mxu0 %v2321
        %v2777 = vpop.f32.mrf.mxu0
        %v2778 = vadd.f32 %v2689, %v2777
        %v2779 = vpop.f32.mrf.mxu0
        %v2780 = vadd.f32 %v2691, %v2779
        %2781 = vmatmul.bf16.gmra.mxu0 %v2324
        %v2782 = vpop.f32.mrf.mxu0
        %v2783 = vadd.f32 %v2694, %v2782
        %v2784 = vpop.f32.mrf.mxu0
        %v2785 = vadd.f32 %v2696, %v2784
        %2786 = vmatmul.bf16.gmra.mxu0 %v2327
        %v2787 = vpop.f32.mrf.mxu0
        %v2788 = vadd.f32 %v2699, %v2787
        %v2789 = vpop.f32.mrf.mxu0
        %v2790 = vadd.f32 %v2701, %v2789
        %2791 = vmatmul.bf16.gmra.mxu0 %v2330
        %v2792 = vpop.f32.mrf.mxu0
        %v2793 = vadd.f32 %v2704, %v2792
        %v2794 = vpop.f32.mrf.mxu0
        %v2795 = vadd.f32 %v2706, %v2794
        %2796 = vmatmul.bf16.gmra.mxu0 %v2333
        %v2797 = vpop.f32.mrf.mxu0
        %v2798 = vadd.f32 %v2709, %v2797
        %v2799 = vpop.f32.mrf.mxu0
        %v2800 = vadd.f32 %v2711, %v2799
        %2801 = vmatmul.bf16.gmra.mxu0 %v2336
        %v2802 = vpop.f32.mrf.mxu0
        %v2803 = vadd.f32 %v2714, %v2802
        %v2804 = vpop.f32.mrf.mxu0
        %v2805 = vadd.f32 %v2716, %v2804
        %2806 = vmatmul.bf16.gmra.mxu0 %v2339
        %v2807 = vpop.f32.mrf.mxu0
        %v2808 = vadd.f32 %v2719, %v2807
        %v2809 = vpop.f32.mrf.mxu0
        %v2810 = vadd.f32 %v2721, %v2809
        %2811 = vmatmul.bf16.gmra.mxu0 %v2342
        %v2812 = vpop.f32.mrf.mxu0
        %v2813 = vadd.f32 %v2724, %v2812
        %v2814 = vpop.f32.mrf.mxu0
        %v2815 = vadd.f32 %v2726, %v2814
        %2816 = vmatmul.bf16.gmra.mxu0 %v2345
        %v2817 = vpop.f32.mrf.mxu0
        %v2818 = vadd.f32 %v2729, %v2817
        %v2819 = vpop.f32.mrf.mxu0
        %v2820 = vadd.f32 %v2731, %v2819
        %2821 = vdwg.mxu0
        %v2870 = vunpack.c.l.b16 %v1786
        %v2871 = vunpack.c.l.b16 %v1787
        %v2872 = vunpack.c.l.b16 %v1788
        %v2873 = vunpack.c.l.b16 %v1789
        %v2874 = vunpack.c.l.b16 %v1790
        %v2875 = vunpack.c.l.b16 %v1791
        %v2876 = vunpack.c.l.b16 %v1792
        %v2877 = vunpack.c.l.b16 %v1793
        %v2878 = vunpack.c.l.b16 %v1794
        %v2879 = vunpack.c.l.b16 %v1795
        %v2880 = vunpack.c.l.b16 %v1796
        %v2881 = vunpack.c.l.b16 %v1797
        %v2882 = vunpack.c.l.b16 %v1798
        %v2883 = vunpack.c.l.b16 %v1799
        %v2884 = vunpack.c.l.b16 %v1800
        %v2885 = vunpack.c.l.b16 %v1801
        %v2886 = vunpack.c.l.b16 %v1802
        %v2887 = vunpack.c.l.b16 %v1803
        %v2888 = vunpack.c.l.b16 %v1804
        %v2889 = vunpack.c.l.b16 %v1805
        %v2890 = vunpack.c.l.b16 %v1806
        %v2891 = vunpack.c.l.b16 %v1807
        %v2892 = vunpack.c.l.b16 %v1808
        %v2893 = vunpack.c.l.b16 %v1809
        %v2894 = vunpack.c.l.b16 %v1810
        %v2895 = vunpack.c.l.b16 %v1811
        %v2896 = vunpack.c.l.b16 %v1812
        %v2897 = vunpack.c.l.b16 %v1813
        %v2898 = vunpack.c.l.b16 %v1814
        %v2899 = vunpack.c.l.b16 %v1815
        %v2900 = vunpack.c.l.b16 %v1816
        %v2901 = vunpack.c.l.b16 %v1817
        %v2902 = vunpack.c.l.b16 %v1818
        %v2903 = vunpack.c.l.b16 %v1819
        %v2904 = vunpack.c.l.b16 %v1820
        %v2905 = vunpack.c.l.b16 %v1821
        %v2906 = vunpack.c.l.b16 %v1822
        %v2907 = vunpack.c.l.b16 %v1823
        %v2908 = vunpack.c.l.b16 %v1824
        %v2909 = vunpack.c.l.b16 %v1825
        %v2910 = vunpack.c.l.b16 %v1826
        %v2911 = vunpack.c.l.b16 %v1827
        %v2912 = vunpack.c.l.b16 %v1828
        %v2913 = vunpack.c.l.b16 %v1829
        %v2914 = vunpack.c.l.b16 %v1830
        %v2915 = vunpack.c.l.b16 %v1831
        %v2916 = vunpack.c.l.b16 %v1832
        %v2917 = vunpack.c.l.b16 %v1833
        %v2918 = vpack.c.b16 %v2871, %v2870
        %v2919 = vpack.c.b16 %v2873, %v2872
        %v2920 = vpack.c.b16 %v2875, %v2874
        %v2921 = vpack.c.b16 %v2877, %v2876
        %v2922 = vpack.c.b16 %v2879, %v2878
        %v2923 = vpack.c.b16 %v2881, %v2880
        %v2924 = vpack.c.b16 %v2883, %v2882
        %v2925 = vpack.c.b16 %v2885, %v2884
        %v2926 = vpack.c.b16 %v2887, %v2886
        %v2927 = vpack.c.b16 %v2889, %v2888
        %v2928 = vpack.c.b16 %v2891, %v2890
        %v2929 = vpack.c.b16 %v2893, %v2892
        %v2930 = vpack.c.b16 %v2895, %v2894
        %v2931 = vpack.c.b16 %v2897, %v2896
        %v2932 = vpack.c.b16 %v2899, %v2898
        %v2933 = vpack.c.b16 %v2901, %v2900
        %v2934 = vpack.c.b16 %v2903, %v2902
        %v2935 = vpack.c.b16 %v2905, %v2904
        %v2936 = vpack.c.b16 %v2907, %v2906
        %v2937 = vpack.c.b16 %v2909, %v2908
        %v2938 = vpack.c.b16 %v2911, %v2910
        %v2939 = vpack.c.b16 %v2913, %v2912
        %v2940 = vpack.c.b16 %v2915, %v2914
        %v2941 = vpack.c.b16 %v2917, %v2916
        %2966 = vmatpush.bf16.msra.mxu0 %v2925
        %2967 = vmatpush.bf16.msra.mxu0 %v2924
        %2968 = vmatpush.bf16.msra.mxu0 %v2923
        %2969 = vmatpush.bf16.msra.mxu0 %v2922
        %2970 = vmatpush.bf16.msra.mxu0 %v2921
        %2971 = vmatpush.bf16.msra.mxu0 %v2920
        %2972 = vmatpush.bf16.msra.mxu0 %v2919
        %2973 = vmatpush.bf16.msra.mxu0 %v2918
        %2974 = vmatmul.bf16.gmra.mxu0 %v1384
        %v2975 = vpop.f32.mrf.mxu0
        %v2976 = vadd.f32 %v2743, %v2975
        %v2977 = vpop.f32.mrf.mxu0
        %v2978 = vadd.f32 %v2745, %v2977
        %2979 = vmatmul.bf16.gmra.mxu0 %v1385
        %v2980 = vpop.f32.mrf.mxu0
        %v2981 = vadd.f32 %v2748, %v2980
        %v2982 = vpop.f32.mrf.mxu0
        %v2983 = vadd.f32 %v2750, %v2982
        %2984 = vmatmul.bf16.gmra.mxu0 %v1386
        %v2985 = vpop.f32.mrf.mxu0
        %v2986 = vadd.f32 %v2753, %v2985
        %v2987 = vpop.f32.mrf.mxu0
        %v2988 = vadd.f32 %v2755, %v2987
        %2989 = vmatmul.bf16.gmra.mxu0 %v1387
        %v2990 = vpop.f32.mrf.mxu0
        %v2991 = vadd.f32 %v2758, %v2990
        %v2992 = vpop.f32.mrf.mxu0
        %v2993 = vadd.f32 %v2760, %v2992
        %2994 = vmatmul.bf16.gmra.mxu0 %v1388
        %v2995 = vpop.f32.mrf.mxu0
        %v2996 = vadd.f32 %v2763, %v2995
        %v2997 = vpop.f32.mrf.mxu0
        %v2998 = vadd.f32 %v2765, %v2997
        %2999 = vmatmul.bf16.gmra.mxu0 %v1389
        %v3000 = vpop.f32.mrf.mxu0
        %v3001 = vadd.f32 %v2768, %v3000
        %v3002 = vpop.f32.mrf.mxu0
        %v3003 = vadd.f32 %v2770, %v3002
        %3004 = vmatmul.bf16.gmra.mxu0 %v1390
        %v3005 = vpop.f32.mrf.mxu0
        %v3006 = vadd.f32 %v2773, %v3005
        %v3007 = vpop.f32.mrf.mxu0
        %v3008 = vadd.f32 %v2775, %v3007
        %3009 = vmatmul.bf16.gmra.mxu0 %v1391
        %v3010 = vpop.f32.mrf.mxu0
        %v3011 = vadd.f32 %v2778, %v3010
        %v3012 = vpop.f32.mrf.mxu0
        %v3013 = vadd.f32 %v2780, %v3012
        %3014 = vmatmul.bf16.gmra.mxu0 %v1392
        %v3015 = vpop.f32.mrf.mxu0
        %v3016 = vadd.f32 %v2783, %v3015
        %v3017 = vpop.f32.mrf.mxu0
        %v3018 = vadd.f32 %v2785, %v3017
        %3019 = vmatmul.bf16.gmra.mxu0 %v1393
        %v3020 = vpop.f32.mrf.mxu0
        %v3021 = vadd.f32 %v2788, %v3020
        %v3022 = vpop.f32.mrf.mxu0
        %v3023 = vadd.f32 %v2790, %v3022
        %3024 = vmatmul.bf16.gmra.mxu0 %v1394
        %v3025 = vpop.f32.mrf.mxu0
        %v3026 = vadd.f32 %v2793, %v3025
        %v3027 = vpop.f32.mrf.mxu0
        %v3028 = vadd.f32 %v2795, %v3027
        %3029 = vmatmul.bf16.gmra.mxu0 %v1395
        %v3030 = vpop.f32.mrf.mxu0
        %v3031 = vadd.f32 %v2798, %v3030
        %v3032 = vpop.f32.mrf.mxu0
        %v3033 = vadd.f32 %v2800, %v3032
        %3034 = vmatmul.bf16.gmra.mxu0 %v1396
        %v3035 = vpop.f32.mrf.mxu0
        %v3036 = vadd.f32 %v2803, %v3035
        %v3037 = vpop.f32.mrf.mxu0
        %v3038 = vadd.f32 %v2805, %v3037
        %3039 = vmatmul.bf16.gmra.mxu0 %v1397
        %v3040 = vpop.f32.mrf.mxu0
        %v3041 = vadd.f32 %v2808, %v3040
        %v3042 = vpop.f32.mrf.mxu0
        %v3043 = vadd.f32 %v2810, %v3042
        %3044 = vmatmul.bf16.gmra.mxu0 %v1398
        %v3045 = vpop.f32.mrf.mxu0
        %v3046 = vadd.f32 %v2813, %v3045
        %v3047 = vpop.f32.mrf.mxu0
        %v3048 = vadd.f32 %v2815, %v3047
        %3049 = vmatmul.bf16.gmra.mxu0 %v1399
        %v3050 = vpop.f32.mrf.mxu0
        %v3051 = vadd.f32 %v2818, %v3050
        %v3052 = vpop.f32.mrf.mxu0
        %v3053 = vadd.f32 %v2820, %v3052
        %3054 = vdwg.mxu0
        %3055 = vmatpush.bf16.msra.mxu0 %v2933
        %3056 = vmatpush.bf16.msra.mxu0 %v2932
        %3057 = vmatpush.bf16.msra.mxu0 %v2931
        %3058 = vmatpush.bf16.msra.mxu0 %v2930
        %3059 = vmatpush.bf16.msra.mxu0 %v2929
        %3060 = vmatpush.bf16.msra.mxu0 %v2928
        %3061 = vmatpush.bf16.msra.mxu0 %v2927
        %3062 = vmatpush.bf16.msra.mxu0 %v2926
        %3063 = vmatmul.bf16.gmra.mxu0 %v1476
        %v3064 = vpop.f32.mrf.mxu0
        %v3065 = vadd.f32 %v2976, %v3064
        %v3066 = vpop.f32.mrf.mxu0
        %v3067 = vadd.f32 %v2978, %v3066
        %3068 = vmatmul.bf16.gmra.mxu0 %v1488
        %v3069 = vpop.f32.mrf.mxu0
        %v3070 = vadd.f32 %v2981, %v3069
        %v3071 = vpop.f32.mrf.mxu0
        %v3072 = vadd.f32 %v2983, %v3071
        %3073 = vmatmul.bf16.gmra.mxu0 %v1500
        %v3074 = vpop.f32.mrf.mxu0
        %v3075 = vadd.f32 %v2986, %v3074
        %v3076 = vpop.f32.mrf.mxu0
        %v3077 = vadd.f32 %v2988, %v3076
        %3078 = vmatmul.bf16.gmra.mxu0 %v1512
        %v3079 = vpop.f32.mrf.mxu0
        %v3080 = vadd.f32 %v2991, %v3079
        %v3081 = vpop.f32.mrf.mxu0
        %v3082 = vadd.f32 %v2993, %v3081
        %3083 = vmatmul.bf16.gmra.mxu0 %v1524
        %v3084 = vpop.f32.mrf.mxu0
        %v3085 = vadd.f32 %v2996, %v3084
        %v3086 = vpop.f32.mrf.mxu0
        %v3087 = vadd.f32 %v2998, %v3086
        %3088 = vmatmul.bf16.gmra.mxu0 %v1536
        %v3089 = vpop.f32.mrf.mxu0
        %v3090 = vadd.f32 %v3001, %v3089
        %v3091 = vpop.f32.mrf.mxu0
        %v3092 = vadd.f32 %v3003, %v3091
        %3093 = vmatmul.bf16.gmra.mxu0 %v1548
        %v3094 = vpop.f32.mrf.mxu0
        %v3095 = vadd.f32 %v3006, %v3094
        %v3096 = vpop.f32.mrf.mxu0
        %v3097 = vadd.f32 %v3008, %v3096
        %3098 = vmatmul.bf16.gmra.mxu0 %v1560
        %v3099 = vpop.f32.mrf.mxu0
        %v3100 = vadd.f32 %v3011, %v3099
        %v3101 = vpop.f32.mrf.mxu0
        %v3102 = vadd.f32 %v3013, %v3101
        %3103 = vmatmul.bf16.gmra.mxu0 %v1572
        %v3104 = vpop.f32.mrf.mxu0
        %v3105 = vadd.f32 %v3016, %v3104
        %v3106 = vpop.f32.mrf.mxu0
        %v3107 = vadd.f32 %v3018, %v3106
        %3108 = vmatmul.bf16.gmra.mxu0 %v1584
        %v3109 = vpop.f32.mrf.mxu0
        %v3110 = vadd.f32 %v3021, %v3109
        %v3111 = vpop.f32.mrf.mxu0
        %v3112 = vadd.f32 %v3023, %v3111
        %3113 = vmatmul.bf16.gmra.mxu0 %v1596
        %v3114 = vpop.f32.mrf.mxu0
        %v3115 = vadd.f32 %v3026, %v3114
        %v3116 = vpop.f32.mrf.mxu0
        %v3117 = vadd.f32 %v3028, %v3116
        %3118 = vmatmul.bf16.gmra.mxu0 %v1608
        %v3119 = vpop.f32.mrf.mxu0
        %v3120 = vadd.f32 %v3031, %v3119
        %v3121 = vpop.f32.mrf.mxu0
        %v3122 = vadd.f32 %v3033, %v3121
        %3123 = vmatmul.bf16.gmra.mxu0 %v1620
        %v3124 = vpop.f32.mrf.mxu0
        %v3125 = vadd.f32 %v3036, %v3124
        %v3126 = vpop.f32.mrf.mxu0
        %v3127 = vadd.f32 %v3038, %v3126
        %3128 = vmatmul.bf16.gmra.mxu0 %v1632
        %v3129 = vpop.f32.mrf.mxu0
        %v3130 = vadd.f32 %v3041, %v3129
        %v3131 = vpop.f32.mrf.mxu0
        %v3132 = vadd.f32 %v3043, %v3131
        %3133 = vmatmul.bf16.gmra.mxu0 %v1644
        %v3134 = vpop.f32.mrf.mxu0
        %v3135 = vadd.f32 %v3046, %v3134
        %v3136 = vpop.f32.mrf.mxu0
        %v3137 = vadd.f32 %v3048, %v3136
        %3138 = vmatmul.bf16.gmra.mxu0 %v1656
        %v3139 = vpop.f32.mrf.mxu0
        %v3140 = vadd.f32 %v3051, %v3139
        %v3141 = vpop.f32.mrf.mxu0
        %v3142 = vadd.f32 %v3053, %v3141
        %3143 = vdwg.mxu0
        %3144 = vmatpush.bf16.msra.mxu0 %v2941
        %3145 = vmatpush.bf16.msra.mxu0 %v2940
        %3146 = vmatpush.bf16.msra.mxu0 %v2939
        %3147 = vmatpush.bf16.msra.mxu0 %v2938
        %3148 = vmatpush.bf16.msra.mxu0 %v2937
        %3149 = vmatpush.bf16.msra.mxu0 %v2936
        %3150 = vmatpush.bf16.msra.mxu0 %v2935
        %3151 = vmatpush.bf16.msra.mxu0 %v2934
        %3152 = vmatmul.bf16.gmra.mxu0 %v1724
        %v3153 = vpop.f32.mrf.mxu0
        %v3154 = vadd.f32 %v3065, %v3153
        %v3155 = vpop.f32.mrf.mxu0
        %v3156 = vadd.f32 %v3067, %v3155
        %3157 = vmatmul.bf16.gmra.mxu0 %v1727
        %v3158 = vpop.f32.mrf.mxu0
        %v3159 = vadd.f32 %v3070, %v3158
        %v3160 = vpop.f32.mrf.mxu0
        %v3161 = vadd.f32 %v3072, %v3160
        %3162 = vmatmul.bf16.gmra.mxu0 %v1730
        %v3163 = vpop.f32.mrf.mxu0
        %v3164 = vadd.f32 %v3075, %v3163
        %v3165 = vpop.f32.mrf.mxu0
        %v3166 = vadd.f32 %v3077, %v3165
        %3167 = vmatmul.bf16.gmra.mxu0 %v1733
        %v3168 = vpop.f32.mrf.mxu0
        %v3169 = vadd.f32 %v3080, %v3168
        %v3170 = vpop.f32.mrf.mxu0
        %v3171 = vadd.f32 %v3082, %v3170
        %3172 = vmatmul.bf16.gmra.mxu0 %v1736
        %v3173 = vpop.f32.mrf.mxu0
        %v3174 = vadd.f32 %v3085, %v3173
        %v3175 = vpop.f32.mrf.mxu0
        %v3176 = vadd.f32 %v3087, %v3175
        %3177 = vmatmul.bf16.gmra.mxu0 %v1739
        %v3178 = vpop.f32.mrf.mxu0
        %v3179 = vadd.f32 %v3090, %v3178
        %v3180 = vpop.f32.mrf.mxu0
        %v3181 = vadd.f32 %v3092, %v3180
        %3182 = vmatmul.bf16.gmra.mxu0 %v1742
        %v3183 = vpop.f32.mrf.mxu0
        %v3184 = vadd.f32 %v3095, %v3183
        %v3185 = vpop.f32.mrf.mxu0
        %v3186 = vadd.f32 %v3097, %v3185
        %3187 = vmatmul.bf16.gmra.mxu0 %v1745
        %v3188 = vpop.f32.mrf.mxu0
        %v3189 = vadd.f32 %v3100, %v3188
        %v3190 = vpop.f32.mrf.mxu0
        %v3191 = vadd.f32 %v3102, %v3190
        %3192 = vmatmul.bf16.gmra.mxu0 %v1748
        %v3193 = vpop.f32.mrf.mxu0
        %v3194 = vadd.f32 %v3105, %v3193
        %v3195 = vpop.f32.mrf.mxu0
        %v3196 = vadd.f32 %v3107, %v3195
        %3197 = vmatmul.bf16.gmra.mxu0 %v1751
        %v3198 = vpop.f32.mrf.mxu0
        %v3199 = vadd.f32 %v3110, %v3198
        %v3200 = vpop.f32.mrf.mxu0
        %v3201 = vadd.f32 %v3112, %v3200
        %3202 = vmatmul.bf16.gmra.mxu0 %v1754
        %v3203 = vpop.f32.mrf.mxu0
        %v3204 = vadd.f32 %v3115, %v3203
        %v3205 = vpop.f32.mrf.mxu0
        %v3206 = vadd.f32 %v3117, %v3205
        %3207 = vmatmul.bf16.gmra.mxu0 %v1757
        %v3208 = vpop.f32.mrf.mxu0
        %v3209 = vadd.f32 %v3120, %v3208
        %v3210 = vpop.f32.mrf.mxu0
        %v3211 = vadd.f32 %v3122, %v3210
        %3212 = vmatmul.bf16.gmra.mxu0 %v1760
        %v3213 = vpop.f32.mrf.mxu0
        %v3214 = vadd.f32 %v3125, %v3213
        %v3215 = vpop.f32.mrf.mxu0
        %v3216 = vadd.f32 %v3127, %v3215
        %3217 = vmatmul.bf16.gmra.mxu0 %v1763
        %v3218 = vpop.f32.mrf.mxu0
        %v3219 = vadd.f32 %v3130, %v3218
        %v3220 = vpop.f32.mrf.mxu0
        %v3221 = vadd.f32 %v3132, %v3220
        %3222 = vmatmul.bf16.gmra.mxu0 %v1766
        %v3223 = vpop.f32.mrf.mxu0
        %v3224 = vadd.f32 %v3135, %v3223
        %v3225 = vpop.f32.mrf.mxu0
        %v3226 = vadd.f32 %v3137, %v3225
        %3227 = vmatmul.bf16.gmra.mxu0 %v1769
        %v3228 = vpop.f32.mrf.mxu0
        %v3229 = vadd.f32 %v3140, %v3228
        %v3230 = vpop.f32.mrf.mxu0
        %v3231 = vadd.f32 %v3142, %v3230
        %3232 = vdwg.mxu0
        %s3233 = scalar_lea.vmem [#allocation2], 24
        %v3234 = vld [vmem:[%s3233] sm:$0xf]
        %v3235 = vld [vmem:[%s3233 + $0x4] sm:$0xf]
        %v3236 = vld [vmem:[%s3233 + $0xc] sm:$0xf]
        %v3237 = vld [vmem:[%s3233 + $0x10] sm:$0xf]
        %v3238 = vld [vmem:[%s3233 + $0x18] sm:$0xf]
        %v3239 = vld [vmem:[%s3233 + $0x1c] sm:$0xf]
        %v3240 = vld [vmem:[%s3233 + $0x24] sm:$0xf]
        %v3241 = vld [vmem:[%s3233 + $0x28] sm:$0xf]
        %v3242 = vld [vmem:[%s3233 + $0x30] sm:$0xf]
        %v3243 = vld [vmem:[%s3233 + $0x34] sm:$0xf]
        %v3244 = vld [vmem:[%s3233 + $0x3c] sm:$0xf]
        %v3245 = vld [vmem:[%s3233 + $0x40] sm:$0xf]
        %v3246 = vld [vmem:[%s3233 + $0x48] sm:$0xf]
        %v3247 = vld [vmem:[%s3233 + $0x4c] sm:$0xf]
        %v3248 = vld [vmem:[%s3233 + $0x54] sm:$0xf]
        %v3249 = vld [vmem:[%s3233 + $0x58] sm:$0xf]
        %v3250 = vld [vmem:[%s3233 + $0x60] sm:$0xf]
        %v3251 = vld [vmem:[%s3233 + $0x64] sm:$0xf]
        %v3252 = vld [vmem:[%s3233 + $0x6c] sm:$0xf]
        %v3253 = vld [vmem:[%s3233 + $0x70] sm:$0xf]
        %v3254 = vld [vmem:[%s3233 + $0x78] sm:$0xf]
        %v3255 = vld [vmem:[%s3233 + $0x7c] sm:$0xf]
        %v3256 = vld [vmem:[%s3233 + $0x84] sm:$0xf]
        %v3257 = vld [vmem:[%s3233 + $0x88] sm:$0xf]
        %v3258 = vld [vmem:[%s3233 + $0x90] sm:$0xf]
        %v3259 = vld [vmem:[%s3233 + $0x94] sm:$0xf]
        %v3260 = vld [vmem:[%s3233 + $0x9c] sm:$0xf]
        %v3261 = vld [vmem:[%s3233 + $0xa0] sm:$0xf]
        %v3262 = vld [vmem:[%s3233 + $0xa8] sm:$0xf]
        %v3263 = vld [vmem:[%s3233 + $0xac] sm:$0xf]
        %v3264 = vld [vmem:[%s3233 + $0xb4] sm:$0xf]
        %v3265 = vld [vmem:[%s3233 + $0xb8] sm:$0xf]
        %v3266 = vld [vmem:[%s3233 + $0x8] sm:$0x1]
        %v3267 = vld [vmem:[%s3233 + $0x14] sm:$0x1]
        %v3268 = vld [vmem:[%s3233 + $0x20] sm:$0x1]
        %v3269 = vld [vmem:[%s3233 + $0x2c] sm:$0x1]
        %v3270 = vld [vmem:[%s3233 + $0x38] sm:$0x1]
        %v3271 = vld [vmem:[%s3233 + $0x44] sm:$0x1]
        %v3272 = vld [vmem:[%s3233 + $0x50] sm:$0x1]
        %v3273 = vld [vmem:[%s3233 + $0x5c] sm:$0x1]
        %v3274 = vld [vmem:[%s3233 + $0x68] sm:$0x1]
        %v3275 = vld [vmem:[%s3233 + $0x74] sm:$0x1]
        %v3276 = vld [vmem:[%s3233 + $0x80] sm:$0x1]
        %v3277 = vld [vmem:[%s3233 + $0x8c] sm:$0x1]
        %v3278 = vld [vmem:[%s3233 + $0x98] sm:$0x1]
        %v3279 = vld [vmem:[%s3233 + $0xa4] sm:$0x1]
        %v3280 = vld [vmem:[%s3233 + $0xb0] sm:$0x1]
        %v3281 = vld [vmem:[%s3233 + $0xbc] sm:$0x1]
        %v3282 = vld [vmem:[%s3233] sm:$0xe]
        %v3283 = vld [vmem:[%s3233 + $0xc] sm:$0xe]
        %v3284 = vld [vmem:[%s3233 + $0x18] sm:$0xe]
        %v3285 = vld [vmem:[%s3233 + $0x24] sm:$0xe]
        %v3286 = vld [vmem:[%s3233 + $0x30] sm:$0xe]
        %v3287 = vld [vmem:[%s3233 + $0x3c] sm:$0xe]
        %v3288 = vld [vmem:[%s3233 + $0x48] sm:$0xe]
        %v3289 = vld [vmem:[%s3233 + $0x54] sm:$0xe]
        %v3290 = vld [vmem:[%s3233 + $0x60] sm:$0xe]
        %v3291 = vld [vmem:[%s3233 + $0x6c] sm:$0xe]
        %v3292 = vld [vmem:[%s3233 + $0x78] sm:$0xe]
        %v3293 = vld [vmem:[%s3233 + $0x84] sm:$0xe]
        %v3294 = vld [vmem:[%s3233 + $0x90] sm:$0xe]
        %v3295 = vld [vmem:[%s3233 + $0x9c] sm:$0xe]
        %v3296 = vld [vmem:[%s3233 + $0xa8] sm:$0xe]
        %v3297 = vld [vmem:[%s3233 + $0xb4] sm:$0xe]
        %v3330 = vunpack.c.l.b16 %v3234
        %v3331 = vunpack.c.l.b16 %v3235
        %v3332 = vunpack.c.l.b16 %v3236
        %v3333 = vunpack.c.l.b16 %v3237
        %v3334 = vunpack.c.l.b16 %v3238
        %v3335 = vunpack.c.l.b16 %v3239
        %v3336 = vunpack.c.l.b16 %v3240
        %v3337 = vunpack.c.l.b16 %v3241
        %v3338 = vunpack.c.l.b16 %v3242
        %v3339 = vunpack.c.l.b16 %v3243
        %v3340 = vunpack.c.l.b16 %v3244
        %v3341 = vunpack.c.l.b16 %v3245
        %v3342 = vunpack.c.l.b16 %v3246
        %v3343 = vunpack.c.l.b16 %v3247
        %v3344 = vunpack.c.l.b16 %v3248
        %v3345 = vunpack.c.l.b16 %v3249
        %v3346 = vunpack.c.l.b16 %v3250
        %v3347 = vunpack.c.l.b16 %v3251
        %v3348 = vunpack.c.l.b16 %v3252
        %v3349 = vunpack.c.l.b16 %v3253
        %v3350 = vunpack.c.l.b16 %v3254
        %v3351 = vunpack.c.l.b16 %v3255
        %v3352 = vunpack.c.l.b16 %v3256
        %v3353 = vunpack.c.l.b16 %v3257
        %v3354 = vunpack.c.l.b16 %v3258
        %v3355 = vunpack.c.l.b16 %v3259
        %v3356 = vunpack.c.l.b16 %v3260
        %v3357 = vunpack.c.l.b16 %v3261
        %v3358 = vunpack.c.l.b16 %v3262
        %v3359 = vunpack.c.l.b16 %v3263
        %v3360 = vunpack.c.l.b16 %v3264
        %v3361 = vunpack.c.l.b16 %v3265
        %v3362 = vpack.c.b16 %v3331, %v3330
        %v3363 = vpack.c.b16 %v3333, %v3332
        %v3364 = vpack.c.b16 %v3335, %v3334
        %v3365 = vpack.c.b16 %v3337, %v3336
        %v3366 = vpack.c.b16 %v3339, %v3338
        %v3367 = vpack.c.b16 %v3341, %v3340
        %v3368 = vpack.c.b16 %v3343, %v3342
        %v3369 = vpack.c.b16 %v3345, %v3344
        %v3370 = vpack.c.b16 %v3347, %v3346
        %v3371 = vpack.c.b16 %v3349, %v3348
        %v3372 = vpack.c.b16 %v3351, %v3350
        %v3373 = vpack.c.b16 %v3353, %v3352
        %v3374 = vpack.c.b16 %v3355, %v3354
        %v3375 = vpack.c.b16 %v3357, %v3356
        %v3376 = vpack.c.b16 %v3359, %v3358
        %v3377 = vpack.c.b16 %v3361, %v3360
        %v3410 = vunpack.c.l.b16 %v3266
        %v3411 = vunpack.c.l.b16 %v3267
        %v3412 = vunpack.c.l.b16 %v3268
        %v3413 = vunpack.c.l.b16 %v3269
        %v3414 = vunpack.c.l.b16 %v3270
        %v3415 = vunpack.c.l.b16 %v3271
        %v3416 = vunpack.c.l.b16 %v3272
        %v3417 = vunpack.c.l.b16 %v3273
        %v3418 = vunpack.c.l.b16 %v3274
        %v3419 = vunpack.c.l.b16 %v3275
        %v3420 = vunpack.c.l.b16 %v3276
        %v3421 = vunpack.c.l.b16 %v3277
        %v3422 = vunpack.c.l.b16 %v3278
        %v3423 = vunpack.c.l.b16 %v3279
        %v3424 = vunpack.c.l.b16 %v3280
        %v3425 = vunpack.c.l.b16 %v3281
        %v3426 = vpack.c.b16 %v3410, %v3410
        %v3427 = vpack.c.b16 %v3411, %v3411
        %v3428 = vpack.c.b16 %v3412, %v3412
        %v3429 = vpack.c.b16 %v3413, %v3413
        %v3430 = vpack.c.b16 %v3414, %v3414
        %v3431 = vpack.c.b16 %v3415, %v3415
        %v3432 = vpack.c.b16 %v3416, %v3416
        %v3433 = vpack.c.b16 %v3417, %v3417
        %v3434 = vpack.c.b16 %v3418, %v3418
        %v3435 = vpack.c.b16 %v3419, %v3419
        %v3436 = vpack.c.b16 %v3420, %v3420
        %v3437 = vpack.c.b16 %v3421, %v3421
        %v3438 = vpack.c.b16 %v3422, %v3422
        %v3439 = vpack.c.b16 %v3423, %v3423
        %v3440 = vpack.c.b16 %v3424, %v3424
        %v3441 = vpack.c.b16 %v3425, %v3425
        %v3443 = vshrl.u32 %v3362, 16
        %v3445 = vshll.u32 %v3362, 16
        %v3447 = vrot.slane %v3445, 1
        %v3448 = vor.u32 %v3443, %v3447
        %v3450 = vshll.u32 %v3426, 16
        %v3452 = vrot.slane %v3450, 1
        %v3453 = vsel %vm1464, %v3448, %v3452
        %v3455 = vshrl.u32 %v3363, 16
        %v3457 = vshll.u32 %v3363, 16
        %v3459 = vrot.slane %v3457, 1
        %v3460 = vor.u32 %v3455, %v3459
        %v3462 = vshll.u32 %v3427, 16
        %v3464 = vrot.slane %v3462, 1
        %v3465 = vsel %vm1464, %v3460, %v3464
        %v3467 = vshrl.u32 %v3364, 16
        %v3469 = vshll.u32 %v3364, 16
        %v3471 = vrot.slane %v3469, 1
        %v3472 = vor.u32 %v3467, %v3471
        %v3474 = vshll.u32 %v3428, 16
        %v3476 = vrot.slane %v3474, 1
        %v3477 = vsel %vm1464, %v3472, %v3476
        %v3479 = vshrl.u32 %v3365, 16
        %v3481 = vshll.u32 %v3365, 16
        %v3483 = vrot.slane %v3481, 1
        %v3484 = vor.u32 %v3479, %v3483
        %v3486 = vshll.u32 %v3429, 16
        %v3488 = vrot.slane %v3486, 1
        %v3489 = vsel %vm1464, %v3484, %v3488
        %v3491 = vshrl.u32 %v3366, 16
        %v3493 = vshll.u32 %v3366, 16
        %v3495 = vrot.slane %v3493, 1
        %v3496 = vor.u32 %v3491, %v3495
        %v3498 = vshll.u32 %v3430, 16
        %v3500 = vrot.slane %v3498, 1
        %v3501 = vsel %vm1464, %v3496, %v3500
        %v3503 = vshrl.u32 %v3367, 16
        %v3505 = vshll.u32 %v3367, 16
        %v3507 = vrot.slane %v3505, 1
        %v3508 = vor.u32 %v3503, %v3507
        %v3510 = vshll.u32 %v3431, 16
        %v3512 = vrot.slane %v3510, 1
        %v3513 = vsel %vm1464, %v3508, %v3512
        %v3515 = vshrl.u32 %v3368, 16
        %v3517 = vshll.u32 %v3368, 16
        %v3519 = vrot.slane %v3517, 1
        %v3520 = vor.u32 %v3515, %v3519
        %v3522 = vshll.u32 %v3432, 16
        %v3524 = vrot.slane %v3522, 1
        %v3525 = vsel %vm1464, %v3520, %v3524
        %v3527 = vshrl.u32 %v3369, 16
        %v3529 = vshll.u32 %v3369, 16
        %v3531 = vrot.slane %v3529, 1
        %v3532 = vor.u32 %v3527, %v3531
        %v3534 = vshll.u32 %v3433, 16
        %v3536 = vrot.slane %v3534, 1
        %v3537 = vsel %vm1464, %v3532, %v3536
        %v3539 = vshrl.u32 %v3370, 16
        %v3541 = vshll.u32 %v3370, 16
        %v3543 = vrot.slane %v3541, 1
        %v3544 = vor.u32 %v3539, %v3543
        %v3546 = vshll.u32 %v3434, 16
        %v3548 = vrot.slane %v3546, 1
        %v3549 = vsel %vm1464, %v3544, %v3548
        %v3551 = vshrl.u32 %v3371, 16
        %v3553 = vshll.u32 %v3371, 16
        %v3555 = vrot.slane %v3553, 1
        %v3556 = vor.u32 %v3551, %v3555
        %v3558 = vshll.u32 %v3435, 16
        %v3560 = vrot.slane %v3558, 1
        %v3561 = vsel %vm1464, %v3556, %v3560
        %v3563 = vshrl.u32 %v3372, 16
        %v3565 = vshll.u32 %v3372, 16
        %v3567 = vrot.slane %v3565, 1
        %v3568 = vor.u32 %v3563, %v3567
        %v3570 = vshll.u32 %v3436, 16
        %v3572 = vrot.slane %v3570, 1
        %v3573 = vsel %vm1464, %v3568, %v3572
        %v3575 = vshrl.u32 %v3373, 16
        %v3577 = vshll.u32 %v3373, 16
        %v3579 = vrot.slane %v3577, 1
        %v3580 = vor.u32 %v3575, %v3579
        %v3582 = vshll.u32 %v3437, 16
        %v3584 = vrot.slane %v3582, 1
        %v3585 = vsel %vm1464, %v3580, %v3584
        %v3587 = vshrl.u32 %v3374, 16
        %v3589 = vshll.u32 %v3374, 16
        %v3591 = vrot.slane %v3589, 1
        %v3592 = vor.u32 %v3587, %v3591
        %v3594 = vshll.u32 %v3438, 16
        %v3596 = vrot.slane %v3594, 1
        %v3597 = vsel %vm1464, %v3592, %v3596
        %v3599 = vshrl.u32 %v3375, 16
        %v3601 = vshll.u32 %v3375, 16
        %v3603 = vrot.slane %v3601, 1
        %v3604 = vor.u32 %v3599, %v3603
        %v3606 = vshll.u32 %v3439, 16
        %v3608 = vrot.slane %v3606, 1
        %v3609 = vsel %vm1464, %v3604, %v3608
        %v3611 = vshrl.u32 %v3376, 16
        %v3613 = vshll.u32 %v3376, 16
        %v3615 = vrot.slane %v3613, 1
        %v3616 = vor.u32 %v3611, %v3615
        %v3618 = vshll.u32 %v3440, 16
        %v3620 = vrot.slane %v3618, 1
        %v3621 = vsel %vm1464, %v3616, %v3620
        %v3623 = vshrl.u32 %v3377, 16
        %v3625 = vshll.u32 %v3377, 16
        %v3627 = vrot.slane %v3625, 1
        %v3628 = vor.u32 %v3623, %v3627
        %v3630 = vshll.u32 %v3441, 16
        %v3632 = vrot.slane %v3630, 1
        %v3633 = vsel %vm1464, %v3628, %v3632
        %v3666 = vunpack.c.l.b16 %v3282
        %v3667 = vunpack.c.l.b16 %v3283
        %v3668 = vunpack.c.l.b16 %v3284
        %v3669 = vunpack.c.l.b16 %v3285
        %v3670 = vunpack.c.l.b16 %v3286
        %v3671 = vunpack.c.l.b16 %v3287
        %v3672 = vunpack.c.l.b16 %v3288
        %v3673 = vunpack.c.l.b16 %v3289
        %v3674 = vunpack.c.l.b16 %v3290
        %v3675 = vunpack.c.l.b16 %v3291
        %v3676 = vunpack.c.l.b16 %v3292
        %v3677 = vunpack.c.l.b16 %v3293
        %v3678 = vunpack.c.l.b16 %v3294
        %v3679 = vunpack.c.l.b16 %v3295
        %v3680 = vunpack.c.l.b16 %v3296
        %v3681 = vunpack.c.l.b16 %v3297
        %v3682 = vpack.c.b16 %v3331, %v3666
        %v3683 = vpack.c.b16 %v3333, %v3667
        %v3684 = vpack.c.b16 %v3335, %v3668
        %v3685 = vpack.c.b16 %v3337, %v3669
        %v3686 = vpack.c.b16 %v3339, %v3670
        %v3687 = vpack.c.b16 %v3341, %v3671
        %v3688 = vpack.c.b16 %v3343, %v3672
        %v3689 = vpack.c.b16 %v3345, %v3673
        %v3690 = vpack.c.b16 %v3347, %v3674
        %v3691 = vpack.c.b16 %v3349, %v3675
        %v3692 = vpack.c.b16 %v3351, %v3676
        %v3693 = vpack.c.b16 %v3353, %v3677
        %v3694 = vpack.c.b16 %v3355, %v3678
        %v3695 = vpack.c.b16 %v3357, %v3679
        %v3696 = vpack.c.b16 %v3359, %v3680
        %v3697 = vpack.c.b16 %v3361, %v3681
        %v3698 = vrot.slane %v3682, 1
        %v3699 = vrot.slane %v3426, 1
        %v3700 = vsel %vm1721, %v3698, %v3699
        %v3701 = vrot.slane %v3683, 1
        %v3702 = vrot.slane %v3427, 1
        %v3703 = vsel %vm1721, %v3701, %v3702
        %v3704 = vrot.slane %v3684, 1
        %v3705 = vrot.slane %v3428, 1
        %v3706 = vsel %vm1721, %v3704, %v3705
        %v3707 = vrot.slane %v3685, 1
        %v3708 = vrot.slane %v3429, 1
        %v3709 = vsel %vm1721, %v3707, %v3708
        %v3710 = vrot.slane %v3686, 1
        %v3711 = vrot.slane %v3430, 1
        %v3712 = vsel %vm1721, %v3710, %v3711
        %v3713 = vrot.slane %v3687, 1
        %v3714 = vrot.slane %v3431, 1
        %v3715 = vsel %vm1721, %v3713, %v3714
        %v3716 = vrot.slane %v3688, 1
        %v3717 = vrot.slane %v3432, 1
        %v3718 = vsel %vm1721, %v3716, %v3717
        %v3719 = vrot.slane %v3689, 1
        %v3720 = vrot.slane %v3433, 1
        %v3721 = vsel %vm1721, %v3719, %v3720
        %v3722 = vrot.slane %v3690, 1
        %v3723 = vrot.slane %v3434, 1
        %v3724 = vsel %vm1721, %v3722, %v3723
        %v3725 = vrot.slane %v3691, 1
        %v3726 = vrot.slane %v3435, 1
        %v3727 = vsel %vm1721, %v3725, %v3726
        %v3728 = vrot.slane %v3692, 1
        %v3729 = vrot.slane %v3436, 1
        %v3730 = vsel %vm1721, %v3728, %v3729
        %v3731 = vrot.slane %v3693, 1
        %v3732 = vrot.slane %v3437, 1
        %v3733 = vsel %vm1721, %v3731, %v3732
        %v3734 = vrot.slane %v3694, 1
        %v3735 = vrot.slane %v3438, 1
        %v3736 = vsel %vm1721, %v3734, %v3735
        %v3737 = vrot.slane %v3695, 1
        %v3738 = vrot.slane %v3439, 1
        %v3739 = vsel %vm1721, %v3737, %v3738
        %v3740 = vrot.slane %v3696, 1
        %v3741 = vrot.slane %v3440, 1
        %v3742 = vsel %vm1721, %v3740, %v3741
        %v3743 = vrot.slane %v3697, 1
        %v3744 = vrot.slane %v3441, 1
        %v3745 = vsel %vm1721, %v3743, %v3744
        %s3762 = scalar_lea.vmem [#allocation8], 384
        %v3763 = vld [vmem:[%s3762] sm:$0xf]
        %v3764 = vld [vmem:[%s3762 + $0x4] sm:$0xf]
        %v3765 = vld [vmem:[%s3762 + $0x8] sm:$0xf]
        %v3766 = vld [vmem:[%s3762 + $0xc] sm:$0xf]
        %v3767 = vld [vmem:[%s3762 + $0x10] sm:$0xf]
        %v3768 = vld [vmem:[%s3762 + $0x14] sm:$0xf]
        %v3769 = vld [vmem:[%s3762 + $0x18] sm:$0xf]
        %v3770 = vld [vmem:[%s3762 + $0x1c] sm:$0xf]
        %v3771 = vld [vmem:[%s3762 + $0x20] sm:$0xf]
        %v3772 = vld [vmem:[%s3762 + $0x24] sm:$0xf]
        %v3773 = vld [vmem:[%s3762 + $0x28] sm:$0xf]
        %v3774 = vld [vmem:[%s3762 + $0x2c] sm:$0xf]
        %v3775 = vld [vmem:[%s3762 + $0x30] sm:$0xf]
        %v3776 = vld [vmem:[%s3762 + $0x34] sm:$0xf]
        %v3777 = vld [vmem:[%s3762 + $0x38] sm:$0xf]
        %v3778 = vld [vmem:[%s3762 + $0x3c] sm:$0xf]
        %v3779 = vld [vmem:[%s3762 + $0x40] sm:$0xf]
        %v3780 = vld [vmem:[%s3762 + $0x44] sm:$0xf]
        %v3781 = vld [vmem:[%s3762 + $0x48] sm:$0xf]
        %v3782 = vld [vmem:[%s3762 + $0x4c] sm:$0xf]
        %v3783 = vld [vmem:[%s3762 + $0x50] sm:$0xf]
        %v3784 = vld [vmem:[%s3762 + $0x54] sm:$0xf]
        %v3785 = vld [vmem:[%s3762 + $0x58] sm:$0xf]
        %v3786 = vld [vmem:[%s3762 + $0x5c] sm:$0xf]
        %v3787 = vld [vmem:[%s3762 + $0x60] sm:$0xf]
        %v3788 = vld [vmem:[%s3762 + $0x64] sm:$0xf]
        %v3789 = vld [vmem:[%s3762 + $0x68] sm:$0xf]
        %v3790 = vld [vmem:[%s3762 + $0x6c] sm:$0xf]
        %v3791 = vld [vmem:[%s3762 + $0x70] sm:$0xf]
        %v3792 = vld [vmem:[%s3762 + $0x74] sm:$0xf]
        %v3793 = vld [vmem:[%s3762 + $0x78] sm:$0xf]
        %v3794 = vld [vmem:[%s3762 + $0x7c] sm:$0xf]
        %v3795 = vld [vmem:[%s3762 + $0x80] sm:$0xf]
        %v3796 = vld [vmem:[%s3762 + $0x84] sm:$0xf]
        %v3797 = vld [vmem:[%s3762 + $0x88] sm:$0xf]
        %v3798 = vld [vmem:[%s3762 + $0x8c] sm:$0xf]
        %v3799 = vld [vmem:[%s3762 + $0x90] sm:$0xf]
        %v3800 = vld [vmem:[%s3762 + $0x94] sm:$0xf]
        %v3801 = vld [vmem:[%s3762 + $0x98] sm:$0xf]
        %v3802 = vld [vmem:[%s3762 + $0x9c] sm:$0xf]
        %v3803 = vld [vmem:[%s3762 + $0xa0] sm:$0xf]
        %v3804 = vld [vmem:[%s3762 + $0xa4] sm:$0xf]
        %v3805 = vld [vmem:[%s3762 + $0xa8] sm:$0xf]
        %v3806 = vld [vmem:[%s3762 + $0xac] sm:$0xf]
        %v3807 = vld [vmem:[%s3762 + $0xb0] sm:$0xf]
        %v3808 = vld [vmem:[%s3762 + $0xb4] sm:$0xf]
        %v3809 = vld [vmem:[%s3762 + $0xb8] sm:$0xf]
        %v3810 = vld [vmem:[%s3762 + $0xbc] sm:$0xf]
        %v3859 = vunpack.c.l.b16 %v3763
        %v3860 = vunpack.c.l.b16 %v3764
        %v3861 = vunpack.c.l.b16 %v3765
        %v3862 = vunpack.c.l.b16 %v3766
        %v3863 = vunpack.c.l.b16 %v3767
        %v3864 = vunpack.c.l.b16 %v3768
        %v3865 = vunpack.c.l.b16 %v3769
        %v3866 = vunpack.c.l.b16 %v3770
        %v3867 = vunpack.c.l.b16 %v3771
        %v3868 = vunpack.c.l.b16 %v3772
        %v3869 = vunpack.c.l.b16 %v3773
        %v3870 = vunpack.c.l.b16 %v3774
        %v3871 = vunpack.c.l.b16 %v3775
        %v3872 = vunpack.c.l.b16 %v3776
        %v3873 = vunpack.c.l.b16 %v3777
        %v3874 = vunpack.c.l.b16 %v3778
        %v3875 = vunpack.c.l.b16 %v3779
        %v3876 = vunpack.c.l.b16 %v3780
        %v3877 = vunpack.c.l.b16 %v3781
        %v3878 = vunpack.c.l.b16 %v3782
        %v3879 = vunpack.c.l.b16 %v3783
        %v3880 = vunpack.c.l.b16 %v3784
        %v3881 = vunpack.c.l.b16 %v3785
        %v3882 = vunpack.c.l.b16 %v3786
        %v3883 = vunpack.c.l.b16 %v3787
        %v3884 = vunpack.c.l.b16 %v3788
        %v3885 = vunpack.c.l.b16 %v3789
        %v3886 = vunpack.c.l.b16 %v3790
        %v3887 = vunpack.c.l.b16 %v3791
        %v3888 = vunpack.c.l.b16 %v3792
        %v3889 = vunpack.c.l.b16 %v3793
        %v3890 = vunpack.c.l.b16 %v3794
        %v3891 = vunpack.c.l.b16 %v3795
        %v3892 = vunpack.c.l.b16 %v3796
        %v3893 = vunpack.c.l.b16 %v3797
        %v3894 = vunpack.c.l.b16 %v3798
        %v3895 = vunpack.c.l.b16 %v3799
        %v3896 = vunpack.c.l.b16 %v3800
        %v3897 = vunpack.c.l.b16 %v3801
        %v3898 = vunpack.c.l.b16 %v3802
        %v3899 = vunpack.c.l.b16 %v3803
        %v3900 = vunpack.c.l.b16 %v3804
        %v3901 = vunpack.c.l.b16 %v3805
        %v3902 = vunpack.c.l.b16 %v3806
        %v3903 = vunpack.c.l.b16 %v3807
        %v3904 = vunpack.c.l.b16 %v3808
        %v3905 = vunpack.c.l.b16 %v3809
        %v3906 = vunpack.c.l.b16 %v3810
        %v3907 = vpack.c.b16 %v3860, %v3859
        %v3908 = vpack.c.b16 %v3862, %v3861
        %v3909 = vpack.c.b16 %v3864, %v3863
        %v3910 = vpack.c.b16 %v3866, %v3865
        %v3911 = vpack.c.b16 %v3868, %v3867
        %v3912 = vpack.c.b16 %v3870, %v3869
        %v3913 = vpack.c.b16 %v3872, %v3871
        %v3914 = vpack.c.b16 %v3874, %v3873
        %v3915 = vpack.c.b16 %v3876, %v3875
        %v3916 = vpack.c.b16 %v3878, %v3877
        %v3917 = vpack.c.b16 %v3880, %v3879
        %v3918 = vpack.c.b16 %v3882, %v3881
        %v3919 = vpack.c.b16 %v3884, %v3883
        %v3920 = vpack.c.b16 %v3886, %v3885
        %v3921 = vpack.c.b16 %v3888, %v3887
        %v3922 = vpack.c.b16 %v3890, %v3889
        %v3923 = vpack.c.b16 %v3892, %v3891
        %v3924 = vpack.c.b16 %v3894, %v3893
        %v3925 = vpack.c.b16 %v3896, %v3895
        %v3926 = vpack.c.b16 %v3898, %v3897
        %v3927 = vpack.c.b16 %v3900, %v3899
        %v3928 = vpack.c.b16 %v3902, %v3901
        %v3929 = vpack.c.b16 %v3904, %v3903
        %v3930 = vpack.c.b16 %v3906, %v3905
        %3955 = vmatpush.bf16.msra.mxu0 %v3914
        %3956 = vmatpush.bf16.msra.mxu0 %v3913
        %3957 = vmatpush.bf16.msra.mxu0 %v3912
        %3958 = vmatpush.bf16.msra.mxu0 %v3911
        %3959 = vmatpush.bf16.msra.mxu0 %v3910
        %3960 = vmatpush.bf16.msra.mxu0 %v3909
        %3961 = vmatpush.bf16.msra.mxu0 %v3908
        %3962 = vmatpush.bf16.msra.mxu0 %v3907
        %3963 = vmatmul.bf16.gmra.mxu0 %v3362
        %v3964 = vpop.f32.mrf.mxu0
        %v3965 = vadd.f32 0.0, %v3964
        %v3966 = vpop.f32.mrf.mxu0
        %v3967 = vadd.f32 0.0, %v3966
        %3968 = vmatmul.bf16.gmra.mxu0 %v3363
        %v3969 = vpop.f32.mrf.mxu0
        %v3970 = vadd.f32 0.0, %v3969
        %v3971 = vpop.f32.mrf.mxu0
        %v3972 = vadd.f32 0.0, %v3971
        %3973 = vmatmul.bf16.gmra.mxu0 %v3364
        %v3974 = vpop.f32.mrf.mxu0
        %v3975 = vadd.f32 0.0, %v3974
        %v3976 = vpop.f32.mrf.mxu0
        %v3977 = vadd.f32 0.0, %v3976
        %3978 = vmatmul.bf16.gmra.mxu0 %v3365
        %v3979 = vpop.f32.mrf.mxu0
        %v3980 = vadd.f32 0.0, %v3979
        %v3981 = vpop.f32.mrf.mxu0
        %v3982 = vadd.f32 0.0, %v3981
        %3983 = vmatmul.bf16.gmra.mxu0 %v3366
        %v3984 = vpop.f32.mrf.mxu0
        %v3985 = vadd.f32 0.0, %v3984
        %v3986 = vpop.f32.mrf.mxu0
        %v3987 = vadd.f32 0.0, %v3986
        %3988 = vmatmul.bf16.gmra.mxu0 %v3367
        %v3989 = vpop.f32.mrf.mxu0
        %v3990 = vadd.f32 0.0, %v3989
        %v3991 = vpop.f32.mrf.mxu0
        %v3992 = vadd.f32 0.0, %v3991
        %3993 = vmatmul.bf16.gmra.mxu0 %v3368
        %v3994 = vpop.f32.mrf.mxu0
        %v3995 = vadd.f32 0.0, %v3994
        %v3996 = vpop.f32.mrf.mxu0
        %v3997 = vadd.f32 0.0, %v3996
        %3998 = vmatmul.bf16.gmra.mxu0 %v3369
        %v3999 = vpop.f32.mrf.mxu0
        %v4000 = vadd.f32 0.0, %v3999
        %v4001 = vpop.f32.mrf.mxu0
        %v4002 = vadd.f32 0.0, %v4001
        %4003 = vmatmul.bf16.gmra.mxu0 %v3370
        %v4004 = vpop.f32.mrf.mxu0
        %v4005 = vadd.f32 0.0, %v4004
        %v4006 = vpop.f32.mrf.mxu0
        %v4007 = vadd.f32 0.0, %v4006
        %4008 = vmatmul.bf16.gmra.mxu0 %v3371
        %v4009 = vpop.f32.mrf.mxu0
        %v4010 = vadd.f32 0.0, %v4009
        %v4011 = vpop.f32.mrf.mxu0
        %v4012 = vadd.f32 0.0, %v4011
        %4013 = vmatmul.bf16.gmra.mxu0 %v3372
        %v4014 = vpop.f32.mrf.mxu0
        %v4015 = vadd.f32 0.0, %v4014
        %v4016 = vpop.f32.mrf.mxu0
        %v4017 = vadd.f32 0.0, %v4016
        %4018 = vmatmul.bf16.gmra.mxu0 %v3373
        %v4019 = vpop.f32.mrf.mxu0
        %v4020 = vadd.f32 0.0, %v4019
        %v4021 = vpop.f32.mrf.mxu0
        %v4022 = vadd.f32 0.0, %v4021
        %4023 = vmatmul.bf16.gmra.mxu0 %v3374
        %v4024 = vpop.f32.mrf.mxu0
        %v4025 = vadd.f32 0.0, %v4024
        %v4026 = vpop.f32.mrf.mxu0
        %v4027 = vadd.f32 0.0, %v4026
        %4028 = vmatmul.bf16.gmra.mxu0 %v3375
        %v4029 = vpop.f32.mrf.mxu0
        %v4030 = vadd.f32 0.0, %v4029
        %v4031 = vpop.f32.mrf.mxu0
        %v4032 = vadd.f32 0.0, %v4031
        %4033 = vmatmul.bf16.gmra.mxu0 %v3376
        %v4034 = vpop.f32.mrf.mxu0
        %v4035 = vadd.f32 0.0, %v4034
        %v4036 = vpop.f32.mrf.mxu0
        %v4037 = vadd.f32 0.0, %v4036
        %4038 = vmatmul.bf16.gmra.mxu0 %v3377
        %v4039 = vpop.f32.mrf.mxu0
        %v4040 = vadd.f32 0.0, %v4039
        %v4041 = vpop.f32.mrf.mxu0
        %v4042 = vadd.f32 0.0, %v4041
        %4043 = vdwg.mxu0
        %4044 = vmatpush.bf16.msra.mxu0 %v3922
        %4045 = vmatpush.bf16.msra.mxu0 %v3921
        %4046 = vmatpush.bf16.msra.mxu0 %v3920
        %4047 = vmatpush.bf16.msra.mxu0 %v3919
        %4048 = vmatpush.bf16.msra.mxu0 %v3918
        %4049 = vmatpush.bf16.msra.mxu0 %v3917
        %4050 = vmatpush.bf16.msra.mxu0 %v3916
        %4051 = vmatpush.bf16.msra.mxu0 %v3915
        %4052 = vmatmul.bf16.gmra.mxu0 %v3453
        %v4053 = vpop.f32.mrf.mxu0
        %v4054 = vadd.f32 %v3965, %v4053
        %v4055 = vpop.f32.mrf.mxu0
        %v4056 = vadd.f32 %v3967, %v4055
        %4057 = vmatmul.bf16.gmra.mxu0 %v3465
        %v4058 = vpop.f32.mrf.mxu0
        %v4059 = vadd.f32 %v3970, %v4058
        %v4060 = vpop.f32.mrf.mxu0
        %v4061 = vadd.f32 %v3972, %v4060
        %4062 = vmatmul.bf16.gmra.mxu0 %v3477
        %v4063 = vpop.f32.mrf.mxu0
        %v4064 = vadd.f32 %v3975, %v4063
        %v4065 = vpop.f32.mrf.mxu0
        %v4066 = vadd.f32 %v3977, %v4065
        %4067 = vmatmul.bf16.gmra.mxu0 %v3489
        %v4068 = vpop.f32.mrf.mxu0
        %v4069 = vadd.f32 %v3980, %v4068
        %v4070 = vpop.f32.mrf.mxu0
        %v4071 = vadd.f32 %v3982, %v4070
        %4072 = vmatmul.bf16.gmra.mxu0 %v3501
        %v4073 = vpop.f32.mrf.mxu0
        %v4074 = vadd.f32 %v3985, %v4073
        %v4075 = vpop.f32.mrf.mxu0
        %v4076 = vadd.f32 %v3987, %v4075
        %4077 = vmatmul.bf16.gmra.mxu0 %v3513
        %v4078 = vpop.f32.mrf.mxu0
        %v4079 = vadd.f32 %v3990, %v4078
        %v4080 = vpop.f32.mrf.mxu0
        %v4081 = vadd.f32 %v3992, %v4080
        %4082 = vmatmul.bf16.gmra.mxu0 %v3525
        %v4083 = vpop.f32.mrf.mxu0
        %v4084 = vadd.f32 %v3995, %v4083
        %v4085 = vpop.f32.mrf.mxu0
        %v4086 = vadd.f32 %v3997, %v4085
        %4087 = vmatmul.bf16.gmra.mxu0 %v3537
        %v4088 = vpop.f32.mrf.mxu0
        %v4089 = vadd.f32 %v4000, %v4088
        %v4090 = vpop.f32.mrf.mxu0
        %v4091 = vadd.f32 %v4002, %v4090
        %4092 = vmatmul.bf16.gmra.mxu0 %v3549
        %v4093 = vpop.f32.mrf.mxu0
        %v4094 = vadd.f32 %v4005, %v4093
        %v4095 = vpop.f32.mrf.mxu0
        %v4096 = vadd.f32 %v4007, %v4095
        %4097 = vmatmul.bf16.gmra.mxu0 %v3561
        %v4098 = vpop.f32.mrf.mxu0
        %v4099 = vadd.f32 %v4010, %v4098
        %v4100 = vpop.f32.mrf.mxu0
        %v4101 = vadd.f32 %v4012, %v4100
        %4102 = vmatmul.bf16.gmra.mxu0 %v3573
        %v4103 = vpop.f32.mrf.mxu0
        %v4104 = vadd.f32 %v4015, %v4103
        %v4105 = vpop.f32.mrf.mxu0
        %v4106 = vadd.f32 %v4017, %v4105
        %4107 = vmatmul.bf16.gmra.mxu0 %v3585
        %v4108 = vpop.f32.mrf.mxu0
        %v4109 = vadd.f32 %v4020, %v4108
        %v4110 = vpop.f32.mrf.mxu0
        %v4111 = vadd.f32 %v4022, %v4110
        %4112 = vmatmul.bf16.gmra.mxu0 %v3597
        %v4113 = vpop.f32.mrf.mxu0
        %v4114 = vadd.f32 %v4025, %v4113
        %v4115 = vpop.f32.mrf.mxu0
        %v4116 = vadd.f32 %v4027, %v4115
        %4117 = vmatmul.bf16.gmra.mxu0 %v3609
        %v4118 = vpop.f32.mrf.mxu0
        %v4119 = vadd.f32 %v4030, %v4118
        %v4120 = vpop.f32.mrf.mxu0
        %v4121 = vadd.f32 %v4032, %v4120
        %4122 = vmatmul.bf16.gmra.mxu0 %v3621
        %v4123 = vpop.f32.mrf.mxu0
        %v4124 = vadd.f32 %v4035, %v4123
        %v4125 = vpop.f32.mrf.mxu0
        %v4126 = vadd.f32 %v4037, %v4125
        %4127 = vmatmul.bf16.gmra.mxu0 %v3633
        %v4128 = vpop.f32.mrf.mxu0
        %v4129 = vadd.f32 %v4040, %v4128
        %v4130 = vpop.f32.mrf.mxu0
        %v4131 = vadd.f32 %v4042, %v4130
        %4132 = vdwg.mxu0
        %4133 = vmatpush.bf16.msra.mxu0 %v3930
        %4134 = vmatpush.bf16.msra.mxu0 %v3929
        %4135 = vmatpush.bf16.msra.mxu0 %v3928
        %4136 = vmatpush.bf16.msra.mxu0 %v3927
        %4137 = vmatpush.bf16.msra.mxu0 %v3926
        %4138 = vmatpush.bf16.msra.mxu0 %v3925
        %4139 = vmatpush.bf16.msra.mxu0 %v3924
        %4140 = vmatpush.bf16.msra.mxu0 %v3923
        %4141 = vmatmul.bf16.gmra.mxu0 %v3700
        %v4142 = vpop.f32.mrf.mxu0
        %v4143 = vadd.f32 %v4054, %v4142
        %v4144 = vpop.f32.mrf.mxu0
        %v4145 = vadd.f32 %v4056, %v4144
        %4146 = vmatmul.bf16.gmra.mxu0 %v3703
        %v4147 = vpop.f32.mrf.mxu0
        %v4148 = vadd.f32 %v4059, %v4147
        %v4149 = vpop.f32.mrf.mxu0
        %v4150 = vadd.f32 %v4061, %v4149
        %4151 = vmatmul.bf16.gmra.mxu0 %v3706
        %v4152 = vpop.f32.mrf.mxu0
        %v4153 = vadd.f32 %v4064, %v4152
        %v4154 = vpop.f32.mrf.mxu0
        %v4155 = vadd.f32 %v4066, %v4154
        %4156 = vmatmul.bf16.gmra.mxu0 %v3709
        %v4157 = vpop.f32.mrf.mxu0
        %v4158 = vadd.f32 %v4069, %v4157
        %v4159 = vpop.f32.mrf.mxu0
        %v4160 = vadd.f32 %v4071, %v4159
        %4161 = vmatmul.bf16.gmra.mxu0 %v3712
        %v4162 = vpop.f32.mrf.mxu0
        %v4163 = vadd.f32 %v4074, %v4162
        %v4164 = vpop.f32.mrf.mxu0
        %v4165 = vadd.f32 %v4076, %v4164
        %4166 = vmatmul.bf16.gmra.mxu0 %v3715
        %v4167 = vpop.f32.mrf.mxu0
        %v4168 = vadd.f32 %v4079, %v4167
        %v4169 = vpop.f32.mrf.mxu0
        %v4170 = vadd.f32 %v4081, %v4169
        %4171 = vmatmul.bf16.gmra.mxu0 %v3718
        %v4172 = vpop.f32.mrf.mxu0
        %v4173 = vadd.f32 %v4084, %v4172
        %v4174 = vpop.f32.mrf.mxu0
        %v4175 = vadd.f32 %v4086, %v4174
        %4176 = vmatmul.bf16.gmra.mxu0 %v3721
        %v4177 = vpop.f32.mrf.mxu0
        %v4178 = vadd.f32 %v4089, %v4177
        %v4179 = vpop.f32.mrf.mxu0
        %v4180 = vadd.f32 %v4091, %v4179
        %4181 = vmatmul.bf16.gmra.mxu0 %v3724
        %v4182 = vpop.f32.mrf.mxu0
        %v4183 = vadd.f32 %v4094, %v4182
        %v4184 = vpop.f32.mrf.mxu0
        %v4185 = vadd.f32 %v4096, %v4184
        %4186 = vmatmul.bf16.gmra.mxu0 %v3727
        %v4187 = vpop.f32.mrf.mxu0
        %v4188 = vadd.f32 %v4099, %v4187
        %v4189 = vpop.f32.mrf.mxu0
        %v4190 = vadd.f32 %v4101, %v4189
        %4191 = vmatmul.bf16.gmra.mxu0 %v3730
        %v4192 = vpop.f32.mrf.mxu0
        %v4193 = vadd.f32 %v4104, %v4192
        %v4194 = vpop.f32.mrf.mxu0
        %v4195 = vadd.f32 %v4106, %v4194
        %4196 = vmatmul.bf16.gmra.mxu0 %v3733
        %v4197 = vpop.f32.mrf.mxu0
        %v4198 = vadd.f32 %v4109, %v4197
        %v4199 = vpop.f32.mrf.mxu0
        %v4200 = vadd.f32 %v4111, %v4199
        %4201 = vmatmul.bf16.gmra.mxu0 %v3736
        %v4202 = vpop.f32.mrf.mxu0
        %v4203 = vadd.f32 %v4114, %v4202
        %v4204 = vpop.f32.mrf.mxu0
        %v4205 = vadd.f32 %v4116, %v4204
        %4206 = vmatmul.bf16.gmra.mxu0 %v3739
        %v4207 = vpop.f32.mrf.mxu0
        %v4208 = vadd.f32 %v4119, %v4207
        %v4209 = vpop.f32.mrf.mxu0
        %v4210 = vadd.f32 %v4121, %v4209
        %4211 = vmatmul.bf16.gmra.mxu0 %v3742
        %v4212 = vpop.f32.mrf.mxu0
        %v4213 = vadd.f32 %v4124, %v4212
        %v4214 = vpop.f32.mrf.mxu0
        %v4215 = vadd.f32 %v4126, %v4214
        %4216 = vmatmul.bf16.gmra.mxu0 %v3745
        %v4217 = vpop.f32.mrf.mxu0
        %v4218 = vadd.f32 %v4129, %v4217
        %v4219 = vpop.f32.mrf.mxu0
        %v4220 = vadd.f32 %v4131, %v4219
        %4221 = vdwg.mxu0
        %v4222 = vadd.f32 %v3154, %v4143
        %v4223 = vadd.f32 %v3156, %v4145
        %v4224 = vadd.f32 %v3159, %v4148
        %v4225 = vadd.f32 %v3161, %v4150
        %v4226 = vadd.f32 %v3164, %v4153
        %v4227 = vadd.f32 %v3166, %v4155
        %v4228 = vadd.f32 %v3169, %v4158
        %v4229 = vadd.f32 %v3171, %v4160
        %v4230 = vadd.f32 %v3174, %v4163
        %v4231 = vadd.f32 %v3176, %v4165
        %v4232 = vadd.f32 %v3179, %v4168
        %v4233 = vadd.f32 %v3181, %v4170
        %v4234 = vadd.f32 %v3184, %v4173
        %v4235 = vadd.f32 %v3186, %v4175
        %v4236 = vadd.f32 %v3189, %v4178
        %v4237 = vadd.f32 %v3191, %v4180
        %v4238 = vadd.f32 %v3194, %v4183
        %v4239 = vadd.f32 %v3196, %v4185
        %v4240 = vadd.f32 %v3199, %v4188
        %v4241 = vadd.f32 %v3201, %v4190
        %v4242 = vadd.f32 %v3204, %v4193
        %v4243 = vadd.f32 %v3206, %v4195
        %v4244 = vadd.f32 %v3209, %v4198
        %v4245 = vadd.f32 %v3211, %v4200
        %v4246 = vadd.f32 %v3214, %v4203
        %v4247 = vadd.f32 %v3216, %v4205
        %v4248 = vadd.f32 %v3219, %v4208
        %v4249 = vadd.f32 %v3221, %v4210
        %v4250 = vadd.f32 %v3224, %v4213
        %v4251 = vadd.f32 %v3226, %v4215
        %v4252 = vadd.f32 %v3229, %v4218
        %v4253 = vadd.f32 %v3231, %v4220
        %v4254 = vld [vmem:[%s4] sm:$0x1]
        %v4256 = vperm.slane %v4254, 0
        %v4258 = vadd.f32 %v4222, %v4256
        %v4259 = vadd.f32 %v4223, %v4256
        %v4260 = vadd.f32 %v4224, %v4256
        %v4261 = vadd.f32 %v4225, %v4256
        %v4262 = vadd.f32 %v4226, %v4256
        %v4263 = vadd.f32 %v4227, %v4256
        %v4264 = vadd.f32 %v4228, %v4256
        %v4265 = vadd.f32 %v4229, %v4256
        %v4266 = vadd.f32 %v4230, %v4256
        %v4267 = vadd.f32 %v4231, %v4256
        %v4268 = vadd.f32 %v4232, %v4256
        %v4269 = vadd.f32 %v4233, %v4256
        %v4270 = vadd.f32 %v4234, %v4256
        %v4271 = vadd.f32 %v4235, %v4256
        %v4272 = vadd.f32 %v4236, %v4256
        %v4273 = vadd.f32 %v4237, %v4256
        %v4274 = vadd.f32 %v4238, %v4256
        %v4275 = vadd.f32 %v4239, %v4256
        %v4276 = vadd.f32 %v4240, %v4256
        %v4277 = vadd.f32 %v4241, %v4256
        %v4278 = vadd.f32 %v4242, %v4256
        %v4279 = vadd.f32 %v4243, %v4256
        %v4280 = vadd.f32 %v4244, %v4256
        %v4281 = vadd.f32 %v4245, %v4256
        %v4282 = vadd.f32 %v4246, %v4256
        %v4283 = vadd.f32 %v4247, %v4256
        %v4284 = vadd.f32 %v4248, %v4256
        %v4285 = vadd.f32 %v4249, %v4256
        %v4286 = vadd.f32 %v4250, %v4256
        %v4287 = vadd.f32 %v4251, %v4256
        %v4288 = vadd.f32 %v4252, %v4256
        %v4289 = vadd.f32 %v4253, %v4256
        %v4290 = vmax.f32 %v4258, 0.0
        %v4291 = vmax.f32 %v4259, 0.0
        %v4292 = vmax.f32 %v4260, 0.0
        %v4293 = vmax.f32 %v4261, 0.0
        %v4294 = vmax.f32 %v4262, 0.0
        %v4295 = vmax.f32 %v4263, 0.0
        %v4296 = vmax.f32 %v4264, 0.0
        %v4297 = vmax.f32 %v4265, 0.0
        %v4298 = vmax.f32 %v4266, 0.0
        %v4299 = vmax.f32 %v4267, 0.0
        %v4300 = vmax.f32 %v4268, 0.0
        %v4301 = vmax.f32 %v4269, 0.0
        %v4302 = vmax.f32 %v4270, 0.0
        %v4303 = vmax.f32 %v4271, 0.0
        %v4304 = vmax.f32 %v4272, 0.0
        %v4305 = vmax.f32 %v4273, 0.0
        %v4306 = vmax.f32 %v4274, 0.0
        %v4307 = vmax.f32 %v4275, 0.0
        %v4308 = vmax.f32 %v4276, 0.0
        %v4309 = vmax.f32 %v4277, 0.0
        %v4310 = vmax.f32 %v4278, 0.0
        %v4311 = vmax.f32 %v4279, 0.0
        %v4312 = vmax.f32 %v4280, 0.0
        %v4313 = vmax.f32 %v4281, 0.0
        %v4314 = vmax.f32 %v4282, 0.0
        %v4315 = vmax.f32 %v4283, 0.0
        %v4316 = vmax.f32 %v4284, 0.0
        %v4317 = vmax.f32 %v4285, 0.0
        %v4318 = vmax.f32 %v4286, 0.0
        %v4319 = vmax.f32 %v4287, 0.0
        %v4320 = vmax.f32 %v4288, 0.0
        %v4321 = vmax.f32 %v4289, 0.0
        %v4322 = vpack.c.bf16 %v4291, %v4290
        %v4323 = vpack.c.bf16 %v4293, %v4292
        %v4324 = vpack.c.bf16 %v4295, %v4294
        %v4325 = vpack.c.bf16 %v4297, %v4296
        %v4326 = vpack.c.bf16 %v4299, %v4298
        %v4327 = vpack.c.bf16 %v4301, %v4300
        %v4328 = vpack.c.bf16 %v4303, %v4302
        %v4329 = vpack.c.bf16 %v4305, %v4304
        %v4330 = vpack.c.bf16 %v4307, %v4306
        %v4331 = vpack.c.bf16 %v4309, %v4308
        %v4332 = vpack.c.bf16 %v4311, %v4310
        %v4333 = vpack.c.bf16 %v4313, %v4312
        %v4334 = vpack.c.bf16 %v4315, %v4314
        %v4335 = vpack.c.bf16 %v4317, %v4316
        %v4336 = vpack.c.bf16 %v4319, %v4318
        %v4337 = vpack.c.bf16 %v4321, %v4320
        %v4338 = vld [vmem:[#allocation9] sm:$0xf]
        %v4339 = vld [vmem:[#allocation9 + $0x4] sm:$0xf]
        %v4340 = vld [vmem:[#allocation9 + $0x8] sm:$0xf]
        %v4341 = vld [vmem:[#allocation9 + $0xc] sm:$0xf]
        %v4342 = vld [vmem:[#allocation9 + $0x10] sm:$0xf]
        %v4343 = vld [vmem:[#allocation9 + $0x14] sm:$0xf]
        %v4344 = vld [vmem:[#allocation9 + $0x18] sm:$0xf]
        %v4345 = vld [vmem:[#allocation9 + $0x1c] sm:$0xf]
        %v4346 = vld [vmem:[#allocation9 + $0x20] sm:$0xf]
        %v4347 = vld [vmem:[#allocation9 + $0x24] sm:$0xf]
        %v4348 = vld [vmem:[#allocation9 + $0x28] sm:$0xf]
        %v4349 = vld [vmem:[#allocation9 + $0x2c] sm:$0xf]
        %v4350 = vld [vmem:[#allocation9 + $0x30] sm:$0xf]
        %v4351 = vld [vmem:[#allocation9 + $0x34] sm:$0xf]
        %v4352 = vld [vmem:[#allocation9 + $0x38] sm:$0xf]
        %v4353 = vld [vmem:[#allocation9 + $0x3c] sm:$0xf]
        %v4354 = vld [vmem:[%s6] sm:$0x1]
        %v4356 = vperm.slane %v4354, 0
        %v4374 = vunpack.c.l.b16 %v4338
        %v4375 = vunpack.c.l.b16 %v4339
        %v4376 = vunpack.c.l.b16 %v4340
        %v4377 = vunpack.c.l.b16 %v4341
        %v4378 = vunpack.c.l.b16 %v4342
        %v4379 = vunpack.c.l.b16 %v4343
        %v4380 = vunpack.c.l.b16 %v4344
        %v4381 = vunpack.c.l.b16 %v4345
        %v4382 = vunpack.c.l.b16 %v4346
        %v4383 = vunpack.c.l.b16 %v4347
        %v4384 = vunpack.c.l.b16 %v4348
        %v4385 = vunpack.c.l.b16 %v4349
        %v4386 = vunpack.c.l.b16 %v4350
        %v4387 = vunpack.c.l.b16 %v4351
        %v4388 = vunpack.c.l.b16 %v4352
        %v4389 = vunpack.c.l.b16 %v4353
        %v4390 = vpack.c.b16 %v4375, %v4374
        %v4391 = vpack.c.b16 %v4377, %v4376
        %v4392 = vpack.c.b16 %v4379, %v4378
        %v4393 = vpack.c.b16 %v4381, %v4380
        %v4394 = vpack.c.b16 %v4383, %v4382
        %v4395 = vpack.c.b16 %v4385, %v4384
        %v4396 = vpack.c.b16 %v4387, %v4386
        %v4397 = vpack.c.b16 %v4389, %v4388
        %4406 = vmatpush.bf16.msra.mxu0 %v4397
        %4407 = vmatpush.bf16.msra.mxu0 %v4396
        %4408 = vmatpush.bf16.msra.mxu0 %v4395
        %4409 = vmatpush.bf16.msra.mxu0 %v4394
        %4410 = vmatpush.bf16.msra.mxu0 %v4393
        %4411 = vmatpush.bf16.msra.mxu0 %v4392
        %4412 = vmatpush.bf16.msra.mxu0 %v4391
        %4413 = vmatpush.bf16.msra.mxu0 %v4390
        %4414 = vmatmul.bf16.gmra.mxu0 %v4322
        %v4415 = vpop.f32.mrf.mxu0
        %v4416 = vadd.f32 %v4356, %v4415
        %v4417 = vpop.f32.mrf.mxu0
        %v4418 = vadd.f32 %v4356, %v4417
        %4419 = vmatmul.bf16.gmra.mxu0 %v4323
        %v4420 = vpop.f32.mrf.mxu0
        %v4421 = vadd.f32 %v4356, %v4420
        %v4422 = vpop.f32.mrf.mxu0
        %v4423 = vadd.f32 %v4356, %v4422
        %4424 = vmatmul.bf16.gmra.mxu0 %v4324
        %v4425 = vpop.f32.mrf.mxu0
        %v4426 = vadd.f32 %v4356, %v4425
        %v4427 = vpop.f32.mrf.mxu0
        %v4428 = vadd.f32 %v4356, %v4427
        %4429 = vmatmul.bf16.gmra.mxu0 %v4325
        %v4430 = vpop.f32.mrf.mxu0
        %v4431 = vadd.f32 %v4356, %v4430
        %v4432 = vpop.f32.mrf.mxu0
        %v4433 = vadd.f32 %v4356, %v4432
        %4434 = vmatmul.bf16.gmra.mxu0 %v4326
        %v4435 = vpop.f32.mrf.mxu0
        %v4436 = vadd.f32 %v4356, %v4435
        %v4437 = vpop.f32.mrf.mxu0
        %v4438 = vadd.f32 %v4356, %v4437
        %4439 = vmatmul.bf16.gmra.mxu0 %v4327
        %v4440 = vpop.f32.mrf.mxu0
        %v4441 = vadd.f32 %v4356, %v4440
        %v4442 = vpop.f32.mrf.mxu0
        %v4443 = vadd.f32 %v4356, %v4442
        %4444 = vmatmul.bf16.gmra.mxu0 %v4328
        %v4445 = vpop.f32.mrf.mxu0
        %v4446 = vadd.f32 %v4356, %v4445
        %v4447 = vpop.f32.mrf.mxu0
        %v4448 = vadd.f32 %v4356, %v4447
        %4449 = vmatmul.bf16.gmra.mxu0 %v4329
        %v4450 = vpop.f32.mrf.mxu0
        %v4451 = vadd.f32 %v4356, %v4450
        %v4452 = vpop.f32.mrf.mxu0
        %v4453 = vadd.f32 %v4356, %v4452
        %4454 = vmatmul.bf16.gmra.mxu0 %v4330
        %v4455 = vpop.f32.mrf.mxu0
        %v4456 = vadd.f32 %v4356, %v4455
        %v4457 = vpop.f32.mrf.mxu0
        %v4458 = vadd.f32 %v4356, %v4457
        %4459 = vmatmul.bf16.gmra.mxu0 %v4331
        %v4460 = vpop.f32.mrf.mxu0
        %v4461 = vadd.f32 %v4356, %v4460
        %v4462 = vpop.f32.mrf.mxu0
        %v4463 = vadd.f32 %v4356, %v4462
        %4464 = vmatmul.bf16.gmra.mxu0 %v4332
        %v4465 = vpop.f32.mrf.mxu0
        %v4466 = vadd.f32 %v4356, %v4465
        %v4467 = vpop.f32.mrf.mxu0
        %v4468 = vadd.f32 %v4356, %v4467
        %4469 = vmatmul.bf16.gmra.mxu0 %v4333
        %v4470 = vpop.f32.mrf.mxu0
        %v4471 = vadd.f32 %v4356, %v4470
        %v4472 = vpop.f32.mrf.mxu0
        %v4473 = vadd.f32 %v4356, %v4472
        %4474 = vmatmul.bf16.gmra.mxu0 %v4334
        %v4475 = vpop.f32.mrf.mxu0
        %v4476 = vadd.f32 %v4356, %v4475
        %v4477 = vpop.f32.mrf.mxu0
        %v4478 = vadd.f32 %v4356, %v4477
        %4479 = vmatmul.bf16.gmra.mxu0 %v4335
        %v4480 = vpop.f32.mrf.mxu0
        %v4481 = vadd.f32 %v4356, %v4480
        %v4482 = vpop.f32.mrf.mxu0
        %v4483 = vadd.f32 %v4356, %v4482
        %4484 = vmatmul.bf16.gmra.mxu0 %v4336
        %v4485 = vpop.f32.mrf.mxu0
        %v4486 = vadd.f32 %v4356, %v4485
        %v4487 = vpop.f32.mrf.mxu0
        %v4488 = vadd.f32 %v4356, %v4487
        %4489 = vmatmul.bf16.gmra.mxu0 %v4337
        %v4490 = vpop.f32.mrf.mxu0
        %v4491 = vadd.f32 %v4356, %v4490
        %v4492 = vpop.f32.mrf.mxu0
        %v4493 = vadd.f32 %v4356, %v4492
        %4494 = vdwg.mxu0
        %v4495 = vld [vmem:[%s302] sm:$0xf]
        %v4496 = vld [vmem:[%s302 + $0x4] sm:$0xf]
        %v4497 = vld [vmem:[%s302 + $0x8] sm:$0xf]
        %v4498 = vld [vmem:[%s302 + $0xc] sm:$0xf]
        %v4499 = vld [vmem:[%s302 + $0x10] sm:$0xf]
        %v4500 = vld [vmem:[%s302 + $0x14] sm:$0xf]
        %v4501 = vld [vmem:[%s302 + $0x18] sm:$0xf]
        %v4502 = vld [vmem:[%s302 + $0x1c] sm:$0xf]
        %v4503 = vld [vmem:[%s302 + $0x20] sm:$0xf]
        %v4504 = vld [vmem:[%s302 + $0x24] sm:$0xf]
        %v4505 = vld [vmem:[%s302 + $0x28] sm:$0xf]
        %v4506 = vld [vmem:[%s302 + $0x2c] sm:$0xf]
        %v4507 = vld [vmem:[%s302 + $0x30] sm:$0xf]
        %v4508 = vld [vmem:[%s302 + $0x34] sm:$0xf]
        %v4509 = vld [vmem:[%s302 + $0x38] sm:$0xf]
        %v4510 = vld [vmem:[%s302 + $0x3c] sm:$0xf]
        %v4511 = vld [vmem:[%s302 + $0x40] sm:$0xf]
        %v4512 = vld [vmem:[%s302 + $0x44] sm:$0xf]
        %v4513 = vld [vmem:[%s302 + $0x48] sm:$0xf]
        %v4514 = vld [vmem:[%s302 + $0x4c] sm:$0xf]
        %v4515 = vld [vmem:[%s302 + $0x50] sm:$0xf]
        %v4516 = vld [vmem:[%s302 + $0x54] sm:$0xf]
        %v4517 = vld [vmem:[%s302 + $0x58] sm:$0xf]
        %v4518 = vld [vmem:[%s302 + $0x5c] sm:$0xf]
        %v4519 = vld [vmem:[%s302 + $0x60] sm:$0xf]
        %v4520 = vld [vmem:[%s302 + $0x64] sm:$0xf]
        %v4521 = vld [vmem:[%s302 + $0x68] sm:$0xf]
        %v4522 = vld [vmem:[%s302 + $0x6c] sm:$0xf]
        %v4523 = vld [vmem:[%s302 + $0x70] sm:$0xf]
        %v4524 = vld [vmem:[%s302 + $0x74] sm:$0xf]
        %v4525 = vld [vmem:[%s302 + $0x78] sm:$0xf]
        %v4526 = vld [vmem:[%s302 + $0x7c] sm:$0xf]
        %v4527 = vunpack.c.l.bf16 %v4495
        %v4528 = vunpack.c.l.bf16 %v4496
        %v4529 = vunpack.c.l.bf16 %v4497
        %v4530 = vunpack.c.l.bf16 %v4498
        %v4531 = vunpack.c.l.bf16 %v4499
        %v4532 = vunpack.c.l.bf16 %v4500
        %v4533 = vunpack.c.l.bf16 %v4501
        %v4534 = vunpack.c.l.bf16 %v4502
        %v4535 = vunpack.c.l.bf16 %v4503
        %v4536 = vunpack.c.l.bf16 %v4504
        %v4537 = vunpack.c.l.bf16 %v4505
        %v4538 = vunpack.c.l.bf16 %v4506
        %v4539 = vunpack.c.l.bf16 %v4507
        %v4540 = vunpack.c.l.bf16 %v4508
        %v4541 = vunpack.c.l.bf16 %v4509
        %v4542 = vunpack.c.l.bf16 %v4510
        %v4543 = vunpack.c.l.bf16 %v4511
        %v4544 = vunpack.c.l.bf16 %v4512
        %v4545 = vunpack.c.l.bf16 %v4513
        %v4546 = vunpack.c.l.bf16 %v4514
        %v4547 = vunpack.c.l.bf16 %v4515
        %v4548 = vunpack.c.l.bf16 %v4516
        %v4549 = vunpack.c.l.bf16 %v4517
        %v4550 = vunpack.c.l.bf16 %v4518
        %v4551 = vunpack.c.l.bf16 %v4519
        %v4552 = vunpack.c.l.bf16 %v4520
        %v4553 = vunpack.c.l.bf16 %v4521
        %v4554 = vunpack.c.l.bf16 %v4522
        %v4555 = vunpack.c.l.bf16 %v4523
        %v4556 = vunpack.c.l.bf16 %v4524
        %v4557 = vunpack.c.l.bf16 %v4525
        %v4558 = vunpack.c.l.bf16 %v4526
        %v4559 = vadd.f32 %v4416, %v4527
        %v4560 = vadd.f32 %v4418, %v4528
        %v4561 = vadd.f32 %v4421, %v4529
        %v4562 = vadd.f32 %v4423, %v4530
        %v4563 = vadd.f32 %v4426, %v4531
        %v4564 = vadd.f32 %v4428, %v4532
        %v4565 = vadd.f32 %v4431, %v4533
        %v4566 = vadd.f32 %v4433, %v4534
        %v4567 = vadd.f32 %v4436, %v4535
        %v4568 = vadd.f32 %v4438, %v4536
        %v4569 = vadd.f32 %v4441, %v4537
        %v4570 = vadd.f32 %v4443, %v4538
        %v4571 = vadd.f32 %v4446, %v4539
        %v4572 = vadd.f32 %v4448, %v4540
        %v4573 = vadd.f32 %v4451, %v4541
        %v4574 = vadd.f32 %v4453, %v4542
        %v4575 = vadd.f32 %v4456, %v4543
        %v4576 = vadd.f32 %v4458, %v4544
        %v4577 = vadd.f32 %v4461, %v4545
        %v4578 = vadd.f32 %v4463, %v4546
        %v4579 = vadd.f32 %v4466, %v4547
        %v4580 = vadd.f32 %v4468, %v4548
        %v4581 = vadd.f32 %v4471, %v4549
        %v4582 = vadd.f32 %v4473, %v4550
        %v4583 = vadd.f32 %v4476, %v4551
        %v4584 = vadd.f32 %v4478, %v4552
        %v4585 = vadd.f32 %v4481, %v4553
        %v4586 = vadd.f32 %v4483, %v4554
        %v4587 = vadd.f32 %v4486, %v4555
        %v4588 = vadd.f32 %v4488, %v4556
        %v4589 = vadd.f32 %v4491, %v4557
        %v4590 = vadd.f32 %v4493, %v4558
        %v4591 = vmax.f32 %v4559, 0.0
        %v4592 = vmax.f32 %v4560, 0.0
        %v4593 = vmax.f32 %v4561, 0.0
        %v4594 = vmax.f32 %v4562, 0.0
        %v4595 = vmax.f32 %v4563, 0.0
        %v4596 = vmax.f32 %v4564, 0.0
        %v4597 = vmax.f32 %v4565, 0.0
        %v4598 = vmax.f32 %v4566, 0.0
        %v4599 = vmax.f32 %v4567, 0.0
        %v4600 = vmax.f32 %v4568, 0.0
        %v4601 = vmax.f32 %v4569, 0.0
        %v4602 = vmax.f32 %v4570, 0.0
        %v4603 = vmax.f32 %v4571, 0.0
        %v4604 = vmax.f32 %v4572, 0.0
        %v4605 = vmax.f32 %v4573, 0.0
        %v4606 = vmax.f32 %v4574, 0.0
        %v4607 = vmax.f32 %v4575, 0.0
        %v4608 = vmax.f32 %v4576, 0.0
        %v4609 = vmax.f32 %v4577, 0.0
        %v4610 = vmax.f32 %v4578, 0.0
        %v4611 = vmax.f32 %v4579, 0.0
        %v4612 = vmax.f32 %v4580, 0.0
        %v4613 = vmax.f32 %v4581, 0.0
        %v4614 = vmax.f32 %v4582, 0.0
        %v4615 = vmax.f32 %v4583, 0.0
        %v4616 = vmax.f32 %v4584, 0.0
        %v4617 = vmax.f32 %v4585, 0.0
        %v4618 = vmax.f32 %v4586, 0.0
        %v4619 = vmax.f32 %v4587, 0.0
        %v4620 = vmax.f32 %v4588, 0.0
        %v4621 = vmax.f32 %v4589, 0.0
        %v4622 = vmax.f32 %v4590, 0.0
        %v4623 = vpack.c.bf16 %v4591, %v4591
        %v4624 = vpack.c.bf16 %v4592, %v4592
        %v4625 = vpack.c.bf16 %v4593, %v4593
        %v4626 = vpack.c.bf16 %v4594, %v4594
        %v4627 = vpack.c.bf16 %v4595, %v4595
        %v4628 = vpack.c.bf16 %v4596, %v4596
        %v4629 = vpack.c.bf16 %v4597, %v4597
        %v4630 = vpack.c.bf16 %v4598, %v4598
        %v4631 = vpack.c.bf16 %v4599, %v4599
        %v4632 = vpack.c.bf16 %v4600, %v4600
        %v4633 = vpack.c.bf16 %v4601, %v4601
        %v4634 = vpack.c.bf16 %v4602, %v4602
        %v4635 = vpack.c.bf16 %v4603, %v4603
        %v4636 = vpack.c.bf16 %v4604, %v4604
        %v4637 = vpack.c.bf16 %v4605, %v4605
        %v4638 = vpack.c.bf16 %v4606, %v4606
        %v4639 = vpack.c.bf16 %v4607, %v4607
        %v4640 = vpack.c.bf16 %v4608, %v4608
        %v4641 = vpack.c.bf16 %v4609, %v4609
        %v4642 = vpack.c.bf16 %v4610, %v4610
        %v4643 = vpack.c.bf16 %v4611, %v4611
        %v4644 = vpack.c.bf16 %v4612, %v4612
        %v4645 = vpack.c.bf16 %v4613, %v4613
        %v4646 = vpack.c.bf16 %v4614, %v4614
        %v4647 = vpack.c.bf16 %v4615, %v4615
        %v4648 = vpack.c.bf16 %v4616, %v4616
        %v4649 = vpack.c.bf16 %v4617, %v4617
        %v4650 = vpack.c.bf16 %v4618, %v4618
        %v4651 = vpack.c.bf16 %v4619, %v4619
        %v4652 = vpack.c.bf16 %v4620, %v4620
        %v4653 = vpack.c.bf16 %v4621, %v4621
        %v4654 = vpack.c.bf16 %v4622, %v4622
        %4655 = vst [vmem:[%s348] sm:$0xf] %v4623
        %4656 = vst [vmem:[%s348 + $0x4] sm:$0xf] %v4624
        %4657 = vst [vmem:[%s348 + $0x8] sm:$0xf] %v4625
        %4658 = vst [vmem:[%s348 + $0xc] sm:$0xf] %v4626
        %4659 = vst [vmem:[%s348 + $0x10] sm:$0xf] %v4627
        %4660 = vst [vmem:[%s348 + $0x14] sm:$0xf] %v4628
        %4661 = vst [vmem:[%s348 + $0x18] sm:$0xf] %v4629
        %4662 = vst [vmem:[%s348 + $0x1c] sm:$0xf] %v4630
        %4663 = vst [vmem:[%s348 + $0x20] sm:$0xf] %v4631
        %4664 = vst [vmem:[%s348 + $0x24] sm:$0xf] %v4632
        %4665 = vst [vmem:[%s348 + $0x28] sm:$0xf] %v4633
        %4666 = vst [vmem:[%s348 + $0x2c] sm:$0xf] %v4634
        %4667 = vst [vmem:[%s348 + $0x30] sm:$0xf] %v4635
        %4668 = vst [vmem:[%s348 + $0x34] sm:$0xf] %v4636
        %4669 = vst [vmem:[%s348 + $0x38] sm:$0xf] %v4637
        %4670 = vst [vmem:[%s348 + $0x3c] sm:$0xf] %v4638
        %4671 = vst [vmem:[%s348 + $0x40] sm:$0xf] %v4639
        %4672 = vst [vmem:[%s348 + $0x44] sm:$0xf] %v4640
        %4673 = vst [vmem:[%s348 + $0x48] sm:$0xf] %v4641
        %4674 = vst [vmem:[%s348 + $0x4c] sm:$0xf] %v4642
        %4675 = vst [vmem:[%s348 + $0x50] sm:$0xf] %v4643
        %4676 = vst [vmem:[%s348 + $0x54] sm:$0xf] %v4644
        %4677 = vst [vmem:[%s348 + $0x58] sm:$0xf] %v4645
        %4678 = vst [vmem:[%s348 + $0x5c] sm:$0xf] %v4646
        %4679 = vst [vmem:[%s348 + $0x60] sm:$0xf] %v4647
        %4680 = vst [vmem:[%s348 + $0x64] sm:$0xf] %v4648
        %4681 = vst [vmem:[%s348 + $0x68] sm:$0xf] %v4649
        %4682 = vst [vmem:[%s348 + $0x6c] sm:$0xf] %v4650
        %4683 = vst [vmem:[%s348 + $0x70] sm:$0xf] %v4651
        %4684 = vst [vmem:[%s348 + $0x74] sm:$0xf] %v4652
        %4685 = vst [vmem:[%s348 + $0x78] sm:$0xf] %v4653
        %4686 = vst [vmem:[%s348 + $0x7c] sm:$0xf] %v4654
        %s4687 = sand.u32 %s186, 1
        %s4688 = scalar_lea.sflag [#allocation5], %s4687
        %s4689 = sand.u32 %s186, 1
        %s4690 = smul.addr %s4689, 128
        %s4691 = scalar_lea.vmem [#allocation11], %s4690
        // Predicated region
        $region65: #{tpu_custom_call.1} parent=47 // pred_check
          %p4692 = pneg %p196
        $region66: #{tpu_custom_call.1} parent=47 // pred_check_branch
          %4694 = sbr.rel (%p4692) target = $region68
        $region67: #{tpu_custom_call.1} parent=47 // pred_region
          %4696 = vsyncadd %s4688, 0
          %s4697 = smul.addr %s26, 32
          %s4698 = smul.addr %s4697, 4
          %s4699 = scalar_lea.hbm %s7, %s4698
          %s4700 = sshll.u32 %s4691, 4
          %s4701 = int_to_ptr.vmem [resolvable:$true] %s4700
          %s4702 = sshll.u32 %s4699, 4
          %s4703 = int_to_ptr.hbm [resolvable:$true] %s4702
          %4708 = dma.vmem_to_hbm [thread:$0]  %s4701, 2048, %s4703, %s4688, 64, 64, 4
        $region68: #{tpu_custom_call.1} parent=47 // pred_fallthru
          _
      $region48: #{tpu_custom_call.1} parent=5 // pred_fallthru
        _
      %p4709 = scmp.le.s32.totalorder 2, %s21
      // Predicated region
      $region69: #{tpu_custom_call.1} parent=5 // pred_check
        %p4710 = pneg %p4709
      $region70: #{tpu_custom_call.1} parent=5 // pred_check_branch
        %4712 = sbr.rel (%p4710) target = $region72
      $region71: #{tpu_custom_call.1} parent=5 // pred_region
        %s4713 = ssub.s32 %s21, 2
        // Predicated region
        $region73: #{tpu_custom_call.1} parent=71 // pred_check
          %p4714 = pneg %p202
        $region74: #{tpu_custom_call.1} parent=71 // pred_check_branch
          %4716 = sbr.rel (%p4714) target = $region76
        $region75: #{tpu_custom_call.1} parent=71 // pred_region
          %s4717 = sand.u32 %s187, 1
          %s4718 = scalar_lea.sflag [#allocation5], %s4717
          %s4719 = sand.u32 %s187, 1
          %s4720 = smul.addr %s4719, 128
          %s4721 = scalar_lea.vmem [#allocation11], %s4720
          %4723 = dma.done %s4718, 2048
        $region76: #{tpu_custom_call.1} parent=71 // pred_fallthru
          _
      $region72: #{tpu_custom_call.1} parent=5 // pred_fallthru
        _
    $region6: #{tpu_custom_call.1} parent=1 // loop_footer
      %s25 = sadd.s32 1, %s21
    $region7: #{tpu_custom_call.1} parent=1 // loop_footer_branch
      %20 = sbr.rel target = $region3
    $region8: #{tpu_custom_call.1} parent=1 // loop_exit
      _
    %4724 = vsyncpa [#allocation4], 1
    %s4725 = scalar_lea.sflag [#allocation4], 1
    %4726 = vsyncpa %s4725, 1
    %4727 = vsyncpa [#allocation7], 1
    %4728 = vsyncpa [#allocation10], 1
    %4729 = vsyncpa [#allocation5], 1
    %s4730 = scalar_lea.sflag [#allocation5], 1
    %4731 = vsyncpa %s4730, 1

</llo_original>
